<compile_context>
chip_gen: v7x
topology: tpu7x:2x2x1
jax: 0.10.0
libtpu: 0.0.40
codegen_flags: <defaults>
</compile_context>

<pallas_src>
import functools

import jax
import jax.numpy as jnp
from jax.experimental import pallas as pl
from jax.experimental.pallas import tpu as pltpu


def _round_up(x, m):
    return (x + m - 1) // m * m


def _preferred_tn():
    # v5e MXU is 128 wide; v6e / v7x are 256 wide.
    try:
        kind = jax.devices()[0].device_kind.lower()
        if "v5" in kind:
            return 128
    except Exception:
        pass
    return 256


# --------------------------- fused matmul kernel -----------------------------
def _matmul_kernel(a_ref, b_ref, *refs, epilogue, want_stats):
    if want_stats:
        o_ref, stats_ref, acc_ref = refs
    else:
        o_ref, acc_ref = refs
        stats_ref = None

    @pl.when(pl.program_id(2) == 0)
    def _():
        acc_ref[...] = jnp.zeros_like(acc_ref)

    acc_ref[...] += jnp.dot(a_ref[...], b_ref[...],
                            preferred_element_type=jnp.float32)

    @pl.when(pl.program_id(2) == pl.num_programs(2) - 1)
    def _():
        acc = acc_ref[...]
        if want_stats:
            # Per-column partial sum / sum-of-squares of the raw conv output so
            # BatchNorm stats never re-read the activation from HBM.
            s = jnp.sum(acc, axis=0, keepdims=True)
            q = jnp.sum(acc * acc, axis=0, keepdims=True)
            pad = jnp.zeros((6, acc.shape[1]), jnp.float32)
            stats_ref[...] = jnp.concatenate([s, q, pad], axis=0)[None]
        if epilogue == "leaky":
            acc = jnp.where(acc >= 0.0, acc, 0.2 * acc)
        elif epilogue == "sigmoid":
            acc = pl.reciprocal(1.0 + jnp.exp(-acc), approx=True)
        o_ref[...] = acc.astype(o_ref.dtype)


def pallas_matmul(a, b, *, epilogue="none", want_stats=False,
                  out_dtype=jnp.float32):
    """(M, K) @ (K, N) on the MXU with bf16 operands + f32 accumulation.

    epilogue in {"none", "leaky", "sigmoid"} is fused into the final K step.
    want_stats additionally returns per-column (sum, sum_of_squares) of the
    f32 result, computed from the VMEM accumulator.
    """
    a = a.astype(jnp.bfloat16)
    b = b.astype(jnp.bfloat16)
    M, K = a.shape
    K2, N = b.shape
    assert K == K2

    # N (lane) axis: pad only when Cout is not a multiple of 128 (final conv).
    Np = _round_up(N, 128)
    if Np != N:
        b = jnp.pad(b, ((0, 0), (0, Np - N)))
    tn_pref = _preferred_tn()
    tn = tn_pref if Np % tn_pref == 0 else 128

    # K axis: full-depth block when K is small (layer 1, K=48); else 512/256/128.
    tk = K
    for cand in (512, 256, 128):
        if K % cand == 0:
            tk = cand
            break

    # M axis: one full block for small M, otherwise 256-row tiles.
    Mp = _round_up(M, 8)
    if Mp <= 512:
        tm = Mp
    else:
        tm = 256
        Mp = _round_up(Mp, tm)
    if Mp != M:
        a = jnp.pad(a, ((0, Mp - M), (0, 0)))

    grid = (Mp // tm, Np // tn, K // tk)

    kernel = functools.partial(_matmul_kernel, epilogue=epilogue,
                               want_stats=want_stats)

    out_shape = jax.ShapeDtypeStruct((Mp, Np), out_dtype)
    out_specs = pl.BlockSpec((tm, tn), lambda i, j, k: (i, j))
    if want_stats:
        out_shape = (out_shape,
                     jax.ShapeDtypeStruct((grid[0], 8, Np), jnp.float32))
        out_specs = (out_specs,
                     pl.BlockSpec((1, 8, tn), lambda i, j, k: (i, 0, j)))

    flops = 2 * Mp * Np * K
    transcendentals = Mp * Np if epilogue == "sigmoid" else 0
    bytes_accessed = (a.size * 2 + b.size * 2
                      + Mp * Np * jnp.dtype(out_dtype).itemsize)

    res = pl.pallas_call(
        kernel,
        out_shape=out_shape,
        grid_spec=pltpu.PrefetchScalarGridSpec(
            num_scalar_prefetch=0,
            grid=grid,
            in_specs=[pl.BlockSpec((tm, tk), lambda i, j, k: (i, k)),
                      pl.BlockSpec((tk, tn), lambda i, j, k: (k, j))],
            out_specs=out_specs,
            scratch_shapes=[pltpu.VMEM((tm, tn), jnp.float32)]),
        compiler_params=pltpu.CompilerParams(
            dimension_semantics=("parallel", "parallel", "arbitrary"),
            vmem_limit_bytes=32 * 1024 * 1024),
        cost_estimate=pl.CostEstimate(flops=flops,
                                      transcendentals=transcendentals,
                                      bytes_accessed=bytes_accessed),
    )(a, b)

    if want_stats:
        out, stats = res
        if Mp != M or Np != N:
            out = out[:M, :N]
        col_sum = jnp.sum(stats[:, 0, :N], axis=0)
        col_sq = jnp.sum(stats[:, 1, :N], axis=0)
        return out, (col_sum, col_sq)
    out = res
    if Mp != M or Np != N:
        out = out[:M, :N]
    return out


# -------------------- fused BatchNorm-apply + LeakyReLU ----------------------
def _scale_bias_leaky_kernel(x_ref, s_ref, b_ref, o_ref):
    y = x_ref[...] * s_ref[...] + b_ref[...]
    o_ref[...] = jnp.where(y >= 0.0, y, 0.2 * y).astype(o_ref.dtype)


def _row_block(m, cap=1024):
    if m <= cap:
        return m
    for t in (cap, 512, 256, 128, 64, 32, 16, 8):
        if m % t == 0:
            return t
    return m


def pallas_scale_bias_leaky(x, scale, bias, *, out_dtype=jnp.bfloat16):
    """leaky_relu(x * scale + bias, 0.2); x: (M, C) f32, C multiple of 128."""
    M, C = x.shape
    assert C % 128 == 0
    br = _row_block(M)
    grid = (M // br,)
    s2 = scale.reshape(1, C).astype(jnp.float32)
    b2 = bias.reshape(1, C).astype(jnp.float32)
    return pl.pallas_call(
        _scale_bias_leaky_kernel,
        out_shape=jax.ShapeDtypeStruct((M, C), out_dtype),
        grid_spec=pltpu.PrefetchScalarGridSpec(
            num_scalar_prefetch=0,
            grid=grid,
            in_specs=[pl.BlockSpec((br, C), lambda i: (i, 0)),
                      pl.BlockSpec((1, C), lambda i: (0, 0)),
                      pl.BlockSpec((1, C), lambda i: (0, 0))],
            out_specs=pl.BlockSpec((br, C), lambda i: (i, 0))),
        compiler_params=pltpu.CompilerParams(
            dimension_semantics=("parallel",),
            vmem_limit_bytes=32 * 1024 * 1024),
    )(x, s2, b2)


# ------------------------------ conv via im2col ------------------------------
def _im2col(x_nhwc, kh, kw, stride, pad):
    """Single bf16 materialization of the patch matrix."""
    N, H, W, C = x_nhwc.shape
    Hout = (H + 2 * pad - kh) // stride + 1
    Wout = (W + 2 * pad - kw) // stride + 1
    xp = jnp.pad(x_nhwc, ((0, 0), (pad, pad), (pad, pad), (0, 0)))
    cols = []
    for dh in range(kh):
        for dw in range(kw):
            cols.append(xp[:, dh:dh + (Hout - 1) * stride + 1:stride,
                           dw:dw + (Wout - 1) * stride + 1:stride, :])
    patches = jnp.concatenate(cols, axis=-1)           # (N, Hout, Wout, kh*kw*C)
    return patches.reshape(N * Hout * Wout, kh * kw * C), Hout, Wout


def conv2d_pallas(x_nhwc, w_oihw, stride, pad, *, epilogue="none",
                  want_stats=False, out_dtype=jnp.float32):
    Cout, Cin, kh, kw = w_oihw.shape
    patches, Hout, Wout = _im2col(x_nhwc.astype(jnp.bfloat16),
                                  kh, kw, stride, pad)
    # K order in patches is (dh, dw, cin) -> reorder weights to match.
    w_mat = jnp.transpose(w_oihw, (2, 3, 1, 0)).reshape(kh * kw * Cin, Cout)
    shp = (x_nhwc.shape[0], Hout, Wout, Cout)
    if want_stats:
        out, stats = pallas_matmul(patches, w_mat, epilogue=epilogue,
                                   want_stats=True, out_dtype=out_dtype)
        return out, stats, shp
    out = pallas_matmul(patches, w_mat, epilogue=epilogue,
                        want_stats=False, out_dtype=out_dtype)
    return out, None, shp


# --------------------------- Discriminator forward ---------------------------
def discriminator_forward(x_nchw, params):
    x = jnp.transpose(x_nchw, (0, 2, 3, 1))            # NCHW -> NHWC

    # Layer 1: conv + LeakyReLU fused into the matmul epilogue, bf16 out.
    y, _, shp = conv2d_pallas(x, params["w1"], 2, 1, epilogue="leaky",
                              out_dtype=jnp.bfloat16)
    x = y.reshape(shp)

    # Layers 2, 3: conv (f32 out + fused per-channel sum / sumsq) ->
    # BatchNorm(batch stats, biased var, eps=1e-5) + LeakyReLU in one pass.
    for w, g, b in ((params["w2"], params["g2"], params["b2"]),
                    (params["w3"], params["g3"], params["b3"])):
        y, (col_sum, col_sq), shp = conv2d_pallas(
            x, w, 2, 1, want_stats=True, out_dtype=jnp.float32)
        m_rows = shp[0] * shp[1] * shp[2]
        mean = col_sum / m_rows
        var = jnp.maximum(col_sq / m_rows - mean * mean, 0.0)
        inv = jax.lax.rsqrt(var + 1e-5)
        scale = g * inv
        bias = b - mean * scale
        y = pallas_scale_bias_leaky(y, scale, bias, out_dtype=jnp.bfloat16)
        x = y.reshape(shp)

    # Layer 4: conv (valid, stride 1) + Flatten + Sigmoid fused in the epilogue.
    y, _, shp = conv2d_pallas(x, params["w4"], 1, 0, epilogue="sigmoid",
                              out_dtype=jnp.float32)
    n = shp[0]
    return y.reshape(n, shp[1] * shp[2] * shp[3])       # (N, 1)


# ----------------------------- pure-JAX references ---------------------------
def reference_forward(x_nchw, params, conv_dtype=jnp.float32):
    """conv_dtype=bf16 mirrors the Pallas numerics (bf16 MXU inputs, f32 acc)."""
    def conv(x, w, stride, pad):
        return jax.lax.conv_general_dilated(
            x.astype(conv_dtype), w.astype(conv_dtype), (stride, stride),
            ((pad, pad), (pad, pad)),
            dimension_numbers=("NCHW", "OIHW", "NCHW"),
            preferred_element_type=jnp.float32)

    def leaky(x):
        return jnp.where(x >= 0, x, 0.2 * x)

    def bn(x, g, b):
        mean = jnp.mean(x, axis=(0, 2, 3), keepdims=True)
        var = jnp.mean((x - mean) ** 2, axis=(0, 2, 3), keepdims=True)
        xh = (x - mean) * jax.lax.rsqrt(var + 1e-5)
        return xh * g.reshape(1, -1, 1, 1) + b.reshape(1, -1, 1, 1)

    y = leaky(conv(x_nchw, params["w1"], 2, 1))
    y = leaky(bn(conv(y, params["w2"], 2, 1), params["g2"], params["b2"]))
    y = leaky(bn(conv(y, params["w3"], 2, 1), params["g3"], params["b3"]))
    y = conv(y, params["w4"], 1, 0)
    return jax.nn.sigmoid(y.reshape(y.shape[0], -1))


# ----------------------------------- main -------------------------------------
def init_params(key):
    ks = jax.random.split(key, 4)
    return {
        "w1": 0.05 * jax.random.normal(ks[0], (128, 3, 4, 4), jnp.float32),
        "w2": 0.05 * jax.random.normal(ks[1], (256, 128, 4, 4), jnp.float32),
        "w3": 0.05 * jax.random.normal(ks[2], (512, 256, 4, 4), jnp.float32),
        "w4": 0.05 * jax.random.normal(ks[3], (1, 512, 4, 4), jnp.float32),
        # BatchNorm affine params (PyTorch init: weight=1, bias=0)
        "g2": jnp.ones((256,), jnp.float32), "b2": jnp.zeros((256,), jnp.float32),
        "g3": jnp.ones((512,), jnp.float32), "b3": jnp.zeros((512,), jnp.float32),
    }


if __name__ == "__main__":
    key = jax.random.PRNGKey(0)
    k_x, k_p = jax.random.split(key)
    # Smallest DCGAN-consistent input: N=2, C=3, 32x32 -> final 4x4 conv -> (2, 1)
    x = jax.random.normal(k_x, (2, 3, 32, 32), jnp.float32)
    params = init_params(k_p)

    fwd = jax.jit(functools.partial(discriminator_forward, params=params))
    out = jax.block_until_ready(fwd(x))
    assert out.shape == (2, 1), out.shape

    # Tight check vs. a reference that uses the same bf16-input / f32-acc convs.
    ref_bf16 = reference_forward(x, params, jnp.bfloat16)
    assert jnp.allclose(out, ref_bf16, rtol=2e-3, atol=2e-3), (out, ref_bf16)
    # Looser sanity check vs. the full-f32 reference (bf16 MXU rounding only).
    ref_f32 = reference_forward(x, params, jnp.float32)
    assert jnp.allclose(out, ref_f32, rtol=3e-2, atol=3e-2), (out, ref_f32)

    print("KERNEL_OK")
</pallas_src>

<mosaic_0001>
module attributes {stable_mosaic.version = 11 : i64} {
  func.func @_matmul_kernel(%arg0: i32, %arg1: i32, %arg2: i32, %arg3: memref<512x48xbf16, #tpu.memory_space<vmem>>, %arg4: memref<48x128xbf16, #tpu.memory_space<vmem>>, %arg5: memref<512x128xbf16, #tpu.memory_space<vmem>>, %arg6: memref<512x128xf32, #tpu.memory_space<vmem>>) attributes {dimension_semantics = [#tpu.dimension_semantics<parallel>, #tpu.dimension_semantics<parallel>, #tpu.dimension_semantics<arbitrary>], iteration_bounds = array<i64: 1, 1, 1>, scalar_prefetch = 0 : i64, scratch_operands = 1 : i64, tpu.core_type = #tpu.core_type<tc>, window_params = [{transform_indices = @transform_0, window_bounds = array<i64: 512, 48>}, {transform_indices = @transform_1, window_bounds = array<i64: 48, 128>}, {transform_indices = @transform_2, window_bounds = array<i64: 512, 128>}]} {
    %c0_i32 = arith.constant 0 : i32
    %0 = arith.cmpi eq, %arg2, %c0_i32 : i32
    %1 = arith.extui %0 : i1 to i32
    %c0_i32_0 = arith.constant 0 : i32
    %2 = arith.cmpi ne, %1, %c0_i32_0 : i32
    scf.if %2 {
      %cst_10 = arith.constant 0.000000e+00 : f32
      %12 = vector.broadcast %cst_10 : f32 to vector<512x128xf32>
      %c0_11 = arith.constant 0 : index
      %c0_12 = arith.constant 0 : index
      %13 = vector.load %arg6[%c0_11, %c0_12] : memref<512x128xf32, #tpu.memory_space<vmem>>, vector<512x128xf32>
      tpu.vector_store %arg6[%c0_11, %c0_12], %12 {strides = array<i32>} : memref<512x128xf32, #tpu.memory_space<vmem>>, vector<512x128xf32>,
    } else {
    }
    %c0 = arith.constant 0 : index
    %c0_1 = arith.constant 0 : index
    %3 = vector.load %arg6[%c0, %c0_1] : memref<512x128xf32, #tpu.memory_space<vmem>>, vector<512x128xf32>
    %c0_2 = arith.constant 0 : index
    %c0_3 = arith.constant 0 : index
    %4 = vector.load %arg3[%c0_2, %c0_3] : memref<512x48xbf16, #tpu.memory_space<vmem>>, vector<512x48xbf16>
    %c0_4 = arith.constant 0 : index
    %c0_5 = arith.constant 0 : index
    %5 = vector.load %arg4[%c0_4, %c0_5] : memref<48x128xbf16, #tpu.memory_space<vmem>>, vector<48x128xbf16>
    %cst = arith.constant dense<0.000000e+00> : vector<512x128xf32>
    %6 = tpu.matmul %4, %5, %cst {dimension_numbers = #tpu.dot_dimension_numbers<[1], [0], [0], [1], [0, 0, 1, 1], [], []>} : vector<512x48xbf16>, vector<48x128xbf16>, vector<512x128xf32> -> vector<512x128xf32>
    %7 = arith.addf %3, %6 : vector<512x128xf32>
    %c0_6 = arith.constant 0 : index
    %c0_7 = arith.constant 0 : index
    %8 = vector.load %arg6[%c0_6, %c0_7] : memref<512x128xf32, #tpu.memory_space<vmem>>, vector<512x128xf32>
    tpu.vector_store %arg6[%c0_6, %c0_7], %7 {strides = array<i32>} : memref<512x128xf32, #tpu.memory_space<vmem>>, vector<512x128xf32>,
    %c0_i32_8 = arith.constant 0 : i32
    %9 = arith.cmpi eq, %arg2, %c0_i32_8 : i32
    %10 = arith.extui %9 : i1 to i32
    %c0_i32_9 = arith.constant 0 : i32
    %11 = arith.cmpi ne, %10, %c0_i32_9 : i32
    scf.if %11 {
      %c0_10 = arith.constant 0 : index
      %c0_11 = arith.constant 0 : index
      %12 = vector.load %arg6[%c0_10, %c0_11] : memref<512x128xf32, #tpu.memory_space<vmem>>, vector<512x128xf32>
      %cst_12 = arith.constant 0.000000e+00 : f32
      %13 = vector.broadcast %cst_12 : f32 to vector<512x128xf32>
      %14 = arith.cmpf oge, %12, %13 : vector<512x128xf32>
      %cst_13 = arith.constant 2.000000e-01 : f32
      %15 = vector.broadcast %cst_13 : f32 to vector<512x128xf32>
      %16 = arith.mulf %15, %12 : vector<512x128xf32>
      %17 = arith.select %14, %12, %16 : vector<512x128xi1>, vector<512x128xf32>
      %18 = arith.truncf %17 : vector<512x128xf32> to vector<512x128xbf16>
      %c0_14 = arith.constant 0 : index
      %c0_15 = arith.constant 0 : index
      %19 = vector.load %arg5[%c0_14, %c0_15] : memref<512x128xbf16, #tpu.memory_space<vmem>>, vector<512x128xbf16>
      tpu.vector_store %arg5[%c0_14, %c0_15], %18 {strides = array<i32>} : memref<512x128xbf16, #tpu.memory_space<vmem>>, vector<512x128xbf16>,
    } else {
    }
    return
  }
  func.func @transform_0(%arg0: i32, %arg1: i32, %arg2: i32) -> (i32, i32) {
    %c0_i32 = arith.constant 0 : i32
    return %arg0, %arg2 : i32, i32
  }
  func.func @transform_1(%arg0: i32, %arg1: i32, %arg2: i32) -> (i32, i32) {
    %c0_i32 = arith.constant 0 : i32
    return %arg2, %arg1 : i32, i32
  }
  func.func @transform_2(%arg0: i32, %arg1: i32, %arg2: i32) -> (i32, i32) {
    %c0_i32 = arith.constant 0 : i32
    return %arg0, %arg1 : i32, i32
  }
}

module attributes {stable_mosaic.version = 11 : i64} {
  func.func @_scale_bias_leaky_kernel(%arg0: i32, %arg1: memref<128x256xf32, #tpu.memory_space<vmem>>, %arg2: memref<1x256xf32, #tpu.memory_space<vmem>>, %arg3: memref<1x256xf32, #tpu.memory_space<vmem>>, %arg4: memref<128x256xbf16, #tpu.memory_space<vmem>>) attributes {dimension_semantics = [#tpu.dimension_semantics<parallel>], iteration_bounds = array<i64: 1>, scalar_prefetch = 0 : i64, scratch_operands = 0 : i64, tpu.core_type = #tpu.core_type<tc>, window_params = [{transform_indices = @transform_0, window_bounds = array<i64: 128, 256>}, {pipeline_mode = #tpu.pipeline_mode<synchronous>, transform_indices = @transform_1, window_bounds = array<i64: 1, 256>}, {pipeline_mode = #tpu.pipeline_mode<synchronous>, transform_indices = @transform_2, window_bounds = array<i64: 1, 256>}, {transform_indices = @transform_3, window_bounds = array<i64: 128, 256>}]} {
    %c0 = arith.constant 0 : index
    %c0_0 = arith.constant 0 : index
    %0 = vector.load %arg1[%c0, %c0_0] : memref<128x256xf32, #tpu.memory_space<vmem>>, vector<128x256xf32>
    %c0_1 = arith.constant 0 : index
    %c0_2 = arith.constant 0 : index
    %1 = vector.load %arg2[%c0_1, %c0_2] : memref<1x256xf32, #tpu.memory_space<vmem>>, vector<1x256xf32>
    %2 = vector.broadcast %1 : vector<1x256xf32> to vector<128x256xf32>
    %3 = arith.mulf %0, %2 : vector<128x256xf32>
    %c0_3 = arith.constant 0 : index
    %c0_4 = arith.constant 0 : index
    %4 = vector.load %arg3[%c0_3, %c0_4] : memref<1x256xf32, #tpu.memory_space<vmem>>, vector<1x256xf32>
    %5 = vector.broadcast %4 : vector<1x256xf32> to vector<128x256xf32>
    %6 = arith.addf %3, %5 : vector<128x256xf32>
    %cst = arith.constant 0.000000e+00 : f32
    %7 = vector.broadcast %cst : f32 to vector<128x256xf32>
    %8 = arith.cmpf oge, %6, %7 : vector<128x256xf32>
    %cst_5 = arith.constant 2.000000e-01 : f32
    %9 = vector.broadcast %cst_5 : f32 to vector<128x256xf32>
    %10 = arith.mulf %9, %6 : vector<128x256xf32>
    %11 = arith.select %8, %6, %10 : vector<128x256xi1>, vector<128x256xf32>
    %12 = arith.truncf %11 : vector<128x256xf32> to vector<128x256xbf16>
    %c0_6 = arith.constant 0 : index
    %c0_7 = arith.constant 0 : index
    %13 = vector.load %arg4[%c0_6, %c0_7] : memref<128x256xbf16, #tpu.memory_space<vmem>>, vector<128x256xbf16>
    tpu.vector_store %arg4[%c0_6, %c0_7], %12 {strides = array<i32>} : memref<128x256xbf16, #tpu.memory_space<vmem>>, vector<128x256xbf16>,
    return
  }
  func.func @transform_0(%arg0: i32) -> (i32, i32) {
    %c0_i32 = arith.constant 0 : i32
    %c0_i32_0 = arith.constant 0 : i32
    return %arg0, %c0_i32 : i32, i32
  }
  func.func @transform_1(%arg0: i32) -> (i32, i32) {
    %c0_i32 = arith.constant 0 : i32
    %c0_i32_0 = arith.constant 0 : i32
    %c0_i32_1 = arith.constant 0 : i32
    return %c0_i32, %c0_i32_0 : i32, i32
  }
  func.func @transform_2(%arg0: i32) -> (i32, i32) {
    %c0_i32 = arith.constant 0 : i32
    %c0_i32_0 = arith.constant 0 : i32
    %c0_i32_1 = arith.constant 0 : i32
    return %c0_i32, %c0_i32_0 : i32, i32
  }
  func.func @transform_3(%arg0: i32) -> (i32, i32) {
    %c0_i32 = arith.constant 0 : i32
    %c0_i32_0 = arith.constant 0 : i32
    return %arg0, %c0_i32 : i32, i32
  }
}

module attributes {stable_mosaic.version = 11 : i64} {
  func.func @_matmul_kernel(%arg0: i32, %arg1: i32, %arg2: i32, %arg3: memref<128x512xbf16, #tpu.memory_space<vmem>>, %arg4: memref<512x256xbf16, #tpu.memory_space<vmem>>, %arg5: memref<128x256xf32, #tpu.memory_space<vmem>>, %arg6: memref<1x8x256xf32, #tpu.memory_space<vmem>>, %arg7: memref<128x256xf32, #tpu.memory_space<vmem>>) attributes {dimension_semantics = [#tpu.dimension_semantics<parallel>, #tpu.dimension_semantics<parallel>, #tpu.dimension_semantics<arbitrary>], iteration_bounds = array<i64: 1, 1, 4>, scalar_prefetch = 0 : i64, scratch_operands = 1 : i64, tpu.core_type = #tpu.core_type<tc>, window_params = [{transform_indices = @transform_0, window_bounds = array<i64: 128, 512>}, {transform_indices = @transform_1, window_bounds = array<i64: 512, 256>}, {transform_indices = @transform_2, window_bounds = array<i64: 128, 256>}, {transform_indices = @transform_3, window_bounds = array<i64: 1, 8, 256>}]} {
    %c0_i32 = arith.constant 0 : i32
    %0 = arith.cmpi eq, %arg2, %c0_i32 : i32
    %1 = arith.extui %0 : i1 to i32
    %c0_i32_0 = arith.constant 0 : i32
    %2 = arith.cmpi ne, %1, %c0_i32_0 : i32
    scf.if %2 {
      %cst_9 = arith.constant 0.000000e+00 : f32
      %12 = vector.broadcast %cst_9 : f32 to vector<128x256xf32>
      %c0_10 = arith.constant 0 : index
      %c0_11 = arith.constant 0 : index
      %13 = vector.load %arg7[%c0_10, %c0_11] : memref<128x256xf32, #tpu.memory_space<vmem>>, vector<128x256xf32>
      tpu.vector_store %arg7[%c0_10, %c0_11], %12 {strides = array<i32>} : memref<128x256xf32, #tpu.memory_space<vmem>>, vector<128x256xf32>,
    } else {
    }
    %c0 = arith.constant 0 : index
    %c0_1 = arith.constant 0 : index
    %3 = vector.load %arg7[%c0, %c0_1] : memref<128x256xf32, #tpu.memory_space<vmem>>, vector<128x256xf32>
    %c0_2 = arith.constant 0 : index
    %c0_3 = arith.constant 0 : index
    %4 = vector.load %arg3[%c0_2, %c0_3] : memref<128x512xbf16, #tpu.memory_space<vmem>>, vector<128x512xbf16>
    %c0_4 = arith.constant 0 : index
    %c0_5 = arith.constant 0 : index
    %5 = vector.load %arg4[%c0_4, %c0_5] : memref<512x256xbf16, #tpu.memory_space<vmem>>, vector<512x256xbf16>
    %cst = arith.constant dense<0.000000e+00> : vector<128x256xf32>
    %6 = tpu.matmul %4, %5, %cst {dimension_numbers = #tpu.dot_dimension_numbers<[1], [0], [0], [1], [0, 0, 1, 1], [], []>} : vector<128x512xbf16>, vector<512x256xbf16>, vector<128x256xf32> -> vector<128x256xf32>
    %7 = arith.addf %3, %6 : vector<128x256xf32>
    %c0_6 = arith.constant 0 : index
    %c0_7 = arith.constant 0 : index
    %8 = vector.load %arg7[%c0_6, %c0_7] : memref<128x256xf32, #tpu.memory_space<vmem>>, vector<128x256xf32>
    tpu.vector_store %arg7[%c0_6, %c0_7], %7 {strides = array<i32>} : memref<128x256xf32, #tpu.memory_space<vmem>>, vector<128x256xf32>,
    %c3_i32 = arith.constant 3 : i32
    %9 = arith.cmpi eq, %arg2, %c3_i32 : i32
    %10 = arith.extui %9 : i1 to i32
    %c0_i32_8 = arith.constant 0 : i32
    %11 = arith.cmpi ne, %10, %c0_i32_8 : i32
    scf.if %11 {
      %c0_9 = arith.constant 0 : index
      %c0_10 = arith.constant 0 : index
      %12 = vector.load %arg7[%c0_9, %c0_10] : memref<128x256xf32, #tpu.memory_space<vmem>>, vector<128x256xf32>
      %cst_11 = arith.constant dense<0.000000e+00> : vector<256xf32>
      %13 = vector.multi_reduction <add>, %12, %cst_11 [0] : vector<128x256xf32> to vector<256xf32>
      %14 = vector.shape_cast %13 : vector<256xf32> to vector<1x256xf32>
      %15 = arith.mulf %12, %12 : vector<128x256xf32>
      %cst_12 = arith.constant dense<0.000000e+00> : vector<256xf32>
      %16 = vector.multi_reduction <add>, %15, %cst_12 [0] : vector<128x256xf32> to vector<256xf32>
      %17 = vector.shape_cast %16 : vector<256xf32> to vector<1x256xf32>
      %cst_13 = arith.constant 0.000000e+00 : f32
      %18 = vector.broadcast %cst_13 : f32 to vector<6x256xf32>
      %19 = tpu.concatenate %14, %17, %18 in 0 : vector<1x256xf32>, vector<1x256xf32>, vector<6x256xf32> -> vector<8x256xf32>
      %20 = vector.shape_cast %19 : vector<8x256xf32> to vector<1x8x256xf32>
      %c0_14 = arith.constant 0 : index
      %c0_15 = arith.constant 0 : index
      %c0_16 = arith.constant 0 : index
      %21 = vector.load %arg6[%c0_14, %c0_15, %c0_16] : memref<1x8x256xf32, #tpu.memory_space<vmem>>, vector<1x8x256xf32>
      tpu.vector_store %arg6[%c0_14, %c0_15, %c0_16], %20 {strides = array<i32>} : memref<1x8x256xf32, #tpu.memory_space<vmem>>, vector<1x8x256xf32>,
      %c0_17 = arith.constant 0 : index
      %c0_18 = arith.constant 0 : index
      %22 = vector.load %arg5[%c0_17, %c0_18] : memref<128x256xf32, #tpu.memory_space<vmem>>, vector<128x256xf32>
      tpu.vector_store %arg5[%c0_17, %c0_18], %12 {strides = array<i32>} : memref<128x256xf32, #tpu.memory_space<vmem>>, vector<128x256xf32>,
    } else {
    }
    return
  }
  func.func @transform_0(%arg0: i32, %arg1: i32, %arg2: i32) -> (i32, i32) {
    %c0_i32 = arith.constant 0 : i32
    return %arg0, %arg2 : i32, i32
  }
  func.func @transform_1(%arg0: i32, %arg1: i32, %arg2: i32) -> (i32, i32) {
    %c0_i32 = arith.constant 0 : i32
    return %arg2, %arg1 : i32, i32
  }
  func.func @transform_2(%arg0: i32, %arg1: i32, %arg2: i32) -> (i32, i32) {
    %c0_i32 = arith.constant 0 : i32
    return %arg0, %arg1 : i32, i32
  }
  func.func @transform_3(%arg0: i32, %arg1: i32, %arg2: i32) -> (i32, i32, i32) {
    %c0_i32 = arith.constant 0 : i32
    %c0_i32_0 = arith.constant 0 : i32
    return %arg0, %c0_i32, %arg1 : i32, i32, i32
  }
}

module attributes {stable_mosaic.version = 11 : i64} {
  func.func @_matmul_kernel(%arg0: i32, %arg1: i32, %arg2: i32, %arg3: memref<32x512xbf16, #tpu.memory_space<vmem>>, %arg4: memref<512x256xbf16, #tpu.memory_space<vmem>>, %arg5: memref<32x256xf32, #tpu.memory_space<vmem>>, %arg6: memref<1x8x256xf32, #tpu.memory_space<vmem>>, %arg7: memref<32x256xf32, #tpu.memory_space<vmem>>) attributes {dimension_semantics = [#tpu.dimension_semantics<parallel>, #tpu.dimension_semantics<parallel>, #tpu.dimension_semantics<arbitrary>], iteration_bounds = array<i64: 1, 2, 8>, scalar_prefetch = 0 : i64, scratch_operands = 1 : i64, tpu.core_type = #tpu.core_type<tc>, window_params = [{transform_indices = @transform_0, window_bounds = array<i64: 32, 512>}, {transform_indices = @transform_1, window_bounds = array<i64: 512, 256>}, {transform_indices = @transform_2, window_bounds = array<i64: 32, 256>}, {transform_indices = @transform_3, window_bounds = array<i64: 1, 8, 256>}]} {
    %c0_i32 = arith.constant 0 : i32
    %0 = arith.cmpi eq, %arg2, %c0_i32 : i32
    %1 = arith.extui %0 : i1 to i32
    %c0_i32_0 = arith.constant 0 : i32
    %2 = arith.cmpi ne, %1, %c0_i32_0 : i32
    scf.if %2 {
      %cst_9 = arith.constant 0.000000e+00 : f32
      %12 = vector.broadcast %cst_9 : f32 to vector<32x256xf32>
      %c0_10 = arith.constant 0 : index
      %c0_11 = arith.constant 0 : index
      %13 = vector.load %arg7[%c0_10, %c0_11] : memref<32x256xf32, #tpu.memory_space<vmem>>, vector<32x256xf32>
      tpu.vector_store %arg7[%c0_10, %c0_11], %12 {strides = array<i32>} : memref<32x256xf32, #tpu.memory_space<vmem>>, vector<32x256xf32>,
    } else {
    }
    %c0 = arith.constant 0 : index
    %c0_1 = arith.constant 0 : index
    %3 = vector.load %arg7[%c0, %c0_1] : memref<32x256xf32, #tpu.memory_space<vmem>>, vector<32x256xf32>
    %c0_2 = arith.constant 0 : index
    %c0_3 = arith.constant 0 : index
    %4 = vector.load %arg3[%c0_2, %c0_3] : memref<32x512xbf16, #tpu.memory_space<vmem>>, vector<32x512xbf16>
    %c0_4 = arith.constant 0 : index
    %c0_5 = arith.constant 0 : index
    %5 = vector.load %arg4[%c0_4, %c0_5] : memref<512x256xbf16, #tpu.memory_space<vmem>>, vector<512x256xbf16>
    %cst = arith.constant dense<0.000000e+00> : vector<32x256xf32>
    %6 = tpu.matmul %4, %5, %cst {dimension_numbers = #tpu.dot_dimension_numbers<[1], [0], [0], [1], [0, 0, 1, 1], [], []>} : vector<32x512xbf16>, vector<512x256xbf16>, vector<32x256xf32> -> vector<32x256xf32>
    %7 = arith.addf %3, %6 : vector<32x256xf32>
    %c0_6 = arith.constant 0 : index
    %c0_7 = arith.constant 0 : index
    %8 = vector.load %arg7[%c0_6, %c0_7] : memref<32x256xf32, #tpu.memory_space<vmem>>, vector<32x256xf32>
    tpu.vector_store %arg7[%c0_6, %c0_7], %7 {strides = array<i32>} : memref<32x256xf32, #tpu.memory_space<vmem>>, vector<32x256xf32>,
    %c7_i32 = arith.constant 7 : i32
    %9 = arith.cmpi eq, %arg2, %c7_i32 : i32
    %10 = arith.extui %9 : i1 to i32
    %c0_i32_8 = arith.constant 0 : i32
    %11 = arith.cmpi ne, %10, %c0_i32_8 : i32
    scf.if %11 {
      %c0_9 = arith.constant 0 : index
      %c0_10 = arith.constant 0 : index
      %12 = vector.load %arg7[%c0_9, %c0_10] : memref<32x256xf32, #tpu.memory_space<vmem>>, vector<32x256xf32>
      %cst_11 = arith.constant dense<0.000000e+00> : vector<256xf32>
      %13 = vector.multi_reduction <add>, %12, %cst_11 [0] : vector<32x256xf32> to vector<256xf32>
      %14 = vector.shape_cast %13 : vector<256xf32> to vector<1x256xf32>
      %15 = arith.mulf %12, %12 : vector<32x256xf32>
      %cst_12 = arith.constant dense<0.000000e+00> : vector<256xf32>
      %16 = vector.multi_reduction <add>, %15, %cst_12 [0] : vector<32x256xf32> to vector<256xf32>
      %17 = vector.shape_cast %16 : vector<256xf32> to vector<1x256xf32>
      %cst_13 = arith.constant 0.000000e+00 : f32
      %18 = vector.broadcast %cst_13 : f32 to vector<6x256xf32>
      %19 = tpu.concatenate %14, %17, %18 in 0 : vector<1x256xf32>, vector<1x256xf32>, vector<6x256xf32> -> vector<8x256xf32>
      %20 = vector.shape_cast %19 : vector<8x256xf32> to vector<1x8x256xf32>
      %c0_14 = arith.constant 0 : index
      %c0_15 = arith.constant 0 : index
      %c0_16 = arith.constant 0 : index
      %21 = vector.load %arg6[%c0_14, %c0_15, %c0_16] : memref<1x8x256xf32, #tpu.memory_space<vmem>>, vector<1x8x256xf32>
      tpu.vector_store %arg6[%c0_14, %c0_15, %c0_16], %20 {strides = array<i32>} : memref<1x8x256xf32, #tpu.memory_space<vmem>>, vector<1x8x256xf32>,
      %c0_17 = arith.constant 0 : index
      %c0_18 = arith.constant 0 : index
      %22 = vector.load %arg5[%c0_17, %c0_18] : memref<32x256xf32, #tpu.memory_space<vmem>>, vector<32x256xf32>
      tpu.vector_store %arg5[%c0_17, %c0_18], %12 {strides = array<i32>} : memref<32x256xf32, #tpu.memory_space<vmem>>, vector<32x256xf32>,
    } else {
    }
    return
  }
  func.func @transform_0(%arg0: i32, %arg1: i32, %arg2: i32) -> (i32, i32) {
    %c0_i32 = arith.constant 0 : i32
    return %arg0, %arg2 : i32, i32
  }
  func.func @transform_1(%arg0: i32, %arg1: i32, %arg2: i32) -> (i32, i32) {
    %c0_i32 = arith.constant 0 : i32
    return %arg2, %arg1 : i32, i32
  }
  func.func @transform_2(%arg0: i32, %arg1: i32, %arg2: i32) -> (i32, i32) {
    %c0_i32 = arith.constant 0 : i32
    return %arg0, %arg1 : i32, i32
  }
  func.func @transform_3(%arg0: i32, %arg1: i32, %arg2: i32) -> (i32, i32, i32) {
    %c0_i32 = arith.constant 0 : i32
    %c0_i32_0 = arith.constant 0 : i32
    return %arg0, %c0_i32, %arg1 : i32, i32, i32
  }
}

module attributes {stable_mosaic.version = 11 : i64} {
  func.func @_scale_bias_leaky_kernel(%arg0: i32, %arg1: memref<32x512xf32, #tpu.memory_space<vmem>>, %arg2: memref<1x512xf32, #tpu.memory_space<vmem>>, %arg3: memref<1x512xf32, #tpu.memory_space<vmem>>, %arg4: memref<32x512xbf16, #tpu.memory_space<vmem>>) attributes {dimension_semantics = [#tpu.dimension_semantics<parallel>], iteration_bounds = array<i64: 1>, scalar_prefetch = 0 : i64, scratch_operands = 0 : i64, tpu.core_type = #tpu.core_type<tc>, window_params = [{transform_indices = @transform_0, window_bounds = array<i64: 32, 512>}, {pipeline_mode = #tpu.pipeline_mode<synchronous>, transform_indices = @transform_1, window_bounds = array<i64: 1, 512>}, {pipeline_mode = #tpu.pipeline_mode<synchronous>, transform_indices = @transform_2, window_bounds = array<i64: 1, 512>}, {transform_indices = @transform_3, window_bounds = array<i64: 32, 512>}]} {
    %c0 = arith.constant 0 : index
    %c0_0 = arith.constant 0 : index
    %0 = vector.load %arg1[%c0, %c0_0] : memref<32x512xf32, #tpu.memory_space<vmem>>, vector<32x512xf32>
    %c0_1 = arith.constant 0 : index
    %c0_2 = arith.constant 0 : index
    %1 = vector.load %arg2[%c0_1, %c0_2] : memref<1x512xf32, #tpu.memory_space<vmem>>, vector<1x512xf32>
    %2 = vector.broadcast %1 : vector<1x512xf32> to vector<32x512xf32>
    %3 = arith.mulf %0, %2 : vector<32x512xf32>
    %c0_3 = arith.constant 0 : index
    %c0_4 = arith.constant 0 : index
    %4 = vector.load %arg3[%c0_3, %c0_4] : memref<1x512xf32, #tpu.memory_space<vmem>>, vector<1x512xf32>
    %5 = vector.broadcast %4 : vector<1x512xf32> to vector<32x512xf32>
    %6 = arith.addf %3, %5 : vector<32x512xf32>
    %cst = arith.constant 0.000000e+00 : f32
    %7 = vector.broadcast %cst : f32 to vector<32x512xf32>
    %8 = arith.cmpf oge, %6, %7 : vector<32x512xf32>
    %cst_5 = arith.constant 2.000000e-01 : f32
    %9 = vector.broadcast %cst_5 : f32 to vector<32x512xf32>
    %10 = arith.mulf %9, %6 : vector<32x512xf32>
    %11 = arith.select %8, %6, %10 : vector<32x512xi1>, vector<32x512xf32>
    %12 = arith.truncf %11 : vector<32x512xf32> to vector<32x512xbf16>
    %c0_6 = arith.constant 0 : index
    %c0_7 = arith.constant 0 : index
    %13 = vector.load %arg4[%c0_6, %c0_7] : memref<32x512xbf16, #tpu.memory_space<vmem>>, vector<32x512xbf16>
    tpu.vector_store %arg4[%c0_6, %c0_7], %12 {strides = array<i32>} : memref<32x512xbf16, #tpu.memory_space<vmem>>, vector<32x512xbf16>,
    return
  }
  func.func @transform_0(%arg0: i32) -> (i32, i32) {
    %c0_i32 = arith.constant 0 : i32
    %c0_i32_0 = arith.constant 0 : i32
    return %arg0, %c0_i32 : i32, i32
  }
  func.func @transform_1(%arg0: i32) -> (i32, i32) {
    %c0_i32 = arith.constant 0 : i32
    %c0_i32_0 = arith.constant 0 : i32
    %c0_i32_1 = arith.constant 0 : i32
    return %c0_i32, %c0_i32_0 : i32, i32
  }
  func.func @transform_2(%arg0: i32) -> (i32, i32) {
    %c0_i32 = arith.constant 0 : i32
    %c0_i32_0 = arith.constant 0 : i32
    %c0_i32_1 = arith.constant 0 : i32
    return %c0_i32, %c0_i32_0 : i32, i32
  }
  func.func @transform_3(%arg0: i32) -> (i32, i32) {
    %c0_i32 = arith.constant 0 : i32
    %c0_i32_0 = arith.constant 0 : i32
    return %arg0, %c0_i32 : i32, i32
  }
}

module attributes {stable_mosaic.version = 11 : i64} {
  func.func @_matmul_kernel(%arg0: i32, %arg1: i32, %arg2: i32, %arg3: memref<8x512xbf16, #tpu.memory_space<vmem>>, %arg4: memref<512x128xbf16, #tpu.memory_space<vmem>>, %arg5: memref<8x128xf32, #tpu.memory_space<vmem>>, %arg6: memref<8x128xf32, #tpu.memory_space<vmem>>) attributes {dimension_semantics = [#tpu.dimension_semantics<parallel>, #tpu.dimension_semantics<parallel>, #tpu.dimension_semantics<arbitrary>], iteration_bounds = array<i64: 1, 1, 16>, scalar_prefetch = 0 : i64, scratch_operands = 1 : i64, tpu.core_type = #tpu.core_type<tc>, window_params = [{transform_indices = @transform_0, window_bounds = array<i64: 8, 512>}, {transform_indices = @transform_1, window_bounds = array<i64: 512, 128>}, {transform_indices = @transform_2, window_bounds = array<i64: 8, 128>}]} {
    %c0_i32 = arith.constant 0 : i32
    %0 = arith.cmpi eq, %arg2, %c0_i32 : i32
    %1 = arith.extui %0 : i1 to i32
    %c0_i32_0 = arith.constant 0 : i32
    %2 = arith.cmpi ne, %1, %c0_i32_0 : i32
    scf.if %2 {
      %cst_9 = arith.constant 0.000000e+00 : f32
      %12 = vector.broadcast %cst_9 : f32 to vector<8x128xf32>
      %c0_10 = arith.constant 0 : index
      %c0_11 = arith.constant 0 : index
      %13 = vector.load %arg6[%c0_10, %c0_11] : memref<8x128xf32, #tpu.memory_space<vmem>>, vector<8x128xf32>
      tpu.vector_store %arg6[%c0_10, %c0_11], %12 {strides = array<i32>} : memref<8x128xf32, #tpu.memory_space<vmem>>, vector<8x128xf32>,
    } else {
    }
    %c0 = arith.constant 0 : index
    %c0_1 = arith.constant 0 : index
    %3 = vector.load %arg6[%c0, %c0_1] : memref<8x128xf32, #tpu.memory_space<vmem>>, vector<8x128xf32>
    %c0_2 = arith.constant 0 : index
    %c0_3 = arith.constant 0 : index
    %4 = vector.load %arg3[%c0_2, %c0_3] : memref<8x512xbf16, #tpu.memory_space<vmem>>, vector<8x512xbf16>
    %c0_4 = arith.constant 0 : index
    %c0_5 = arith.constant 0 : index
    %5 = vector.load %arg4[%c0_4, %c0_5] : memref<512x128xbf16, #tpu.memory_space<vmem>>, vector<512x128xbf16>
    %cst = arith.constant dense<0.000000e+00> : vector<8x128xf32>
    %6 = tpu.matmul %4, %5, %cst {dimension_numbers = #tpu.dot_dimension_numbers<[1], [0], [0], [1], [0, 0, 1, 1], [], []>} : vector<8x512xbf16>, vector<512x128xbf16>, vector<8x128xf32> -> vector<8x128xf32>
    %7 = arith.addf %3, %6 : vector<8x128xf32>
    %c0_6 = arith.constant 0 : index
    %c0_7 = arith.constant 0 : index
    %8 = vector.load %arg6[%c0_6, %c0_7] : memref<8x128xf32, #tpu.memory_space<vmem>>, vector<8x128xf32>
    tpu.vector_store %arg6[%c0_6, %c0_7], %7 {strides = array<i32>} : memref<8x128xf32, #tpu.memory_space<vmem>>, vector<8x128xf32>,
    %c15_i32 = arith.constant 15 : i32
    %9 = arith.cmpi eq, %arg2, %c15_i32 : i32
    %10 = arith.extui %9 : i1 to i32
    %c0_i32_8 = arith.constant 0 : i32
    %11 = arith.cmpi ne, %10, %c0_i32_8 : i32
    scf.if %11 {
      %c0_9 = arith.constant 0 : index
      %c0_10 = arith.constant 0 : index
      %12 = vector.load %arg6[%c0_9, %c0_10] : memref<8x128xf32, #tpu.memory_space<vmem>>, vector<8x128xf32>
      %cst_11 = arith.constant 0.000000e+00 : f32
      %13 = vector.broadcast %cst_11 : f32 to vector<8x128xf32>
      %14 = arith.subf %13, %12 : vector<8x128xf32>
      %15 = math.exp %14 : vector<8x128xf32>
      %cst_12 = arith.constant 1.000000e+00 : f32
      %16 = vector.broadcast %cst_12 : f32 to vector<8x128xf32>
      %17 = arith.addf %16, %15 : vector<8x128xf32>
      %18 = tpu.reciprocal %17 {approx = true} : vector<8x128xf32> -> vector<8x128xf32>
      %c0_13 = arith.constant 0 : index
      %c0_14 = arith.constant 0 : index
      %19 = vector.load %arg5[%c0_13, %c0_14] : memref<8x128xf32, #tpu.memory_space<vmem>>, vector<8x128xf32>
      tpu.vector_store %arg5[%c0_13, %c0_14], %18 {strides = array<i32>} : memref<8x128xf32, #tpu.memory_space<vmem>>, vector<8x128xf32>,
    } else {
    }
    return
  }
  func.func @transform_0(%arg0: i32, %arg1: i32, %arg2: i32) -> (i32, i32) {
    %c0_i32 = arith.constant 0 : i32
    return %arg0, %arg2 : i32, i32
  }
  func.func @transform_1(%arg0: i32, %arg1: i32, %arg2: i32) -> (i32, i32) {
    %c0_i32 = arith.constant 0 : i32
    return %arg2, %arg1 : i32, i32
  }
  func.func @transform_2(%arg0: i32, %arg1: i32, %arg2: i32) -> (i32, i32) {
    %c0_i32 = arith.constant 0 : i32
    return %arg0, %arg1 : i32, i32
  }
}

</mosaic_0001>

<llo_original>
// kernel: discriminator_forward.6
$region0: #{discriminator_forward.6}
  #allocation0 [shape = 'u32[]', space=smem, size = 0x4, offset = 0x4, fixed_abs, tag = 'smem constant byte address 0x4 - core index']
  #allocation1 [shape = 'u32[144,128]{1,0:T(1,128)}', space=vmem, size = 0x12000, scoped, tag = 'internal scratch']
  #allocation2 [shape = 'f32[512,128]{1,0:T(8,128)}', space=vmem, size = 0x40000, scoped, tag = 'scratch operand']
  %s0 = inlined_call_operand.vmem [shape: bf16[512,48], index: 0, kind: input, shape index: {}]
  %s1 = inlined_call_operand.vmem [shape: bf16[48,128], index: 1, kind: input, shape index: {}]
  %s2 = inlined_call_operand.vmem [shape: bf16[512,128], index: 2, kind: output, shape index: {}]
  %s3 = sld [smem:[#allocation0]]
  $region26: #{discriminator_forward.6} parent=0
    _
  %s5 = ssub.s32 1, %s3
  %s6 = scalar_select 0, %s5, %s3
  // Predicated region
  $region2: #{discriminator_forward.6} parent=0 // pred_check
    _
  $region3: #{discriminator_forward.6} parent=0 // pred_check_branch
    %8 = sbr.rel (0) target = $region5
  $region4: #{discriminator_forward.6} parent=0 // pred_region
    _
  $region5: #{discriminator_forward.6} parent=0 // pred_fallthru
    _
  // Predicated region
  $region6: #{discriminator_forward.6} parent=0 // pred_check
    _
  $region7: #{discriminator_forward.6} parent=0 // pred_check_branch
    %10 = sbr.rel (0) target = $region9
  $region8: #{discriminator_forward.6} parent=0 // pred_region
    _
  $region9: #{discriminator_forward.6} parent=0 // pred_fallthru
    _
  %p12 = scmp.eq.s32.totalorder 0, 0
  // Predicated region
  $region10: #{discriminator_forward.6} parent=0 // pred_check
    %p13 = pneg %p12
  $region11: #{discriminator_forward.6} parent=0 // pred_check_branch
    %15 = sbr.rel (%p13) target = $region13
  $region12: #{discriminator_forward.6} parent=0 // pred_region
    %16 = vst [vmem:[#allocation2] sm:$0xff] 0.0
    %17 = vst [vmem:[#allocation2 + $0x8] sm:$0xff] 0.0
    %18 = vst [vmem:[#allocation2 + $0x10] sm:$0xff] 0.0
    %19 = vst [vmem:[#allocation2 + $0x18] sm:$0xff] 0.0
    %20 = vst [vmem:[#allocation2 + $0x20] sm:$0xff] 0.0
    %21 = vst [vmem:[#allocation2 + $0x28] sm:$0xff] 0.0
    %22 = vst [vmem:[#allocation2 + $0x30] sm:$0xff] 0.0
    %23 = vst [vmem:[#allocation2 + $0x38] sm:$0xff] 0.0
    %24 = vst [vmem:[#allocation2 + $0x40] sm:$0xff] 0.0
    %25 = vst [vmem:[#allocation2 + $0x48] sm:$0xff] 0.0
    %26 = vst [vmem:[#allocation2 + $0x50] sm:$0xff] 0.0
    %27 = vst [vmem:[#allocation2 + $0x58] sm:$0xff] 0.0
    %28 = vst [vmem:[#allocation2 + $0x60] sm:$0xff] 0.0
    %29 = vst [vmem:[#allocation2 + $0x68] sm:$0xff] 0.0
    %30 = vst [vmem:[#allocation2 + $0x70] sm:$0xff] 0.0
    %31 = vst [vmem:[#allocation2 + $0x78] sm:$0xff] 0.0
    %32 = vst [vmem:[#allocation2 + $0x80] sm:$0xff] 0.0
    %33 = vst [vmem:[#allocation2 + $0x88] sm:$0xff] 0.0
    %34 = vst [vmem:[#allocation2 + $0x90] sm:$0xff] 0.0
    %35 = vst [vmem:[#allocation2 + $0x98] sm:$0xff] 0.0
    %36 = vst [vmem:[#allocation2 + $0xa0] sm:$0xff] 0.0
    %37 = vst [vmem:[#allocation2 + $0xa8] sm:$0xff] 0.0
    %38 = vst [vmem:[#allocation2 + $0xb0] sm:$0xff] 0.0
    %39 = vst [vmem:[#allocation2 + $0xb8] sm:$0xff] 0.0
    %40 = vst [vmem:[#allocation2 + $0xc0] sm:$0xff] 0.0
    %41 = vst [vmem:[#allocation2 + $0xc8] sm:$0xff] 0.0
    %42 = vst [vmem:[#allocation2 + $0xd0] sm:$0xff] 0.0
    %43 = vst [vmem:[#allocation2 + $0xd8] sm:$0xff] 0.0
    %44 = vst [vmem:[#allocation2 + $0xe0] sm:$0xff] 0.0
    %45 = vst [vmem:[#allocation2 + $0xe8] sm:$0xff] 0.0
    %46 = vst [vmem:[#allocation2 + $0xf0] sm:$0xff] 0.0
    %47 = vst [vmem:[#allocation2 + $0xf8] sm:$0xff] 0.0
    %48 = vst [vmem:[#allocation2 + $0x100] sm:$0xff] 0.0
    %49 = vst [vmem:[#allocation2 + $0x108] sm:$0xff] 0.0
    %50 = vst [vmem:[#allocation2 + $0x110] sm:$0xff] 0.0
    %51 = vst [vmem:[#allocation2 + $0x118] sm:$0xff] 0.0
    %52 = vst [vmem:[#allocation2 + $0x120] sm:$0xff] 0.0
    %53 = vst [vmem:[#allocation2 + $0x128] sm:$0xff] 0.0
    %54 = vst [vmem:[#allocation2 + $0x130] sm:$0xff] 0.0
    %55 = vst [vmem:[#allocation2 + $0x138] sm:$0xff] 0.0
    %56 = vst [vmem:[#allocation2 + $0x140] sm:$0xff] 0.0
    %57 = vst [vmem:[#allocation2 + $0x148] sm:$0xff] 0.0
    %58 = vst [vmem:[#allocation2 + $0x150] sm:$0xff] 0.0
    %59 = vst [vmem:[#allocation2 + $0x158] sm:$0xff] 0.0
    %60 = vst [vmem:[#allocation2 + $0x160] sm:$0xff] 0.0
    %61 = vst [vmem:[#allocation2 + $0x168] sm:$0xff] 0.0
    %62 = vst [vmem:[#allocation2 + $0x170] sm:$0xff] 0.0
    %63 = vst [vmem:[#allocation2 + $0x178] sm:$0xff] 0.0
    %64 = vst [vmem:[#allocation2 + $0x180] sm:$0xff] 0.0
    %65 = vst [vmem:[#allocation2 + $0x188] sm:$0xff] 0.0
    %66 = vst [vmem:[#allocation2 + $0x190] sm:$0xff] 0.0
    %67 = vst [vmem:[#allocation2 + $0x198] sm:$0xff] 0.0
    %68 = vst [vmem:[#allocation2 + $0x1a0] sm:$0xff] 0.0
    %69 = vst [vmem:[#allocation2 + $0x1a8] sm:$0xff] 0.0
    %70 = vst [vmem:[#allocation2 + $0x1b0] sm:$0xff] 0.0
    %71 = vst [vmem:[#allocation2 + $0x1b8] sm:$0xff] 0.0
    %72 = vst [vmem:[#allocation2 + $0x1c0] sm:$0xff] 0.0
    %73 = vst [vmem:[#allocation2 + $0x1c8] sm:$0xff] 0.0
    %74 = vst [vmem:[#allocation2 + $0x1d0] sm:$0xff] 0.0
    %75 = vst [vmem:[#allocation2 + $0x1d8] sm:$0xff] 0.0
    %76 = vst [vmem:[#allocation2 + $0x1e0] sm:$0xff] 0.0
    %77 = vst [vmem:[#allocation2 + $0x1e8] sm:$0xff] 0.0
    %78 = vst [vmem:[#allocation2 + $0x1f0] sm:$0xff] 0.0
    %79 = vst [vmem:[#allocation2 + $0x1f8] sm:$0xff] 0.0
  $region13: #{discriminator_forward.6} parent=0 // pred_fallthru
    _
  %v80 = vld [vmem:[#allocation2] sm:$0xff]
  %v81 = vld [vmem:[#allocation2 + $0x8] sm:$0xff]
  %v82 = vld [vmem:[#allocation2 + $0x10] sm:$0xff]
  %v83 = vld [vmem:[#allocation2 + $0x18] sm:$0xff]
  %v84 = vld [vmem:[#allocation2 + $0x20] sm:$0xff]
  %v85 = vld [vmem:[#allocation2 + $0x28] sm:$0xff]
  %v86 = vld [vmem:[#allocation2 + $0x30] sm:$0xff]
  %v87 = vld [vmem:[#allocation2 + $0x38] sm:$0xff]
  %v88 = vld [vmem:[#allocation2 + $0x40] sm:$0xff]
  %v89 = vld [vmem:[#allocation2 + $0x48] sm:$0xff]
  %v90 = vld [vmem:[#allocation2 + $0x50] sm:$0xff]
  %v91 = vld [vmem:[#allocation2 + $0x58] sm:$0xff]
  %v92 = vld [vmem:[#allocation2 + $0x60] sm:$0xff]
  %v93 = vld [vmem:[#allocation2 + $0x68] sm:$0xff]
  %v94 = vld [vmem:[#allocation2 + $0x70] sm:$0xff]
  %v95 = vld [vmem:[#allocation2 + $0x78] sm:$0xff]
  %v96 = vld [vmem:[#allocation2 + $0x80] sm:$0xff]
  %v97 = vld [vmem:[#allocation2 + $0x88] sm:$0xff]
  %v98 = vld [vmem:[#allocation2 + $0x90] sm:$0xff]
  %v99 = vld [vmem:[#allocation2 + $0x98] sm:$0xff]
  %v100 = vld [vmem:[#allocation2 + $0xa0] sm:$0xff]
  %v101 = vld [vmem:[#allocation2 + $0xa8] sm:$0xff]
  %v102 = vld [vmem:[#allocation2 + $0xb0] sm:$0xff]
  %v103 = vld [vmem:[#allocation2 + $0xb8] sm:$0xff]
  %v104 = vld [vmem:[#allocation2 + $0xc0] sm:$0xff]
  %v105 = vld [vmem:[#allocation2 + $0xc8] sm:$0xff]
  %v106 = vld [vmem:[#allocation2 + $0xd0] sm:$0xff]
  %v107 = vld [vmem:[#allocation2 + $0xd8] sm:$0xff]
  %v108 = vld [vmem:[#allocation2 + $0xe0] sm:$0xff]
  %v109 = vld [vmem:[#allocation2 + $0xe8] sm:$0xff]
  %v110 = vld [vmem:[#allocation2 + $0xf0] sm:$0xff]
  %v111 = vld [vmem:[#allocation2 + $0xf8] sm:$0xff]
  %v112 = vld [vmem:[#allocation2 + $0x100] sm:$0xff]
  %v113 = vld [vmem:[#allocation2 + $0x108] sm:$0xff]
  %v114 = vld [vmem:[#allocation2 + $0x110] sm:$0xff]
  %v115 = vld [vmem:[#allocation2 + $0x118] sm:$0xff]
  %v116 = vld [vmem:[#allocation2 + $0x120] sm:$0xff]
  %v117 = vld [vmem:[#allocation2 + $0x128] sm:$0xff]
  %v118 = vld [vmem:[#allocation2 + $0x130] sm:$0xff]
  %v119 = vld [vmem:[#allocation2 + $0x138] sm:$0xff]
  %v120 = vld [vmem:[#allocation2 + $0x140] sm:$0xff]
  %v121 = vld [vmem:[#allocation2 + $0x148] sm:$0xff]
  %v122 = vld [vmem:[#allocation2 + $0x150] sm:$0xff]
  %v123 = vld [vmem:[#allocation2 + $0x158] sm:$0xff]
  %v124 = vld [vmem:[#allocation2 + $0x160] sm:$0xff]
  %v125 = vld [vmem:[#allocation2 + $0x168] sm:$0xff]
  %v126 = vld [vmem:[#allocation2 + $0x170] sm:$0xff]
  %v127 = vld [vmem:[#allocation2 + $0x178] sm:$0xff]
  %v128 = vld [vmem:[#allocation2 + $0x180] sm:$0xff]
  %v129 = vld [vmem:[#allocation2 + $0x188] sm:$0xff]
  %v130 = vld [vmem:[#allocation2 + $0x190] sm:$0xff]
  %v131 = vld [vmem:[#allocation2 + $0x198] sm:$0xff]
  %v132 = vld [vmem:[#allocation2 + $0x1a0] sm:$0xff]
  %v133 = vld [vmem:[#allocation2 + $0x1a8] sm:$0xff]
  %v134 = vld [vmem:[#allocation2 + $0x1b0] sm:$0xff]
  %v135 = vld [vmem:[#allocation2 + $0x1b8] sm:$0xff]
  %v136 = vld [vmem:[#allocation2 + $0x1c0] sm:$0xff]
  %v137 = vld [vmem:[#allocation2 + $0x1c8] sm:$0xff]
  %v138 = vld [vmem:[#allocation2 + $0x1d0] sm:$0xff]
  %v139 = vld [vmem:[#allocation2 + $0x1d8] sm:$0xff]
  %v140 = vld [vmem:[#allocation2 + $0x1e0] sm:$0xff]
  %v141 = vld [vmem:[#allocation2 + $0x1e8] sm:$0xff]
  %v142 = vld [vmem:[#allocation2 + $0x1f0] sm:$0xff]
  %v143 = vld [vmem:[#allocation2 + $0x1f8] sm:$0xff]
  %v144 = vld [vmem:[%s0] sm:$0xf]
  %v145 = vld [vmem:[%s0 + $0x4] sm:$0xf]
  %v146 = vld [vmem:[%s0 + $0x8] sm:$0xf]
  %v147 = vld [vmem:[%s0 + $0xc] sm:$0xf]
  %v148 = vld [vmem:[%s0 + $0x10] sm:$0xf]
  %v149 = vld [vmem:[%s0 + $0x14] sm:$0xf]
  %v150 = vld [vmem:[%s0 + $0x18] sm:$0xf]
  %v151 = vld [vmem:[%s0 + $0x1c] sm:$0xf]
  %v152 = vld [vmem:[%s0 + $0x20] sm:$0xf]
  %v153 = vld [vmem:[%s0 + $0x24] sm:$0xf]
  %v154 = vld [vmem:[%s0 + $0x28] sm:$0xf]
  %v155 = vld [vmem:[%s0 + $0x2c] sm:$0xf]
  %v156 = vld [vmem:[%s0 + $0x30] sm:$0xf]
  %v157 = vld [vmem:[%s0 + $0x34] sm:$0xf]
  %v158 = vld [vmem:[%s0 + $0x38] sm:$0xf]
  %v159 = vld [vmem:[%s0 + $0x3c] sm:$0xf]
  %v160 = vld [vmem:[%s0 + $0x40] sm:$0xf]
  %v161 = vld [vmem:[%s0 + $0x44] sm:$0xf]
  %v162 = vld [vmem:[%s0 + $0x48] sm:$0xf]
  %v163 = vld [vmem:[%s0 + $0x4c] sm:$0xf]
  %v164 = vld [vmem:[%s0 + $0x50] sm:$0xf]
  %v165 = vld [vmem:[%s0 + $0x54] sm:$0xf]
  %v166 = vld [vmem:[%s0 + $0x58] sm:$0xf]
  %v167 = vld [vmem:[%s0 + $0x5c] sm:$0xf]
  %v168 = vld [vmem:[%s0 + $0x60] sm:$0xf]
  %v169 = vld [vmem:[%s0 + $0x64] sm:$0xf]
  %v170 = vld [vmem:[%s0 + $0x68] sm:$0xf]
  %v171 = vld [vmem:[%s0 + $0x6c] sm:$0xf]
  %v172 = vld [vmem:[%s0 + $0x70] sm:$0xf]
  %v173 = vld [vmem:[%s0 + $0x74] sm:$0xf]
  %v174 = vld [vmem:[%s0 + $0x78] sm:$0xf]
  %v175 = vld [vmem:[%s0 + $0x7c] sm:$0xf]
  %v176 = vld [vmem:[%s0 + $0x80] sm:$0xf]
  %v177 = vld [vmem:[%s0 + $0x84] sm:$0xf]
  %v178 = vld [vmem:[%s0 + $0x88] sm:$0xf]
  %v179 = vld [vmem:[%s0 + $0x8c] sm:$0xf]
  %v180 = vld [vmem:[%s0 + $0x90] sm:$0xf]
  %v181 = vld [vmem:[%s0 + $0x94] sm:$0xf]
  %v182 = vld [vmem:[%s0 + $0x98] sm:$0xf]
  %v183 = vld [vmem:[%s0 + $0x9c] sm:$0xf]
  %v184 = vld [vmem:[%s0 + $0xa0] sm:$0xf]
  %v185 = vld [vmem:[%s0 + $0xa4] sm:$0xf]
  %v186 = vld [vmem:[%s0 + $0xa8] sm:$0xf]
  %v187 = vld [vmem:[%s0 + $0xac] sm:$0xf]
  %v188 = vld [vmem:[%s0 + $0xb0] sm:$0xf]
  %v189 = vld [vmem:[%s0 + $0xb4] sm:$0xf]
  %v190 = vld [vmem:[%s0 + $0xb8] sm:$0xf]
  %v191 = vld [vmem:[%s0 + $0xbc] sm:$0xf]
  %v192 = vld [vmem:[%s0 + $0xc0] sm:$0xf]
  %v193 = vld [vmem:[%s0 + $0xc4] sm:$0xf]
  %v194 = vld [vmem:[%s0 + $0xc8] sm:$0xf]
  %v195 = vld [vmem:[%s0 + $0xcc] sm:$0xf]
  %v196 = vld [vmem:[%s0 + $0xd0] sm:$0xf]
  %v197 = vld [vmem:[%s0 + $0xd4] sm:$0xf]
  %v198 = vld [vmem:[%s0 + $0xd8] sm:$0xf]
  %v199 = vld [vmem:[%s0 + $0xdc] sm:$0xf]
  %v200 = vld [vmem:[%s0 + $0xe0] sm:$0xf]
  %v201 = vld [vmem:[%s0 + $0xe4] sm:$0xf]
  %v202 = vld [vmem:[%s0 + $0xe8] sm:$0xf]
  %v203 = vld [vmem:[%s0 + $0xec] sm:$0xf]
  %v204 = vld [vmem:[%s0 + $0xf0] sm:$0xf]
  %v205 = vld [vmem:[%s0 + $0xf4] sm:$0xf]
  %v206 = vld [vmem:[%s0 + $0xf8] sm:$0xf]
  %v207 = vld [vmem:[%s0 + $0xfc] sm:$0xf]
  %v208 = vld [vmem:[%s1] sm:$0xf]
  %v209 = vld [vmem:[%s1 + $0x4] sm:$0xf]
  %v210 = vld [vmem:[%s1 + $0x8] sm:$0xf]
  %v211 = vld [vmem:[%s1 + $0xc] sm:$0xf]
  %v212 = vld [vmem:[%s1 + $0x10] sm:$0xf]
  %v213 = vld [vmem:[%s1 + $0x14] sm:$0xf]
  %v278 = vunpack.c.l.b16 %v144
  %v279 = vunpack.c.l.b16 %v145
  %v280 = vunpack.c.l.b16 %v146
  %v281 = vunpack.c.l.b16 %v147
  %v282 = vunpack.c.l.b16 %v148
  %v283 = vunpack.c.l.b16 %v149
  %v284 = vunpack.c.l.b16 %v150
  %v285 = vunpack.c.l.b16 %v151
  %v286 = vunpack.c.l.b16 %v152
  %v287 = vunpack.c.l.b16 %v153
  %v288 = vunpack.c.l.b16 %v154
  %v289 = vunpack.c.l.b16 %v155
  %v290 = vunpack.c.l.b16 %v156
  %v291 = vunpack.c.l.b16 %v157
  %v292 = vunpack.c.l.b16 %v158
  %v293 = vunpack.c.l.b16 %v159
  %v294 = vunpack.c.l.b16 %v160
  %v295 = vunpack.c.l.b16 %v161
  %v296 = vunpack.c.l.b16 %v162
  %v297 = vunpack.c.l.b16 %v163
  %v298 = vunpack.c.l.b16 %v164
  %v299 = vunpack.c.l.b16 %v165
  %v300 = vunpack.c.l.b16 %v166
  %v301 = vunpack.c.l.b16 %v167
  %v302 = vunpack.c.l.b16 %v168
  %v303 = vunpack.c.l.b16 %v169
  %v304 = vunpack.c.l.b16 %v170
  %v305 = vunpack.c.l.b16 %v171
  %v306 = vunpack.c.l.b16 %v172
  %v307 = vunpack.c.l.b16 %v173
  %v308 = vunpack.c.l.b16 %v174
  %v309 = vunpack.c.l.b16 %v175
  %v310 = vunpack.c.l.b16 %v176
  %v311 = vunpack.c.l.b16 %v177
  %v312 = vunpack.c.l.b16 %v178
  %v313 = vunpack.c.l.b16 %v179
  %v314 = vunpack.c.l.b16 %v180
  %v315 = vunpack.c.l.b16 %v181
  %v316 = vunpack.c.l.b16 %v182
  %v317 = vunpack.c.l.b16 %v183
  %v318 = vunpack.c.l.b16 %v184
  %v319 = vunpack.c.l.b16 %v185
  %v320 = vunpack.c.l.b16 %v186
  %v321 = vunpack.c.l.b16 %v187
  %v322 = vunpack.c.l.b16 %v188
  %v323 = vunpack.c.l.b16 %v189
  %v324 = vunpack.c.l.b16 %v190
  %v325 = vunpack.c.l.b16 %v191
  %v326 = vunpack.c.l.b16 %v192
  %v327 = vunpack.c.l.b16 %v193
  %v328 = vunpack.c.l.b16 %v194
  %v329 = vunpack.c.l.b16 %v195
  %v330 = vunpack.c.l.b16 %v196
  %v331 = vunpack.c.l.b16 %v197
  %v332 = vunpack.c.l.b16 %v198
  %v333 = vunpack.c.l.b16 %v199
  %v334 = vunpack.c.l.b16 %v200
  %v335 = vunpack.c.l.b16 %v201
  %v336 = vunpack.c.l.b16 %v202
  %v337 = vunpack.c.l.b16 %v203
  %v338 = vunpack.c.l.b16 %v204
  %v339 = vunpack.c.l.b16 %v205
  %v340 = vunpack.c.l.b16 %v206
  %v341 = vunpack.c.l.b16 %v207
  %v342 = vpack.c.b16 %v279, %v278
  %v343 = vpack.c.b16 %v281, %v280
  %v344 = vpack.c.b16 %v283, %v282
  %v345 = vpack.c.b16 %v285, %v284
  %v346 = vpack.c.b16 %v287, %v286
  %v347 = vpack.c.b16 %v289, %v288
  %v348 = vpack.c.b16 %v291, %v290
  %v349 = vpack.c.b16 %v293, %v292
  %v350 = vpack.c.b16 %v295, %v294
  %v351 = vpack.c.b16 %v297, %v296
  %v352 = vpack.c.b16 %v299, %v298
  %v353 = vpack.c.b16 %v301, %v300
  %v354 = vpack.c.b16 %v303, %v302
  %v355 = vpack.c.b16 %v305, %v304
  %v356 = vpack.c.b16 %v307, %v306
  %v357 = vpack.c.b16 %v309, %v308
  %v358 = vpack.c.b16 %v311, %v310
  %v359 = vpack.c.b16 %v313, %v312
  %v360 = vpack.c.b16 %v315, %v314
  %v361 = vpack.c.b16 %v317, %v316
  %v362 = vpack.c.b16 %v319, %v318
  %v363 = vpack.c.b16 %v321, %v320
  %v364 = vpack.c.b16 %v323, %v322
  %v365 = vpack.c.b16 %v325, %v324
  %v366 = vpack.c.b16 %v327, %v326
  %v367 = vpack.c.b16 %v329, %v328
  %v368 = vpack.c.b16 %v331, %v330
  %v369 = vpack.c.b16 %v333, %v332
  %v370 = vpack.c.b16 %v335, %v334
  %v371 = vpack.c.b16 %v337, %v336
  %v372 = vpack.c.b16 %v339, %v338
  %v373 = vpack.c.b16 %v341, %v340
  %v380 = vunpack.c.l.b16 %v208
  %v381 = vunpack.c.l.b16 %v209
  %v382 = vunpack.c.l.b16 %v210
  %v383 = vunpack.c.l.b16 %v211
  %v384 = vunpack.c.l.b16 %v212
  %v385 = vunpack.c.l.b16 %v213
  %v386 = vpack.c.b16 %v381, %v380
  %v387 = vpack.c.b16 %v383, %v382
  %v388 = vpack.c.b16 %v385, %v384
  %vm392 = vcmask 392192
  %v394 = vsel %vm392, %v342, 0
  %v397 = vsel %vm392, %v343, 0
  %v400 = vsel %vm392, %v344, 0
  %v403 = vsel %vm392, %v345, 0
  %v406 = vsel %vm392, %v346, 0
  %v409 = vsel %vm392, %v347, 0
  %v412 = vsel %vm392, %v348, 0
  %v415 = vsel %vm392, %v349, 0
  %v418 = vsel %vm392, %v350, 0
  %v421 = vsel %vm392, %v351, 0
  %v424 = vsel %vm392, %v352, 0
  %v427 = vsel %vm392, %v353, 0
  %v430 = vsel %vm392, %v354, 0
  %v433 = vsel %vm392, %v355, 0
  %v436 = vsel %vm392, %v356, 0
  %v439 = vsel %vm392, %v357, 0
  %v442 = vsel %vm392, %v358, 0
  %v445 = vsel %vm392, %v359, 0
  %v448 = vsel %vm392, %v360, 0
  %v451 = vsel %vm392, %v361, 0
  %v454 = vsel %vm392, %v362, 0
  %v457 = vsel %vm392, %v363, 0
  %v460 = vsel %vm392, %v364, 0
  %v463 = vsel %vm392, %v365, 0
  %v466 = vsel %vm392, %v366, 0
  %v469 = vsel %vm392, %v367, 0
  %v472 = vsel %vm392, %v368, 0
  %v475 = vsel %vm392, %v369, 0
  %v478 = vsel %vm392, %v370, 0
  %v481 = vsel %vm392, %v371, 0
  %v484 = vsel %vm392, %v372, 0
  %v487 = vsel %vm392, %v373, 0
  %489 = vmatprep.subr.bf16.mxu0 0
  %490 = vmatpush1.bf16.msra.mxu0 %v386
  %491 = vmatprep.subr.bf16.mxu0 0
  %492 = vmatpush1.bf16.msra.mxu0 %v387
  %493 = vmatprep.subr.bf16.mxu0 0
  %494 = vmatpush1.bf16.msra.mxu0 %v388
  %495 = vmatprep.subr.bf16.mxu0 0
  %496 = vmatpush1.bf16.msra.mxu0 0
  %497 = vmatprep.subr.bf16.mxu0 0
  %498 = vmatpush1.bf16.msra.mxu0 0
  %499 = vmatprep.subr.bf16.mxu0 0
  %500 = vmatpush1.bf16.msra.mxu0 0
  %501 = vmatprep.subr.bf16.mxu0 0
  %502 = vmatpush1.bf16.msra.mxu0 0
  %503 = vmatprep.subr.bf16.mxu0 0
  %504 = vmatpush1.bf16.msra.mxu0 0
  %505 = vmatprep.subr.bf16.mxu0 0
  %506 = vmatpush1.bf16.msra.mxu0 0
  %507 = vmatprep.subr.bf16.mxu0 0
  %508 = vmatpush1.bf16.msra.mxu0 0
  %509 = vmatprep.subr.bf16.mxu0 0
  %510 = vmatpush1.bf16.msra.mxu0 0
  %511 = vmatprep.subr.bf16.mxu0 0
  %512 = vmatpush1.bf16.msra.mxu0 0
  %513 = vmatprep.subr.bf16.mxu0 0
  %514 = vmatpush1.bf16.msra.mxu0 0
  %515 = vmatprep.subr.bf16.mxu0 0
  %516 = vmatpush1.bf16.msra.mxu0 0
  %517 = vmatprep.subr.bf16.mxu0 0
  %518 = vmatpush1.bf16.msra.mxu0 0
  %519 = vmatprep.subr.bf16.mxu0 0
  %520 = vmatpush1.bf16.msra.mxu0 0
  %521 = vmatprep.mubr.bf16.mxu0 0
  %522 = vmatmul.mubr.bf16.gmra.mrb[0].mxu0 %v394
  %v523 = vpop.f32.mrb[0].mxu0
  %v524 = vadd.f32 0.0, %v523
  %v525 = vpop.f32.mrb[0].mxu0
  %v526 = vpop.f32.mrb[0].mxu0
  %v527 = vadd.f32 0.0, %v526
  %v528 = vpop.f32.mrb[0].mxu0
  %529 = vmatprep.mubr.bf16.mxu0 0
  %530 = vmatmul.mubr.bf16.gmra.mrb[0].mxu0 %v397
  %v531 = vpop.f32.mrb[0].mxu0
  %v532 = vadd.f32 0.0, %v531
  %v533 = vpop.f32.mrb[0].mxu0
  %v534 = vpop.f32.mrb[0].mxu0
  %v535 = vadd.f32 0.0, %v534
  %v536 = vpop.f32.mrb[0].mxu0
  %537 = vmatprep.mubr.bf16.mxu0 0
  %538 = vmatmul.mubr.bf16.gmra.mrb[0].mxu0 %v400
  %v539 = vpop.f32.mrb[0].mxu0
  %v540 = vadd.f32 0.0, %v539
  %v541 = vpop.f32.mrb[0].mxu0
  %v542 = vpop.f32.mrb[0].mxu0
  %v543 = vadd.f32 0.0, %v542
  %v544 = vpop.f32.mrb[0].mxu0
  %545 = vmatprep.mubr.bf16.mxu0 0
  %546 = vmatmul.mubr.bf16.gmra.mrb[0].mxu0 %v403
  %v547 = vpop.f32.mrb[0].mxu0
  %v548 = vadd.f32 0.0, %v547
  %v549 = vpop.f32.mrb[0].mxu0
  %v550 = vpop.f32.mrb[0].mxu0
  %v551 = vadd.f32 0.0, %v550
  %v552 = vpop.f32.mrb[0].mxu0
  %553 = vmatprep.mubr.bf16.mxu0 0
  %554 = vmatmul.mubr.bf16.gmra.mrb[0].mxu0 %v406
  %v555 = vpop.f32.mrb[0].mxu0
  %v556 = vadd.f32 0.0, %v555
  %v557 = vpop.f32.mrb[0].mxu0
  %v558 = vpop.f32.mrb[0].mxu0
  %v559 = vadd.f32 0.0, %v558
  %v560 = vpop.f32.mrb[0].mxu0
  %561 = vmatprep.mubr.bf16.mxu0 0
  %562 = vmatmul.mubr.bf16.gmra.mrb[0].mxu0 %v409
  %v563 = vpop.f32.mrb[0].mxu0
  %v564 = vadd.f32 0.0, %v563
  %v565 = vpop.f32.mrb[0].mxu0
  %v566 = vpop.f32.mrb[0].mxu0
  %v567 = vadd.f32 0.0, %v566
  %v568 = vpop.f32.mrb[0].mxu0
  %569 = vmatprep.mubr.bf16.mxu0 0
  %570 = vmatmul.mubr.bf16.gmra.mrb[0].mxu0 %v412
  %v571 = vpop.f32.mrb[0].mxu0
  %v572 = vadd.f32 0.0, %v571
  %v573 = vpop.f32.mrb[0].mxu0
  %v574 = vpop.f32.mrb[0].mxu0
  %v575 = vadd.f32 0.0, %v574
  %v576 = vpop.f32.mrb[0].mxu0
  %577 = vmatprep.mubr.bf16.mxu0 0
  %578 = vmatmul.mubr.bf16.gmra.mrb[0].mxu0 %v415
  %v579 = vpop.f32.mrb[0].mxu0
  %v580 = vadd.f32 0.0, %v579
  %v581 = vpop.f32.mrb[0].mxu0
  %v582 = vpop.f32.mrb[0].mxu0
  %v583 = vadd.f32 0.0, %v582
  %v584 = vpop.f32.mrb[0].mxu0
  %585 = vmatprep.mubr.bf16.mxu0 0
  %586 = vmatmul.mubr.bf16.gmra.mrb[0].mxu0 %v418
  %v587 = vpop.f32.mrb[0].mxu0
  %v588 = vadd.f32 0.0, %v587
  %v589 = vpop.f32.mrb[0].mxu0
  %v590 = vpop.f32.mrb[0].mxu0
  %v591 = vadd.f32 0.0, %v590
  %v592 = vpop.f32.mrb[0].mxu0
  %593 = vmatprep.mubr.bf16.mxu0 0
  %594 = vmatmul.mubr.bf16.gmra.mrb[0].mxu0 %v421
  %v595 = vpop.f32.mrb[0].mxu0
  %v596 = vadd.f32 0.0, %v595
  %v597 = vpop.f32.mrb[0].mxu0
  %v598 = vpop.f32.mrb[0].mxu0
  %v599 = vadd.f32 0.0, %v598
  %v600 = vpop.f32.mrb[0].mxu0
  %601 = vmatprep.mubr.bf16.mxu0 0
  %602 = vmatmul.mubr.bf16.gmra.mrb[0].mxu0 %v424
  %v603 = vpop.f32.mrb[0].mxu0
  %v604 = vadd.f32 0.0, %v603
  %v605 = vpop.f32.mrb[0].mxu0
  %v606 = vpop.f32.mrb[0].mxu0
  %v607 = vadd.f32 0.0, %v606
  %v608 = vpop.f32.mrb[0].mxu0
  %609 = vmatprep.mubr.bf16.mxu0 0
  %610 = vmatmul.mubr.bf16.gmra.mrb[0].mxu0 %v427
  %v611 = vpop.f32.mrb[0].mxu0
  %v612 = vadd.f32 0.0, %v611
  %v613 = vpop.f32.mrb[0].mxu0
  %v614 = vpop.f32.mrb[0].mxu0
  %v615 = vadd.f32 0.0, %v614
  %v616 = vpop.f32.mrb[0].mxu0
  %617 = vmatprep.mubr.bf16.mxu0 0
  %618 = vmatmul.mubr.bf16.gmra.mrb[0].mxu0 %v430
  %v619 = vpop.f32.mrb[0].mxu0
  %v620 = vadd.f32 0.0, %v619
  %v621 = vpop.f32.mrb[0].mxu0
  %v622 = vpop.f32.mrb[0].mxu0
  %v623 = vadd.f32 0.0, %v622
  %v624 = vpop.f32.mrb[0].mxu0
  %625 = vmatprep.mubr.bf16.mxu0 0
  %626 = vmatmul.mubr.bf16.gmra.mrb[0].mxu0 %v433
  %v627 = vpop.f32.mrb[0].mxu0
  %v628 = vadd.f32 0.0, %v627
  %v629 = vpop.f32.mrb[0].mxu0
  %v630 = vpop.f32.mrb[0].mxu0
  %v631 = vadd.f32 0.0, %v630
  %v632 = vpop.f32.mrb[0].mxu0
  %633 = vmatprep.mubr.bf16.mxu0 0
  %634 = vmatmul.mubr.bf16.gmra.mrb[0].mxu0 %v436
  %v635 = vpop.f32.mrb[0].mxu0
  %v636 = vadd.f32 0.0, %v635
  %v637 = vpop.f32.mrb[0].mxu0
  %v638 = vpop.f32.mrb[0].mxu0
  %v639 = vadd.f32 0.0, %v638
  %v640 = vpop.f32.mrb[0].mxu0
  %641 = vmatprep.mubr.bf16.mxu0 0
  %642 = vmatmul.mubr.bf16.gmra.mrb[0].mxu0 %v439
  %v643 = vpop.f32.mrb[0].mxu0
  %v644 = vadd.f32 0.0, %v643
  %v645 = vpop.f32.mrb[0].mxu0
  %v646 = vpop.f32.mrb[0].mxu0
  %v647 = vadd.f32 0.0, %v646
  %v648 = vpop.f32.mrb[0].mxu0
  %649 = vmatprep.mubr.bf16.mxu0 0
  %650 = vmatmul.mubr.bf16.gmra.mrb[0].mxu0 %v442
  %v651 = vpop.f32.mrb[0].mxu0
  %v652 = vadd.f32 0.0, %v651
  %v653 = vpop.f32.mrb[0].mxu0
  %v654 = vpop.f32.mrb[0].mxu0
  %v655 = vadd.f32 0.0, %v654
  %v656 = vpop.f32.mrb[0].mxu0
  %657 = vmatprep.mubr.bf16.mxu0 0
  %658 = vmatmul.mubr.bf16.gmra.mrb[0].mxu0 %v445
  %v659 = vpop.f32.mrb[0].mxu0
  %v660 = vadd.f32 0.0, %v659
  %v661 = vpop.f32.mrb[0].mxu0
  %v662 = vpop.f32.mrb[0].mxu0
  %v663 = vadd.f32 0.0, %v662
  %v664 = vpop.f32.mrb[0].mxu0
  %665 = vmatprep.mubr.bf16.mxu0 0
  %666 = vmatmul.mubr.bf16.gmra.mrb[0].mxu0 %v448
  %v667 = vpop.f32.mrb[0].mxu0
  %v668 = vadd.f32 0.0, %v667
  %v669 = vpop.f32.mrb[0].mxu0
  %v670 = vpop.f32.mrb[0].mxu0
  %v671 = vadd.f32 0.0, %v670
  %v672 = vpop.f32.mrb[0].mxu0
  %673 = vmatprep.mubr.bf16.mxu0 0
  %674 = vmatmul.mubr.bf16.gmra.mrb[0].mxu0 %v451
  %v675 = vpop.f32.mrb[0].mxu0
  %v676 = vadd.f32 0.0, %v675
  %v677 = vpop.f32.mrb[0].mxu0
  %v678 = vpop.f32.mrb[0].mxu0
  %v679 = vadd.f32 0.0, %v678
  %v680 = vpop.f32.mrb[0].mxu0
  %681 = vmatprep.mubr.bf16.mxu0 0
  %682 = vmatmul.mubr.bf16.gmra.mrb[0].mxu0 %v454
  %v683 = vpop.f32.mrb[0].mxu0
  %v684 = vadd.f32 0.0, %v683
  %v685 = vpop.f32.mrb[0].mxu0
  %v686 = vpop.f32.mrb[0].mxu0
  %v687 = vadd.f32 0.0, %v686
  %v688 = vpop.f32.mrb[0].mxu0
  %689 = vmatprep.mubr.bf16.mxu0 0
  %690 = vmatmul.mubr.bf16.gmra.mrb[0].mxu0 %v457
  %v691 = vpop.f32.mrb[0].mxu0
  %v692 = vadd.f32 0.0, %v691
  %v693 = vpop.f32.mrb[0].mxu0
  %v694 = vpop.f32.mrb[0].mxu0
  %v695 = vadd.f32 0.0, %v694
  %v696 = vpop.f32.mrb[0].mxu0
  %697 = vmatprep.mubr.bf16.mxu0 0
  %698 = vmatmul.mubr.bf16.gmra.mrb[0].mxu0 %v460
  %v699 = vpop.f32.mrb[0].mxu0
  %v700 = vadd.f32 0.0, %v699
  %v701 = vpop.f32.mrb[0].mxu0
  %v702 = vpop.f32.mrb[0].mxu0
  %v703 = vadd.f32 0.0, %v702
  %v704 = vpop.f32.mrb[0].mxu0
  %705 = vmatprep.mubr.bf16.mxu0 0
  %706 = vmatmul.mubr.bf16.gmra.mrb[0].mxu0 %v463
  %v707 = vpop.f32.mrb[0].mxu0
  %v708 = vadd.f32 0.0, %v707
  %v709 = vpop.f32.mrb[0].mxu0
  %v710 = vpop.f32.mrb[0].mxu0
  %v711 = vadd.f32 0.0, %v710
  %v712 = vpop.f32.mrb[0].mxu0
  %713 = vmatprep.mubr.bf16.mxu0 0
  %714 = vmatmul.mubr.bf16.gmra.mrb[0].mxu0 %v466
  %v715 = vpop.f32.mrb[0].mxu0
  %v716 = vadd.f32 0.0, %v715
  %v717 = vpop.f32.mrb[0].mxu0
  %v718 = vpop.f32.mrb[0].mxu0
  %v719 = vadd.f32 0.0, %v718
  %v720 = vpop.f32.mrb[0].mxu0
  %721 = vmatprep.mubr.bf16.mxu0 0
  %722 = vmatmul.mubr.bf16.gmra.mrb[0].mxu0 %v469
  %v723 = vpop.f32.mrb[0].mxu0
  %v724 = vadd.f32 0.0, %v723
  %v725 = vpop.f32.mrb[0].mxu0
  %v726 = vpop.f32.mrb[0].mxu0
  %v727 = vadd.f32 0.0, %v726
  %v728 = vpop.f32.mrb[0].mxu0
  %729 = vmatprep.mubr.bf16.mxu0 0
  %730 = vmatmul.mubr.bf16.gmra.mrb[0].mxu0 %v472
  %v731 = vpop.f32.mrb[0].mxu0
  %v732 = vadd.f32 0.0, %v731
  %v733 = vpop.f32.mrb[0].mxu0
  %v734 = vpop.f32.mrb[0].mxu0
  %v735 = vadd.f32 0.0, %v734
  %v736 = vpop.f32.mrb[0].mxu0
  %737 = vmatprep.mubr.bf16.mxu0 0
  %738 = vmatmul.mubr.bf16.gmra.mrb[0].mxu0 %v475
  %v739 = vpop.f32.mrb[0].mxu0
  %v740 = vadd.f32 0.0, %v739
  %v741 = vpop.f32.mrb[0].mxu0
  %v742 = vpop.f32.mrb[0].mxu0
  %v743 = vadd.f32 0.0, %v742
  %v744 = vpop.f32.mrb[0].mxu0
  %745 = vmatprep.mubr.bf16.mxu0 0
  %746 = vmatmul.mubr.bf16.gmra.mrb[0].mxu0 %v478
  %v747 = vpop.f32.mrb[0].mxu0
  %v748 = vadd.f32 0.0, %v747
  %v749 = vpop.f32.mrb[0].mxu0
  %v750 = vpop.f32.mrb[0].mxu0
  %v751 = vadd.f32 0.0, %v750
  %v752 = vpop.f32.mrb[0].mxu0
  %753 = vmatprep.mubr.bf16.mxu0 0
  %754 = vmatmul.mubr.bf16.gmra.mrb[0].mxu0 %v481
  %v755 = vpop.f32.mrb[0].mxu0
  %v756 = vadd.f32 0.0, %v755
  %v757 = vpop.f32.mrb[0].mxu0
  %v758 = vpop.f32.mrb[0].mxu0
  %v759 = vadd.f32 0.0, %v758
  %v760 = vpop.f32.mrb[0].mxu0
  %761 = vmatprep.mubr.bf16.mxu0 0
  %762 = vmatmul.mubr.bf16.gmra.mrb[0].mxu0 %v484
  %v763 = vpop.f32.mrb[0].mxu0
  %v764 = vadd.f32 0.0, %v763
  %v765 = vpop.f32.mrb[0].mxu0
  %v766 = vpop.f32.mrb[0].mxu0
  %v767 = vadd.f32 0.0, %v766
  %v768 = vpop.f32.mrb[0].mxu0
  %769 = vmatprep.mubr.bf16.mxu0 0
  %770 = vmatmul.mubr.bf16.gmra.mrb[0].mxu0 %v487
  %v771 = vpop.f32.mrb[0].mxu0
  %v772 = vadd.f32 0.0, %v771
  %v773 = vpop.f32.mrb[0].mxu0
  %v774 = vpop.f32.mrb[0].mxu0
  %v775 = vadd.f32 0.0, %v774
  %v776 = vpop.f32.mrb[0].mxu0
  %777 = vdwg.mxu0
  %v778 = vadd.f32 %v80, %v524
  %v779 = vadd.f32 %v81, %v527
  %v780 = vadd.f32 %v82, %v532
  %v781 = vadd.f32 %v83, %v535
  %v782 = vadd.f32 %v84, %v540
  %v783 = vadd.f32 %v85, %v543
  %v784 = vadd.f32 %v86, %v548
  %v785 = vadd.f32 %v87, %v551
  %v786 = vadd.f32 %v88, %v556
  %v787 = vadd.f32 %v89, %v559
  %v788 = vadd.f32 %v90, %v564
  %v789 = vadd.f32 %v91, %v567
  %v790 = vadd.f32 %v92, %v572
  %v791 = vadd.f32 %v93, %v575
  %v792 = vadd.f32 %v94, %v580
  %v793 = vadd.f32 %v95, %v583
  %v794 = vadd.f32 %v96, %v588
  %v795 = vadd.f32 %v97, %v591
  %v796 = vadd.f32 %v98, %v596
  %v797 = vadd.f32 %v99, %v599
  %v798 = vadd.f32 %v100, %v604
  %v799 = vadd.f32 %v101, %v607
  %v800 = vadd.f32 %v102, %v612
  %v801 = vadd.f32 %v103, %v615
  %v802 = vadd.f32 %v104, %v620
  %v803 = vadd.f32 %v105, %v623
  %v804 = vadd.f32 %v106, %v628
  %v805 = vadd.f32 %v107, %v631
  %v806 = vadd.f32 %v108, %v636
  %v807 = vadd.f32 %v109, %v639
  %v808 = vadd.f32 %v110, %v644
  %v809 = vadd.f32 %v111, %v647
  %v810 = vadd.f32 %v112, %v652
  %v811 = vadd.f32 %v113, %v655
  %v812 = vadd.f32 %v114, %v660
  %v813 = vadd.f32 %v115, %v663
  %v814 = vadd.f32 %v116, %v668
  %v815 = vadd.f32 %v117, %v671
  %v816 = vadd.f32 %v118, %v676
  %v817 = vadd.f32 %v119, %v679
  %v818 = vadd.f32 %v120, %v684
  %v819 = vadd.f32 %v121, %v687
  %v820 = vadd.f32 %v122, %v692
  %v821 = vadd.f32 %v123, %v695
  %v822 = vadd.f32 %v124, %v700
  %v823 = vadd.f32 %v125, %v703
  %v824 = vadd.f32 %v126, %v708
  %v825 = vadd.f32 %v127, %v711
  %v826 = vadd.f32 %v128, %v716
  %v827 = vadd.f32 %v129, %v719
  %v828 = vadd.f32 %v130, %v724
  %v829 = vadd.f32 %v131, %v727
  %v830 = vadd.f32 %v132, %v732
  %v831 = vadd.f32 %v133, %v735
  %v832 = vadd.f32 %v134, %v740
  %v833 = vadd.f32 %v135, %v743
  %v834 = vadd.f32 %v136, %v748
  %v835 = vadd.f32 %v137, %v751
  %v836 = vadd.f32 %v138, %v756
  %v837 = vadd.f32 %v139, %v759
  %v838 = vadd.f32 %v140, %v764
  %v839 = vadd.f32 %v141, %v767
  %v840 = vadd.f32 %v142, %v772
  %v841 = vadd.f32 %v143, %v775
  %842 = vst [vmem:[#allocation2] sm:$0xff] %v778
  %843 = vst [vmem:[#allocation2 + $0x8] sm:$0xff] %v779
  %844 = vst [vmem:[#allocation2 + $0x10] sm:$0xff] %v780
  %845 = vst [vmem:[#allocation2 + $0x18] sm:$0xff] %v781
  %846 = vst [vmem:[#allocation2 + $0x20] sm:$0xff] %v782
  %847 = vst [vmem:[#allocation2 + $0x28] sm:$0xff] %v783
  %848 = vst [vmem:[#allocation2 + $0x30] sm:$0xff] %v784
  %849 = vst [vmem:[#allocation2 + $0x38] sm:$0xff] %v785
  %850 = vst [vmem:[#allocation2 + $0x40] sm:$0xff] %v786
  %851 = vst [vmem:[#allocation2 + $0x48] sm:$0xff] %v787
  %852 = vst [vmem:[#allocation2 + $0x50] sm:$0xff] %v788
  %853 = vst [vmem:[#allocation2 + $0x58] sm:$0xff] %v789
  %854 = vst [vmem:[#allocation2 + $0x60] sm:$0xff] %v790
  %855 = vst [vmem:[#allocation2 + $0x68] sm:$0xff] %v791
  %856 = vst [vmem:[#allocation2 + $0x70] sm:$0xff] %v792
  %857 = vst [vmem:[#allocation2 + $0x78] sm:$0xff] %v793
  %858 = vst [vmem:[#allocation2 + $0x80] sm:$0xff] %v794
  %859 = vst [vmem:[#allocation2 + $0x88] sm:$0xff] %v795
  %860 = vst [vmem:[#allocation2 + $0x90] sm:$0xff] %v796
  %861 = vst [vmem:[#allocation2 + $0x98] sm:$0xff] %v797
  %862 = vst [vmem:[#allocation2 + $0xa0] sm:$0xff] %v798
  %863 = vst [vmem:[#allocation2 + $0xa8] sm:$0xff] %v799
  %864 = vst [vmem:[#allocation2 + $0xb0] sm:$0xff] %v800
  %865 = vst [vmem:[#allocation2 + $0xb8] sm:$0xff] %v801
  %866 = vst [vmem:[#allocation2 + $0xc0] sm:$0xff] %v802
  %867 = vst [vmem:[#allocation2 + $0xc8] sm:$0xff] %v803
  %868 = vst [vmem:[#allocation2 + $0xd0] sm:$0xff] %v804
  %869 = vst [vmem:[#allocation2 + $0xd8] sm:$0xff] %v805
  %870 = vst [vmem:[#allocation2 + $0xe0] sm:$0xff] %v806
  %871 = vst [vmem:[#allocation2 + $0xe8] sm:$0xff] %v807
  %872 = vst [vmem:[#allocation2 + $0xf0] sm:$0xff] %v808
  %873 = vst [vmem:[#allocation2 + $0xf8] sm:$0xff] %v809
  %874 = vst [vmem:[#allocation2 + $0x100] sm:$0xff] %v810
  %875 = vst [vmem:[#allocation2 + $0x108] sm:$0xff] %v811
  %876 = vst [vmem:[#allocation2 + $0x110] sm:$0xff] %v812
  %877 = vst [vmem:[#allocation2 + $0x118] sm:$0xff] %v813
  %878 = vst [vmem:[#allocation2 + $0x120] sm:$0xff] %v814
  %879 = vst [vmem:[#allocation2 + $0x128] sm:$0xff] %v815
  %880 = vst [vmem:[#allocation2 + $0x130] sm:$0xff] %v816
  %881 = vst [vmem:[#allocation2 + $0x138] sm:$0xff] %v817
  %882 = vst [vmem:[#allocation2 + $0x140] sm:$0xff] %v818
  %883 = vst [vmem:[#allocation2 + $0x148] sm:$0xff] %v819
  %884 = vst [vmem:[#allocation2 + $0x150] sm:$0xff] %v820
  %885 = vst [vmem:[#allocation2 + $0x158] sm:$0xff] %v821
  %886 = vst [vmem:[#allocation2 + $0x160] sm:$0xff] %v822
  %887 = vst [vmem:[#allocation2 + $0x168] sm:$0xff] %v823
  %888 = vst [vmem:[#allocation2 + $0x170] sm:$0xff] %v824
  %889 = vst [vmem:[#allocation2 + $0x178] sm:$0xff] %v825
  %890 = vst [vmem:[#allocation2 + $0x180] sm:$0xff] %v826
  %891 = vst [vmem:[#allocation2 + $0x188] sm:$0xff] %v827
  %892 = vst [vmem:[#allocation2 + $0x190] sm:$0xff] %v828
  %893 = vst [vmem:[#allocation2 + $0x198] sm:$0xff] %v829
  %894 = vst [vmem:[#allocation2 + $0x1a0] sm:$0xff] %v830
  %895 = vst [vmem:[#allocation2 + $0x1a8] sm:$0xff] %v831
  %896 = vst [vmem:[#allocation2 + $0x1b0] sm:$0xff] %v832
  %897 = vst [vmem:[#allocation2 + $0x1b8] sm:$0xff] %v833
  %898 = vst [vmem:[#allocation2 + $0x1c0] sm:$0xff] %v834
  %899 = vst [vmem:[#allocation2 + $0x1c8] sm:$0xff] %v835
  %900 = vst [vmem:[#allocation2 + $0x1d0] sm:$0xff] %v836
  %901 = vst [vmem:[#allocation2 + $0x1d8] sm:$0xff] %v837
  %902 = vst [vmem:[#allocation2 + $0x1e0] sm:$0xff] %v838
  %903 = vst [vmem:[#allocation2 + $0x1e8] sm:$0xff] %v839
  %904 = vst [vmem:[#allocation2 + $0x1f0] sm:$0xff] %v840
  %905 = vst [vmem:[#allocation2 + $0x1f8] sm:$0xff] %v841
  // Predicated region
  $region14: #{discriminator_forward.6} parent=0 // pred_check
    %p906 = pneg %p12
  $region15: #{discriminator_forward.6} parent=0 // pred_check_branch
    %908 = sbr.rel (%p906) target = $region17
  $region16: #{discriminator_forward.6} parent=0 // pred_region
    %v909 = vld [vmem:[#allocation2] sm:$0xff]
    %v910 = vld [vmem:[#allocation2 + $0x8] sm:$0xff]
    %v911 = vld [vmem:[#allocation2 + $0x10] sm:$0xff]
    %v912 = vld [vmem:[#allocation2 + $0x18] sm:$0xff]
    %v913 = vld [vmem:[#allocation2 + $0x20] sm:$0xff]
    %v914 = vld [vmem:[#allocation2 + $0x28] sm:$0xff]
    %v915 = vld [vmem:[#allocation2 + $0x30] sm:$0xff]
    %v916 = vld [vmem:[#allocation2 + $0x38] sm:$0xff]
    %v917 = vld [vmem:[#allocation2 + $0x40] sm:$0xff]
    %v918 = vld [vmem:[#allocation2 + $0x48] sm:$0xff]
    %v919 = vld [vmem:[#allocation2 + $0x50] sm:$0xff]
    %v920 = vld [vmem:[#allocation2 + $0x58] sm:$0xff]
    %v921 = vld [vmem:[#allocation2 + $0x60] sm:$0xff]
    %v922 = vld [vmem:[#allocation2 + $0x68] sm:$0xff]
    %v923 = vld [vmem:[#allocation2 + $0x70] sm:$0xff]
    %v924 = vld [vmem:[#allocation2 + $0x78] sm:$0xff]
    %v925 = vld [vmem:[#allocation2 + $0x80] sm:$0xff]
    %v926 = vld [vmem:[#allocation2 + $0x88] sm:$0xff]
    %v927 = vld [vmem:[#allocation2 + $0x90] sm:$0xff]
    %v928 = vld [vmem:[#allocation2 + $0x98] sm:$0xff]
    %v929 = vld [vmem:[#allocation2 + $0xa0] sm:$0xff]
    %v930 = vld [vmem:[#allocation2 + $0xa8] sm:$0xff]
    %v931 = vld [vmem:[#allocation2 + $0xb0] sm:$0xff]
    %v932 = vld [vmem:[#allocation2 + $0xb8] sm:$0xff]
    %v933 = vld [vmem:[#allocation2 + $0xc0] sm:$0xff]
    %v934 = vld [vmem:[#allocation2 + $0xc8] sm:$0xff]
    %v935 = vld [vmem:[#allocation2 + $0xd0] sm:$0xff]
    %v936 = vld [vmem:[#allocation2 + $0xd8] sm:$0xff]
    %v937 = vld [vmem:[#allocation2 + $0xe0] sm:$0xff]
    %v938 = vld [vmem:[#allocation2 + $0xe8] sm:$0xff]
    %v939 = vld [vmem:[#allocation2 + $0xf0] sm:$0xff]
    %v940 = vld [vmem:[#allocation2 + $0xf8] sm:$0xff]
    %v941 = vld [vmem:[#allocation2 + $0x100] sm:$0xff]
    %v942 = vld [vmem:[#allocation2 + $0x108] sm:$0xff]
    %v943 = vld [vmem:[#allocation2 + $0x110] sm:$0xff]
    %v944 = vld [vmem:[#allocation2 + $0x118] sm:$0xff]
    %v945 = vld [vmem:[#allocation2 + $0x120] sm:$0xff]
    %v946 = vld [vmem:[#allocation2 + $0x128] sm:$0xff]
    %v947 = vld [vmem:[#allocation2 + $0x130] sm:$0xff]
    %v948 = vld [vmem:[#allocation2 + $0x138] sm:$0xff]
    %v949 = vld [vmem:[#allocation2 + $0x140] sm:$0xff]
    %v950 = vld [vmem:[#allocation2 + $0x148] sm:$0xff]
    %v951 = vld [vmem:[#allocation2 + $0x150] sm:$0xff]
    %v952 = vld [vmem:[#allocation2 + $0x158] sm:$0xff]
    %v953 = vld [vmem:[#allocation2 + $0x160] sm:$0xff]
    %v954 = vld [vmem:[#allocation2 + $0x168] sm:$0xff]
    %v955 = vld [vmem:[#allocation2 + $0x170] sm:$0xff]
    %v956 = vld [vmem:[#allocation2 + $0x178] sm:$0xff]
    %v957 = vld [vmem:[#allocation2 + $0x180] sm:$0xff]
    %v958 = vld [vmem:[#allocation2 + $0x188] sm:$0xff]
    %v959 = vld [vmem:[#allocation2 + $0x190] sm:$0xff]
    %v960 = vld [vmem:[#allocation2 + $0x198] sm:$0xff]
    %v961 = vld [vmem:[#allocation2 + $0x1a0] sm:$0xff]
    %v962 = vld [vmem:[#allocation2 + $0x1a8] sm:$0xff]
    %v963 = vld [vmem:[#allocation2 + $0x1b0] sm:$0xff]
    %v964 = vld [vmem:[#allocation2 + $0x1b8] sm:$0xff]
    %v965 = vld [vmem:[#allocation2 + $0x1c0] sm:$0xff]
    %v966 = vld [vmem:[#allocation2 + $0x1c8] sm:$0xff]
    %v967 = vld [vmem:[#allocation2 + $0x1d0] sm:$0xff]
    %v968 = vld [vmem:[#allocation2 + $0x1d8] sm:$0xff]
    %v969 = vld [vmem:[#allocation2 + $0x1e0] sm:$0xff]
    %v970 = vld [vmem:[#allocation2 + $0x1e8] sm:$0xff]
    %v971 = vld [vmem:[#allocation2 + $0x1f0] sm:$0xff]
    %v972 = vld [vmem:[#allocation2 + $0x1f8] sm:$0xff]
    %vm973 = vcmp.ge.f32.partialorder %v909, 0.0
    %vm974 = vcmp.ge.f32.partialorder %v910, 0.0
    %vm975 = vcmp.ge.f32.partialorder %v911, 0.0
    %vm976 = vcmp.ge.f32.partialorder %v912, 0.0
    %vm977 = vcmp.ge.f32.partialorder %v913, 0.0
    %vm978 = vcmp.ge.f32.partialorder %v914, 0.0
    %vm979 = vcmp.ge.f32.partialorder %v915, 0.0
    %vm980 = vcmp.ge.f32.partialorder %v916, 0.0
    %vm981 = vcmp.ge.f32.partialorder %v917, 0.0
    %vm982 = vcmp.ge.f32.partialorder %v918, 0.0
    %vm983 = vcmp.ge.f32.partialorder %v919, 0.0
    %vm984 = vcmp.ge.f32.partialorder %v920, 0.0
    %vm985 = vcmp.ge.f32.partialorder %v921, 0.0
    %vm986 = vcmp.ge.f32.partialorder %v922, 0.0
    %vm987 = vcmp.ge.f32.partialorder %v923, 0.0
    %vm988 = vcmp.ge.f32.partialorder %v924, 0.0
    %vm989 = vcmp.ge.f32.partialorder %v925, 0.0
    %vm990 = vcmp.ge.f32.partialorder %v926, 0.0
    %vm991 = vcmp.ge.f32.partialorder %v927, 0.0
    %vm992 = vcmp.ge.f32.partialorder %v928, 0.0
    %vm993 = vcmp.ge.f32.partialorder %v929, 0.0
    %vm994 = vcmp.ge.f32.partialorder %v930, 0.0
    %vm995 = vcmp.ge.f32.partialorder %v931, 0.0
    %vm996 = vcmp.ge.f32.partialorder %v932, 0.0
    %vm997 = vcmp.ge.f32.partialorder %v933, 0.0
    %vm998 = vcmp.ge.f32.partialorder %v934, 0.0
    %vm999 = vcmp.ge.f32.partialorder %v935, 0.0
    %vm1000 = vcmp.ge.f32.partialorder %v936, 0.0
    %vm1001 = vcmp.ge.f32.partialorder %v937, 0.0
    %vm1002 = vcmp.ge.f32.partialorder %v938, 0.0
    %vm1003 = vcmp.ge.f32.partialorder %v939, 0.0
    %vm1004 = vcmp.ge.f32.partialorder %v940, 0.0
    %vm1005 = vcmp.ge.f32.partialorder %v941, 0.0
    %vm1006 = vcmp.ge.f32.partialorder %v942, 0.0
    %vm1007 = vcmp.ge.f32.partialorder %v943, 0.0
    %vm1008 = vcmp.ge.f32.partialorder %v944, 0.0
    %vm1009 = vcmp.ge.f32.partialorder %v945, 0.0
    %vm1010 = vcmp.ge.f32.partialorder %v946, 0.0
    %vm1011 = vcmp.ge.f32.partialorder %v947, 0.0
    %vm1012 = vcmp.ge.f32.partialorder %v948, 0.0
    %vm1013 = vcmp.ge.f32.partialorder %v949, 0.0
    %vm1014 = vcmp.ge.f32.partialorder %v950, 0.0
    %vm1015 = vcmp.ge.f32.partialorder %v951, 0.0
    %vm1016 = vcmp.ge.f32.partialorder %v952, 0.0
    %vm1017 = vcmp.ge.f32.partialorder %v953, 0.0
    %vm1018 = vcmp.ge.f32.partialorder %v954, 0.0
    %vm1019 = vcmp.ge.f32.partialorder %v955, 0.0
    %vm1020 = vcmp.ge.f32.partialorder %v956, 0.0
    %vm1021 = vcmp.ge.f32.partialorder %v957, 0.0
    %vm1022 = vcmp.ge.f32.partialorder %v958, 0.0
    %vm1023 = vcmp.ge.f32.partialorder %v959, 0.0
    %vm1024 = vcmp.ge.f32.partialorder %v960, 0.0
    %vm1025 = vcmp.ge.f32.partialorder %v961, 0.0
    %vm1026 = vcmp.ge.f32.partialorder %v962, 0.0
    %vm1027 = vcmp.ge.f32.partialorder %v963, 0.0
    %vm1028 = vcmp.ge.f32.partialorder %v964, 0.0
    %vm1029 = vcmp.ge.f32.partialorder %v965, 0.0
    %vm1030 = vcmp.ge.f32.partialorder %v966, 0.0
    %vm1031 = vcmp.ge.f32.partialorder %v967, 0.0
    %vm1032 = vcmp.ge.f32.partialorder %v968, 0.0
    %vm1033 = vcmp.ge.f32.partialorder %v969, 0.0
    %vm1034 = vcmp.ge.f32.partialorder %v970, 0.0
    %vm1035 = vcmp.ge.f32.partialorder %v971, 0.0
    %vm1036 = vcmp.ge.f32.partialorder %v972, 0.0
    %v1037 = vmul.f32 %v909, 0.2
    %v1038 = vmul.f32 %v910, 0.2
    %v1039 = vmul.f32 %v911, 0.2
    %v1040 = vmul.f32 %v912, 0.2
    %v1041 = vmul.f32 %v913, 0.2
    %v1042 = vmul.f32 %v914, 0.2
    %v1043 = vmul.f32 %v915, 0.2
    %v1044 = vmul.f32 %v916, 0.2
    %v1045 = vmul.f32 %v917, 0.2
    %v1046 = vmul.f32 %v918, 0.2
    %v1047 = vmul.f32 %v919, 0.2
    %v1048 = vmul.f32 %v920, 0.2
    %v1049 = vmul.f32 %v921, 0.2
    %v1050 = vmul.f32 %v922, 0.2
    %v1051 = vmul.f32 %v923, 0.2
    %v1052 = vmul.f32 %v924, 0.2
    %v1053 = vmul.f32 %v925, 0.2
    %v1054 = vmul.f32 %v926, 0.2
    %v1055 = vmul.f32 %v927, 0.2
    %v1056 = vmul.f32 %v928, 0.2
    %v1057 = vmul.f32 %v929, 0.2
    %v1058 = vmul.f32 %v930, 0.2
    %v1059 = vmul.f32 %v931, 0.2
    %v1060 = vmul.f32 %v932, 0.2
    %v1061 = vmul.f32 %v933, 0.2
    %v1062 = vmul.f32 %v934, 0.2
    %v1063 = vmul.f32 %v935, 0.2
    %v1064 = vmul.f32 %v936, 0.2
    %v1065 = vmul.f32 %v937, 0.2
    %v1066 = vmul.f32 %v938, 0.2
    %v1067 = vmul.f32 %v939, 0.2
    %v1068 = vmul.f32 %v940, 0.2
    %v1069 = vmul.f32 %v941, 0.2
    %v1070 = vmul.f32 %v942, 0.2
    %v1071 = vmul.f32 %v943, 0.2
    %v1072 = vmul.f32 %v944, 0.2
    %v1073 = vmul.f32 %v945, 0.2
    %v1074 = vmul.f32 %v946, 0.2
    %v1075 = vmul.f32 %v947, 0.2
    %v1076 = vmul.f32 %v948, 0.2
    %v1077 = vmul.f32 %v949, 0.2
    %v1078 = vmul.f32 %v950, 0.2
    %v1079 = vmul.f32 %v951, 0.2
    %v1080 = vmul.f32 %v952, 0.2
    %v1081 = vmul.f32 %v953, 0.2
    %v1082 = vmul.f32 %v954, 0.2
    %v1083 = vmul.f32 %v955, 0.2
    %v1084 = vmul.f32 %v956, 0.2
    %v1085 = vmul.f32 %v957, 0.2
    %v1086 = vmul.f32 %v958, 0.2
    %v1087 = vmul.f32 %v959, 0.2
    %v1088 = vmul.f32 %v960, 0.2
    %v1089 = vmul.f32 %v961, 0.2
    %v1090 = vmul.f32 %v962, 0.2
    %v1091 = vmul.f32 %v963, 0.2
    %v1092 = vmul.f32 %v964, 0.2
    %v1093 = vmul.f32 %v965, 0.2
    %v1094 = vmul.f32 %v966, 0.2
    %v1095 = vmul.f32 %v967, 0.2
    %v1096 = vmul.f32 %v968, 0.2
    %v1097 = vmul.f32 %v969, 0.2
    %v1098 = vmul.f32 %v970, 0.2
    %v1099 = vmul.f32 %v971, 0.2
    %v1100 = vmul.f32 %v972, 0.2
    %v1101 = vsel %vm973, %v909, %v1037
    %v1102 = vsel %vm974, %v910, %v1038
    %v1103 = vsel %vm975, %v911, %v1039
    %v1104 = vsel %vm976, %v912, %v1040
    %v1105 = vsel %vm977, %v913, %v1041
    %v1106 = vsel %vm978, %v914, %v1042
    %v1107 = vsel %vm979, %v915, %v1043
    %v1108 = vsel %vm980, %v916, %v1044
    %v1109 = vsel %vm981, %v917, %v1045
    %v1110 = vsel %vm982, %v918, %v1046
    %v1111 = vsel %vm983, %v919, %v1047
    %v1112 = vsel %vm984, %v920, %v1048
    %v1113 = vsel %vm985, %v921, %v1049
    %v1114 = vsel %vm986, %v922, %v1050
    %v1115 = vsel %vm987, %v923, %v1051
    %v1116 = vsel %vm988, %v924, %v1052
    %v1117 = vsel %vm989, %v925, %v1053
    %v1118 = vsel %vm990, %v926, %v1054
    %v1119 = vsel %vm991, %v927, %v1055
    %v1120 = vsel %vm992, %v928, %v1056
    %v1121 = vsel %vm993, %v929, %v1057
    %v1122 = vsel %vm994, %v930, %v1058
    %v1123 = vsel %vm995, %v931, %v1059
    %v1124 = vsel %vm996, %v932, %v1060
    %v1125 = vsel %vm997, %v933, %v1061
    %v1126 = vsel %vm998, %v934, %v1062
    %v1127 = vsel %vm999, %v935, %v1063
    %v1128 = vsel %vm1000, %v936, %v1064
    %v1129 = vsel %vm1001, %v937, %v1065
    %v1130 = vsel %vm1002, %v938, %v1066
    %v1131 = vsel %vm1003, %v939, %v1067
    %v1132 = vsel %vm1004, %v940, %v1068
    %v1133 = vsel %vm1005, %v941, %v1069
    %v1134 = vsel %vm1006, %v942, %v1070
    %v1135 = vsel %vm1007, %v943, %v1071
    %v1136 = vsel %vm1008, %v944, %v1072
    %v1137 = vsel %vm1009, %v945, %v1073
    %v1138 = vsel %vm1010, %v946, %v1074
    %v1139 = vsel %vm1011, %v947, %v1075
    %v1140 = vsel %vm1012, %v948, %v1076
    %v1141 = vsel %vm1013, %v949, %v1077
    %v1142 = vsel %vm1014, %v950, %v1078
    %v1143 = vsel %vm1015, %v951, %v1079
    %v1144 = vsel %vm1016, %v952, %v1080
    %v1145 = vsel %vm1017, %v953, %v1081
    %v1146 = vsel %vm1018, %v954, %v1082
    %v1147 = vsel %vm1019, %v955, %v1083
    %v1148 = vsel %vm1020, %v956, %v1084
    %v1149 = vsel %vm1021, %v957, %v1085
    %v1150 = vsel %vm1022, %v958, %v1086
    %v1151 = vsel %vm1023, %v959, %v1087
    %v1152 = vsel %vm1024, %v960, %v1088
    %v1153 = vsel %vm1025, %v961, %v1089
    %v1154 = vsel %vm1026, %v962, %v1090
    %v1155 = vsel %vm1027, %v963, %v1091
    %v1156 = vsel %vm1028, %v964, %v1092
    %v1157 = vsel %vm1029, %v965, %v1093
    %v1158 = vsel %vm1030, %v966, %v1094
    %v1159 = vsel %vm1031, %v967, %v1095
    %v1160 = vsel %vm1032, %v968, %v1096
    %v1161 = vsel %vm1033, %v969, %v1097
    %v1162 = vsel %vm1034, %v970, %v1098
    %v1163 = vsel %vm1035, %v971, %v1099
    %v1164 = vsel %vm1036, %v972, %v1100
    %v1165 = vpack.c.bf16 %v1102, %v1101
    %v1166 = vpack.c.bf16 %v1104, %v1103
    %v1167 = vpack.c.bf16 %v1106, %v1105
    %v1168 = vpack.c.bf16 %v1108, %v1107
    %v1169 = vpack.c.bf16 %v1110, %v1109
    %v1170 = vpack.c.bf16 %v1112, %v1111
    %v1171 = vpack.c.bf16 %v1114, %v1113
    %v1172 = vpack.c.bf16 %v1116, %v1115
    %v1173 = vpack.c.bf16 %v1118, %v1117
    %v1174 = vpack.c.bf16 %v1120, %v1119
    %v1175 = vpack.c.bf16 %v1122, %v1121
    %v1176 = vpack.c.bf16 %v1124, %v1123
    %v1177 = vpack.c.bf16 %v1126, %v1125
    %v1178 = vpack.c.bf16 %v1128, %v1127
    %v1179 = vpack.c.bf16 %v1130, %v1129
    %v1180 = vpack.c.bf16 %v1132, %v1131
    %v1181 = vpack.c.bf16 %v1134, %v1133
    %v1182 = vpack.c.bf16 %v1136, %v1135
    %v1183 = vpack.c.bf16 %v1138, %v1137
    %v1184 = vpack.c.bf16 %v1140, %v1139
    %v1185 = vpack.c.bf16 %v1142, %v1141
    %v1186 = vpack.c.bf16 %v1144, %v1143
    %v1187 = vpack.c.bf16 %v1146, %v1145
    %v1188 = vpack.c.bf16 %v1148, %v1147
    %v1189 = vpack.c.bf16 %v1150, %v1149
    %v1190 = vpack.c.bf16 %v1152, %v1151
    %v1191 = vpack.c.bf16 %v1154, %v1153
    %v1192 = vpack.c.bf16 %v1156, %v1155
    %v1193 = vpack.c.bf16 %v1158, %v1157
    %v1194 = vpack.c.bf16 %v1160, %v1159
    %v1195 = vpack.c.bf16 %v1162, %v1161
    %v1196 = vpack.c.bf16 %v1164, %v1163
    %v1229 = vunpack.c.l.b16 %v1165
    %v1230 = vunpack.c.h.b16 %v1165
    %v1231 = vunpack.c.l.b16 %v1166
    %v1232 = vunpack.c.h.b16 %v1166
    %v1233 = vunpack.c.l.b16 %v1167
    %v1234 = vunpack.c.h.b16 %v1167
    %v1235 = vunpack.c.l.b16 %v1168
    %v1236 = vunpack.c.h.b16 %v1168
    %v1237 = vunpack.c.l.b16 %v1169
    %v1238 = vunpack.c.h.b16 %v1169
    %v1239 = vunpack.c.l.b16 %v1170
    %v1240 = vunpack.c.h.b16 %v1170
    %v1241 = vunpack.c.l.b16 %v1171
    %v1242 = vunpack.c.h.b16 %v1171
    %v1243 = vunpack.c.l.b16 %v1172
    %v1244 = vunpack.c.h.b16 %v1172
    %v1245 = vunpack.c.l.b16 %v1173
    %v1246 = vunpack.c.h.b16 %v1173
    %v1247 = vunpack.c.l.b16 %v1174
    %v1248 = vunpack.c.h.b16 %v1174
    %v1249 = vunpack.c.l.b16 %v1175
    %v1250 = vunpack.c.h.b16 %v1175
    %v1251 = vunpack.c.l.b16 %v1176
    %v1252 = vunpack.c.h.b16 %v1176
    %v1253 = vunpack.c.l.b16 %v1177
    %v1254 = vunpack.c.h.b16 %v1177
    %v1255 = vunpack.c.l.b16 %v1178
    %v1256 = vunpack.c.h.b16 %v1178
    %v1257 = vunpack.c.l.b16 %v1179
    %v1258 = vunpack.c.h.b16 %v1179
    %v1259 = vunpack.c.l.b16 %v1180
    %v1260 = vunpack.c.h.b16 %v1180
    %v1261 = vunpack.c.l.b16 %v1181
    %v1262 = vunpack.c.h.b16 %v1181
    %v1263 = vunpack.c.l.b16 %v1182
    %v1264 = vunpack.c.h.b16 %v1182
    %v1265 = vunpack.c.l.b16 %v1183
    %v1266 = vunpack.c.h.b16 %v1183
    %v1267 = vunpack.c.l.b16 %v1184
    %v1268 = vunpack.c.h.b16 %v1184
    %v1269 = vunpack.c.l.b16 %v1185
    %v1270 = vunpack.c.h.b16 %v1185
    %v1271 = vunpack.c.l.b16 %v1186
    %v1272 = vunpack.c.h.b16 %v1186
    %v1273 = vunpack.c.l.b16 %v1187
    %v1274 = vunpack.c.h.b16 %v1187
    %v1275 = vunpack.c.l.b16 %v1188
    %v1276 = vunpack.c.h.b16 %v1188
    %v1277 = vunpack.c.l.b16 %v1189
    %v1278 = vunpack.c.h.b16 %v1189
    %v1279 = vunpack.c.l.b16 %v1190
    %v1280 = vunpack.c.h.b16 %v1190
    %v1281 = vunpack.c.l.b16 %v1191
    %v1282 = vunpack.c.h.b16 %v1191
    %v1283 = vunpack.c.l.b16 %v1192
    %v1284 = vunpack.c.h.b16 %v1192
    %v1285 = vunpack.c.l.b16 %v1193
    %v1286 = vunpack.c.h.b16 %v1193
    %v1287 = vunpack.c.l.b16 %v1194
    %v1288 = vunpack.c.h.b16 %v1194
    %v1289 = vunpack.c.l.b16 %v1195
    %v1290 = vunpack.c.h.b16 %v1195
    %v1291 = vunpack.c.l.b16 %v1196
    %v1292 = vunpack.c.h.b16 %v1196
    %v1293 = vpack.c.b16 %v1229, %v1229
    %v1294 = vpack.c.b16 %v1230, %v1230
    %v1295 = vpack.c.b16 %v1231, %v1231
    %v1296 = vpack.c.b16 %v1232, %v1232
    %v1297 = vpack.c.b16 %v1233, %v1233
    %v1298 = vpack.c.b16 %v1234, %v1234
    %v1299 = vpack.c.b16 %v1235, %v1235
    %v1300 = vpack.c.b16 %v1236, %v1236
    %v1301 = vpack.c.b16 %v1237, %v1237
    %v1302 = vpack.c.b16 %v1238, %v1238
    %v1303 = vpack.c.b16 %v1239, %v1239
    %v1304 = vpack.c.b16 %v1240, %v1240
    %v1305 = vpack.c.b16 %v1241, %v1241
    %v1306 = vpack.c.b16 %v1242, %v1242
    %v1307 = vpack.c.b16 %v1243, %v1243
    %v1308 = vpack.c.b16 %v1244, %v1244
    %v1309 = vpack.c.b16 %v1245, %v1245
    %v1310 = vpack.c.b16 %v1246, %v1246
    %v1311 = vpack.c.b16 %v1247, %v1247
    %v1312 = vpack.c.b16 %v1248, %v1248
    %v1313 = vpack.c.b16 %v1249, %v1249
    %v1314 = vpack.c.b16 %v1250, %v1250
    %v1315 = vpack.c.b16 %v1251, %v1251
    %v1316 = vpack.c.b16 %v1252, %v1252
    %v1317 = vpack.c.b16 %v1253, %v1253
    %v1318 = vpack.c.b16 %v1254, %v1254
    %v1319 = vpack.c.b16 %v1255, %v1255
    %v1320 = vpack.c.b16 %v1256, %v1256
    %v1321 = vpack.c.b16 %v1257, %v1257
    %v1322 = vpack.c.b16 %v1258, %v1258
    %v1323 = vpack.c.b16 %v1259, %v1259
    %v1324 = vpack.c.b16 %v1260, %v1260
    %v1325 = vpack.c.b16 %v1261, %v1261
    %v1326 = vpack.c.b16 %v1262, %v1262
    %v1327 = vpack.c.b16 %v1263, %v1263
    %v1328 = vpack.c.b16 %v1264, %v1264
    %v1329 = vpack.c.b16 %v1265, %v1265
    %v1330 = vpack.c.b16 %v1266, %v1266
    %v1331 = vpack.c.b16 %v1267, %v1267
    %v1332 = vpack.c.b16 %v1268, %v1268
    %v1333 = vpack.c.b16 %v1269, %v1269
    %v1334 = vpack.c.b16 %v1270, %v1270
    %v1335 = vpack.c.b16 %v1271, %v1271
    %v1336 = vpack.c.b16 %v1272, %v1272
    %v1337 = vpack.c.b16 %v1273, %v1273
    %v1338 = vpack.c.b16 %v1274, %v1274
    %v1339 = vpack.c.b16 %v1275, %v1275
    %v1340 = vpack.c.b16 %v1276, %v1276
    %v1341 = vpack.c.b16 %v1277, %v1277
    %v1342 = vpack.c.b16 %v1278, %v1278
    %v1343 = vpack.c.b16 %v1279, %v1279
    %v1344 = vpack.c.b16 %v1280, %v1280
    %v1345 = vpack.c.b16 %v1281, %v1281
    %v1346 = vpack.c.b16 %v1282, %v1282
    %v1347 = vpack.c.b16 %v1283, %v1283
    %v1348 = vpack.c.b16 %v1284, %v1284
    %v1349 = vpack.c.b16 %v1285, %v1285
    %v1350 = vpack.c.b16 %v1286, %v1286
    %v1351 = vpack.c.b16 %v1287, %v1287
    %v1352 = vpack.c.b16 %v1288, %v1288
    %v1353 = vpack.c.b16 %v1289, %v1289
    %v1354 = vpack.c.b16 %v1290, %v1290
    %v1355 = vpack.c.b16 %v1291, %v1291
    %v1356 = vpack.c.b16 %v1292, %v1292
    %1421 = vst [vmem:[%s2] sm:$0xf] %v1293
    %1422 = vst [vmem:[%s2 + $0x4] sm:$0xf] %v1294
    %1423 = vst [vmem:[%s2 + $0x8] sm:$0xf] %v1295
    %1424 = vst [vmem:[%s2 + $0xc] sm:$0xf] %v1296
    %1425 = vst [vmem:[%s2 + $0x10] sm:$0xf] %v1297
    %1426 = vst [vmem:[%s2 + $0x14] sm:$0xf] %v1298
    %1427 = vst [vmem:[%s2 + $0x18] sm:$0xf] %v1299
    %1428 = vst [vmem:[%s2 + $0x1c] sm:$0xf] %v1300
    %1429 = vst [vmem:[%s2 + $0x20] sm:$0xf] %v1301
    %1430 = vst [vmem:[%s2 + $0x24] sm:$0xf] %v1302
    %1431 = vst [vmem:[%s2 + $0x28] sm:$0xf] %v1303
    %1432 = vst [vmem:[%s2 + $0x2c] sm:$0xf] %v1304
    %1433 = vst [vmem:[%s2 + $0x30] sm:$0xf] %v1305
    %1434 = vst [vmem:[%s2 + $0x34] sm:$0xf] %v1306
    %1435 = vst [vmem:[%s2 + $0x38] sm:$0xf] %v1307
    %1436 = vst [vmem:[%s2 + $0x3c] sm:$0xf] %v1308
    %1437 = vst [vmem:[%s2 + $0x40] sm:$0xf] %v1309
    %1438 = vst [vmem:[%s2 + $0x44] sm:$0xf] %v1310
    %1439 = vst [vmem:[%s2 + $0x48] sm:$0xf] %v1311
    %1440 = vst [vmem:[%s2 + $0x4c] sm:$0xf] %v1312
    %1441 = vst [vmem:[%s2 + $0x50] sm:$0xf] %v1313
    %1442 = vst [vmem:[%s2 + $0x54] sm:$0xf] %v1314
    %1443 = vst [vmem:[%s2 + $0x58] sm:$0xf] %v1315
    %1444 = vst [vmem:[%s2 + $0x5c] sm:$0xf] %v1316
    %1445 = vst [vmem:[%s2 + $0x60] sm:$0xf] %v1317
    %1446 = vst [vmem:[%s2 + $0x64] sm:$0xf] %v1318
    %1447 = vst [vmem:[%s2 + $0x68] sm:$0xf] %v1319
    %1448 = vst [vmem:[%s2 + $0x6c] sm:$0xf] %v1320
    %1449 = vst [vmem:[%s2 + $0x70] sm:$0xf] %v1321
    %1450 = vst [vmem:[%s2 + $0x74] sm:$0xf] %v1322
    %1451 = vst [vmem:[%s2 + $0x78] sm:$0xf] %v1323
    %1452 = vst [vmem:[%s2 + $0x7c] sm:$0xf] %v1324
    %1453 = vst [vmem:[%s2 + $0x80] sm:$0xf] %v1325
    %1454 = vst [vmem:[%s2 + $0x84] sm:$0xf] %v1326
    %1455 = vst [vmem:[%s2 + $0x88] sm:$0xf] %v1327
    %1456 = vst [vmem:[%s2 + $0x8c] sm:$0xf] %v1328
    %1457 = vst [vmem:[%s2 + $0x90] sm:$0xf] %v1329
    %1458 = vst [vmem:[%s2 + $0x94] sm:$0xf] %v1330
    %1459 = vst [vmem:[%s2 + $0x98] sm:$0xf] %v1331
    %1460 = vst [vmem:[%s2 + $0x9c] sm:$0xf] %v1332
    %1461 = vst [vmem:[%s2 + $0xa0] sm:$0xf] %v1333
    %1462 = vst [vmem:[%s2 + $0xa4] sm:$0xf] %v1334
    %1463 = vst [vmem:[%s2 + $0xa8] sm:$0xf] %v1335
    %1464 = vst [vmem:[%s2 + $0xac] sm:$0xf] %v1336
    %1465 = vst [vmem:[%s2 + $0xb0] sm:$0xf] %v1337
    %1466 = vst [vmem:[%s2 + $0xb4] sm:$0xf] %v1338
    %1467 = vst [vmem:[%s2 + $0xb8] sm:$0xf] %v1339
    %1468 = vst [vmem:[%s2 + $0xbc] sm:$0xf] %v1340
    %1469 = vst [vmem:[%s2 + $0xc0] sm:$0xf] %v1341
    %1470 = vst [vmem:[%s2 + $0xc4] sm:$0xf] %v1342
    %1471 = vst [vmem:[%s2 + $0xc8] sm:$0xf] %v1343
    %1472 = vst [vmem:[%s2 + $0xcc] sm:$0xf] %v1344
    %1473 = vst [vmem:[%s2 + $0xd0] sm:$0xf] %v1345
    %1474 = vst [vmem:[%s2 + $0xd4] sm:$0xf] %v1346
    %1475 = vst [vmem:[%s2 + $0xd8] sm:$0xf] %v1347
    %1476 = vst [vmem:[%s2 + $0xdc] sm:$0xf] %v1348
    %1477 = vst [vmem:[%s2 + $0xe0] sm:$0xf] %v1349
    %1478 = vst [vmem:[%s2 + $0xe4] sm:$0xf] %v1350
    %1479 = vst [vmem:[%s2 + $0xe8] sm:$0xf] %v1351
    %1480 = vst [vmem:[%s2 + $0xec] sm:$0xf] %v1352
    %1481 = vst [vmem:[%s2 + $0xf0] sm:$0xf] %v1353
    %1482 = vst [vmem:[%s2 + $0xf4] sm:$0xf] %v1354
    %1483 = vst [vmem:[%s2 + $0xf8] sm:$0xf] %v1355
    %1484 = vst [vmem:[%s2 + $0xfc] sm:$0xf] %v1356
  $region17: #{discriminator_forward.6} parent=0 // pred_fallthru
    _
  // Predicated region
  $region18: #{discriminator_forward.6} parent=0 // pred_check
    _
  $region19: #{discriminator_forward.6} parent=0 // pred_check_branch
    %1486 = sbr.rel (0) target = $region21
  $region20: #{discriminator_forward.6} parent=0 // pred_region
    _
  $region21: #{discriminator_forward.6} parent=0 // pred_fallthru
    _
  // Predicated region
  $region22: #{discriminator_forward.6} parent=0 // pred_check
    _
  $region23: #{discriminator_forward.6} parent=0 // pred_check_branch
    %1488 = sbr.rel (0) target = $region25
  $region24: #{discriminator_forward.6} parent=0 // pred_region
    _
  $region25: #{discriminator_forward.6} parent=0 // pred_fallthru
    _

// kernel: discriminator_forward.8
$region0: #{discriminator_forward.8}
  #allocation0 [shape = 'u32[]', space=smem, size = 0x4, offset = 0x4, fixed_abs, tag = 'smem constant byte address 0x4 - core index']
  #allocation1 [shape = 'u32[144,128]{1,0:T(1,128)}', space=vmem, size = 0x12000, scoped, tag = 'internal scratch']
  %s0 = inlined_call_operand.vmem [shape: f32[128,256], index: 0, kind: input, shape index: {}]
  %s1 = inlined_call_operand.vmem [shape: f32[1,256], index: 1, kind: input, shape index: {}]
  %s2 = inlined_call_operand.vmem [shape: f32[1,256], index: 2, kind: input, shape index: {}]
  %s3 = inlined_call_operand.vmem [shape: bf16[128,256], index: 3, kind: output, shape index: {}]
  %s4 = sld [smem:[#allocation0]]
  $region22: #{discriminator_forward.8} parent=0
    _
  %s6 = ssub.s32 1, %s4
  %s7 = scalar_select 0, %s6, %s4
  // Predicated region
  $region2: #{discriminator_forward.8} parent=0 // pred_check
    _
  $region3: #{discriminator_forward.8} parent=0 // pred_check_branch
    %9 = sbr.rel (0) target = $region5
  $region4: #{discriminator_forward.8} parent=0 // pred_region
    _
  $region5: #{discriminator_forward.8} parent=0 // pred_fallthru
    _
  // Predicated region
  $region6: #{discriminator_forward.8} parent=0 // pred_check
    _
  $region7: #{discriminator_forward.8} parent=0 // pred_check_branch
    %11 = sbr.rel (0) target = $region9
  $region8: #{discriminator_forward.8} parent=0 // pred_region
    _
  $region9: #{discriminator_forward.8} parent=0 // pred_fallthru
    _
  // Predicated region
  $region10: #{discriminator_forward.8} parent=0 // pred_check
    _
  $region11: #{discriminator_forward.8} parent=0 // pred_check_branch
    %13 = sbr.rel (0) target = $region13
  $region12: #{discriminator_forward.8} parent=0 // pred_region
    _
  $region13: #{discriminator_forward.8} parent=0 // pred_fallthru
    _
  %v14 = vld [vmem:[%s0] sm:$0xff]
  %v15 = vld [vmem:[%s0 + $0x8] sm:$0xff]
  %v16 = vld [vmem:[%s0 + $0x10] sm:$0xff]
  %v17 = vld [vmem:[%s0 + $0x18] sm:$0xff]
  %v18 = vld [vmem:[%s0 + $0x20] sm:$0xff]
  %v19 = vld [vmem:[%s0 + $0x28] sm:$0xff]
  %v20 = vld [vmem:[%s0 + $0x30] sm:$0xff]
  %v21 = vld [vmem:[%s0 + $0x38] sm:$0xff]
  %v22 = vld [vmem:[%s0 + $0x40] sm:$0xff]
  %v23 = vld [vmem:[%s0 + $0x48] sm:$0xff]
  %v24 = vld [vmem:[%s0 + $0x50] sm:$0xff]
  %v25 = vld [vmem:[%s0 + $0x58] sm:$0xff]
  %v26 = vld [vmem:[%s0 + $0x60] sm:$0xff]
  %v27 = vld [vmem:[%s0 + $0x68] sm:$0xff]
  %v28 = vld [vmem:[%s0 + $0x70] sm:$0xff]
  %v29 = vld [vmem:[%s0 + $0x78] sm:$0xff]
  %v30 = vld [vmem:[%s0 + $0x80] sm:$0xff]
  %v31 = vld [vmem:[%s0 + $0x88] sm:$0xff]
  %v32 = vld [vmem:[%s0 + $0x90] sm:$0xff]
  %v33 = vld [vmem:[%s0 + $0x98] sm:$0xff]
  %v34 = vld [vmem:[%s0 + $0xa0] sm:$0xff]
  %v35 = vld [vmem:[%s0 + $0xa8] sm:$0xff]
  %v36 = vld [vmem:[%s0 + $0xb0] sm:$0xff]
  %v37 = vld [vmem:[%s0 + $0xb8] sm:$0xff]
  %v38 = vld [vmem:[%s0 + $0xc0] sm:$0xff]
  %v39 = vld [vmem:[%s0 + $0xc8] sm:$0xff]
  %v40 = vld [vmem:[%s0 + $0xd0] sm:$0xff]
  %v41 = vld [vmem:[%s0 + $0xd8] sm:$0xff]
  %v42 = vld [vmem:[%s0 + $0xe0] sm:$0xff]
  %v43 = vld [vmem:[%s0 + $0xe8] sm:$0xff]
  %v44 = vld [vmem:[%s0 + $0xf0] sm:$0xff]
  %v45 = vld [vmem:[%s0 + $0xf8] sm:$0xff]
  %v46 = vld [vmem:[%s1] sm:$0x3]
  %v48 = vlaneseq
  %v49 = vshrl.u32 %v48, 7
  %v50 = vsub.s32 0, %v49
  %v51 = vrot.slane %v46, %v50
  %v52 = vlaneseq
  %v53 = vshrl.u32 %v52, 7
  %v54 = vsub.s32 1, %v53
  %v55 = vrot.slane %v46, %v54
  %v58 = vmul.f32 %v14, %v51
  %v59 = vmul.f32 %v15, %v55
  %v60 = vmul.f32 %v16, %v51
  %v61 = vmul.f32 %v17, %v55
  %v62 = vmul.f32 %v18, %v51
  %v63 = vmul.f32 %v19, %v55
  %v64 = vmul.f32 %v20, %v51
  %v65 = vmul.f32 %v21, %v55
  %v66 = vmul.f32 %v22, %v51
  %v67 = vmul.f32 %v23, %v55
  %v68 = vmul.f32 %v24, %v51
  %v69 = vmul.f32 %v25, %v55
  %v70 = vmul.f32 %v26, %v51
  %v71 = vmul.f32 %v27, %v55
  %v72 = vmul.f32 %v28, %v51
  %v73 = vmul.f32 %v29, %v55
  %v74 = vmul.f32 %v30, %v51
  %v75 = vmul.f32 %v31, %v55
  %v76 = vmul.f32 %v32, %v51
  %v77 = vmul.f32 %v33, %v55
  %v78 = vmul.f32 %v34, %v51
  %v79 = vmul.f32 %v35, %v55
  %v80 = vmul.f32 %v36, %v51
  %v81 = vmul.f32 %v37, %v55
  %v82 = vmul.f32 %v38, %v51
  %v83 = vmul.f32 %v39, %v55
  %v84 = vmul.f32 %v40, %v51
  %v85 = vmul.f32 %v41, %v55
  %v86 = vmul.f32 %v42, %v51
  %v87 = vmul.f32 %v43, %v55
  %v88 = vmul.f32 %v44, %v51
  %v89 = vmul.f32 %v45, %v55
  %v90 = vld [vmem:[%s2] sm:$0x3]
  %v92 = vlaneseq
  %v93 = vshrl.u32 %v92, 7
  %v94 = vsub.s32 0, %v93
  %v95 = vrot.slane %v90, %v94
  %v96 = vlaneseq
  %v97 = vshrl.u32 %v96, 7
  %v98 = vsub.s32 1, %v97
  %v99 = vrot.slane %v90, %v98
  %v102 = vadd.f32 %v58, %v95
  %v103 = vadd.f32 %v59, %v99
  %v104 = vadd.f32 %v60, %v95
  %v105 = vadd.f32 %v61, %v99
  %v106 = vadd.f32 %v62, %v95
  %v107 = vadd.f32 %v63, %v99
  %v108 = vadd.f32 %v64, %v95
  %v109 = vadd.f32 %v65, %v99
  %v110 = vadd.f32 %v66, %v95
  %v111 = vadd.f32 %v67, %v99
  %v112 = vadd.f32 %v68, %v95
  %v113 = vadd.f32 %v69, %v99
  %v114 = vadd.f32 %v70, %v95
  %v115 = vadd.f32 %v71, %v99
  %v116 = vadd.f32 %v72, %v95
  %v117 = vadd.f32 %v73, %v99
  %v118 = vadd.f32 %v74, %v95
  %v119 = vadd.f32 %v75, %v99
  %v120 = vadd.f32 %v76, %v95
  %v121 = vadd.f32 %v77, %v99
  %v122 = vadd.f32 %v78, %v95
  %v123 = vadd.f32 %v79, %v99
  %v124 = vadd.f32 %v80, %v95
  %v125 = vadd.f32 %v81, %v99
  %v126 = vadd.f32 %v82, %v95
  %v127 = vadd.f32 %v83, %v99
  %v128 = vadd.f32 %v84, %v95
  %v129 = vadd.f32 %v85, %v99
  %v130 = vadd.f32 %v86, %v95
  %v131 = vadd.f32 %v87, %v99
  %v132 = vadd.f32 %v88, %v95
  %v133 = vadd.f32 %v89, %v99
  %vm134 = vcmp.ge.f32.partialorder %v102, 0.0
  %vm135 = vcmp.ge.f32.partialorder %v103, 0.0
  %vm136 = vcmp.ge.f32.partialorder %v104, 0.0
  %vm137 = vcmp.ge.f32.partialorder %v105, 0.0
  %vm138 = vcmp.ge.f32.partialorder %v106, 0.0
  %vm139 = vcmp.ge.f32.partialorder %v107, 0.0
  %vm140 = vcmp.ge.f32.partialorder %v108, 0.0
  %vm141 = vcmp.ge.f32.partialorder %v109, 0.0
  %vm142 = vcmp.ge.f32.partialorder %v110, 0.0
  %vm143 = vcmp.ge.f32.partialorder %v111, 0.0
  %vm144 = vcmp.ge.f32.partialorder %v112, 0.0
  %vm145 = vcmp.ge.f32.partialorder %v113, 0.0
  %vm146 = vcmp.ge.f32.partialorder %v114, 0.0
  %vm147 = vcmp.ge.f32.partialorder %v115, 0.0
  %vm148 = vcmp.ge.f32.partialorder %v116, 0.0
  %vm149 = vcmp.ge.f32.partialorder %v117, 0.0
  %vm150 = vcmp.ge.f32.partialorder %v118, 0.0
  %vm151 = vcmp.ge.f32.partialorder %v119, 0.0
  %vm152 = vcmp.ge.f32.partialorder %v120, 0.0
  %vm153 = vcmp.ge.f32.partialorder %v121, 0.0
  %vm154 = vcmp.ge.f32.partialorder %v122, 0.0
  %vm155 = vcmp.ge.f32.partialorder %v123, 0.0
  %vm156 = vcmp.ge.f32.partialorder %v124, 0.0
  %vm157 = vcmp.ge.f32.partialorder %v125, 0.0
  %vm158 = vcmp.ge.f32.partialorder %v126, 0.0
  %vm159 = vcmp.ge.f32.partialorder %v127, 0.0
  %vm160 = vcmp.ge.f32.partialorder %v128, 0.0
  %vm161 = vcmp.ge.f32.partialorder %v129, 0.0
  %vm162 = vcmp.ge.f32.partialorder %v130, 0.0
  %vm163 = vcmp.ge.f32.partialorder %v131, 0.0
  %vm164 = vcmp.ge.f32.partialorder %v132, 0.0
  %vm165 = vcmp.ge.f32.partialorder %v133, 0.0
  %v166 = vmul.f32 %v102, 0.2
  %v167 = vmul.f32 %v103, 0.2
  %v168 = vmul.f32 %v104, 0.2
  %v169 = vmul.f32 %v105, 0.2
  %v170 = vmul.f32 %v106, 0.2
  %v171 = vmul.f32 %v107, 0.2
  %v172 = vmul.f32 %v108, 0.2
  %v173 = vmul.f32 %v109, 0.2
  %v174 = vmul.f32 %v110, 0.2
  %v175 = vmul.f32 %v111, 0.2
  %v176 = vmul.f32 %v112, 0.2
  %v177 = vmul.f32 %v113, 0.2
  %v178 = vmul.f32 %v114, 0.2
  %v179 = vmul.f32 %v115, 0.2
  %v180 = vmul.f32 %v116, 0.2
  %v181 = vmul.f32 %v117, 0.2
  %v182 = vmul.f32 %v118, 0.2
  %v183 = vmul.f32 %v119, 0.2
  %v184 = vmul.f32 %v120, 0.2
  %v185 = vmul.f32 %v121, 0.2
  %v186 = vmul.f32 %v122, 0.2
  %v187 = vmul.f32 %v123, 0.2
  %v188 = vmul.f32 %v124, 0.2
  %v189 = vmul.f32 %v125, 0.2
  %v190 = vmul.f32 %v126, 0.2
  %v191 = vmul.f32 %v127, 0.2
  %v192 = vmul.f32 %v128, 0.2
  %v193 = vmul.f32 %v129, 0.2
  %v194 = vmul.f32 %v130, 0.2
  %v195 = vmul.f32 %v131, 0.2
  %v196 = vmul.f32 %v132, 0.2
  %v197 = vmul.f32 %v133, 0.2
  %v198 = vsel %vm134, %v102, %v166
  %v199 = vsel %vm135, %v103, %v167
  %v200 = vsel %vm136, %v104, %v168
  %v201 = vsel %vm137, %v105, %v169
  %v202 = vsel %vm138, %v106, %v170
  %v203 = vsel %vm139, %v107, %v171
  %v204 = vsel %vm140, %v108, %v172
  %v205 = vsel %vm141, %v109, %v173
  %v206 = vsel %vm142, %v110, %v174
  %v207 = vsel %vm143, %v111, %v175
  %v208 = vsel %vm144, %v112, %v176
  %v209 = vsel %vm145, %v113, %v177
  %v210 = vsel %vm146, %v114, %v178
  %v211 = vsel %vm147, %v115, %v179
  %v212 = vsel %vm148, %v116, %v180
  %v213 = vsel %vm149, %v117, %v181
  %v214 = vsel %vm150, %v118, %v182
  %v215 = vsel %vm151, %v119, %v183
  %v216 = vsel %vm152, %v120, %v184
  %v217 = vsel %vm153, %v121, %v185
  %v218 = vsel %vm154, %v122, %v186
  %v219 = vsel %vm155, %v123, %v187
  %v220 = vsel %vm156, %v124, %v188
  %v221 = vsel %vm157, %v125, %v189
  %v222 = vsel %vm158, %v126, %v190
  %v223 = vsel %vm159, %v127, %v191
  %v224 = vsel %vm160, %v128, %v192
  %v225 = vsel %vm161, %v129, %v193
  %v226 = vsel %vm162, %v130, %v194
  %v227 = vsel %vm163, %v131, %v195
  %v228 = vsel %vm164, %v132, %v196
  %v229 = vsel %vm165, %v133, %v197
  %v230 = vpack.c.bf16 %v200, %v198
  %v231 = vpack.c.bf16 %v201, %v199
  %v232 = vpack.c.bf16 %v204, %v202
  %v233 = vpack.c.bf16 %v205, %v203
  %v234 = vpack.c.bf16 %v208, %v206
  %v235 = vpack.c.bf16 %v209, %v207
  %v236 = vpack.c.bf16 %v212, %v210
  %v237 = vpack.c.bf16 %v213, %v211
  %v238 = vpack.c.bf16 %v216, %v214
  %v239 = vpack.c.bf16 %v217, %v215
  %v240 = vpack.c.bf16 %v220, %v218
  %v241 = vpack.c.bf16 %v221, %v219
  %v242 = vpack.c.bf16 %v224, %v222
  %v243 = vpack.c.bf16 %v225, %v223
  %v244 = vpack.c.bf16 %v228, %v226
  %v245 = vpack.c.bf16 %v229, %v227
  %v262 = vunpack.c.l.b16 %v230
  %v263 = vunpack.c.l.b16 %v231
  %v264 = vunpack.c.h.b16 %v230
  %v265 = vunpack.c.h.b16 %v231
  %v266 = vunpack.c.l.b16 %v232
  %v267 = vunpack.c.l.b16 %v233
  %v268 = vunpack.c.h.b16 %v232
  %v269 = vunpack.c.h.b16 %v233
  %v270 = vunpack.c.l.b16 %v234
  %v271 = vunpack.c.l.b16 %v235
  %v272 = vunpack.c.h.b16 %v234
  %v273 = vunpack.c.h.b16 %v235
  %v274 = vunpack.c.l.b16 %v236
  %v275 = vunpack.c.l.b16 %v237
  %v276 = vunpack.c.h.b16 %v236
  %v277 = vunpack.c.h.b16 %v237
  %v278 = vunpack.c.l.b16 %v238
  %v279 = vunpack.c.l.b16 %v239
  %v280 = vunpack.c.h.b16 %v238
  %v281 = vunpack.c.h.b16 %v239
  %v282 = vunpack.c.l.b16 %v240
  %v283 = vunpack.c.l.b16 %v241
  %v284 = vunpack.c.h.b16 %v240
  %v285 = vunpack.c.h.b16 %v241
  %v286 = vunpack.c.l.b16 %v242
  %v287 = vunpack.c.l.b16 %v243
  %v288 = vunpack.c.h.b16 %v242
  %v289 = vunpack.c.h.b16 %v243
  %v290 = vunpack.c.l.b16 %v244
  %v291 = vunpack.c.l.b16 %v245
  %v292 = vunpack.c.h.b16 %v244
  %v293 = vunpack.c.h.b16 %v245
  %v294 = vpack.c.b16 %v263, %v262
  %v295 = vpack.c.b16 %v265, %v264
  %v296 = vpack.c.b16 %v267, %v266
  %v297 = vpack.c.b16 %v269, %v268
  %v298 = vpack.c.b16 %v271, %v270
  %v299 = vpack.c.b16 %v273, %v272
  %v300 = vpack.c.b16 %v275, %v274
  %v301 = vpack.c.b16 %v277, %v276
  %v302 = vpack.c.b16 %v279, %v278
  %v303 = vpack.c.b16 %v281, %v280
  %v304 = vpack.c.b16 %v283, %v282
  %v305 = vpack.c.b16 %v285, %v284
  %v306 = vpack.c.b16 %v287, %v286
  %v307 = vpack.c.b16 %v289, %v288
  %v308 = vpack.c.b16 %v291, %v290
  %v309 = vpack.c.b16 %v293, %v292
  %326 = vst [vmem:[%s3] sm:$0xff] %v294
  %327 = vst [vmem:[%s3 + $0x8] sm:$0xff] %v295
  %328 = vst [vmem:[%s3 + $0x10] sm:$0xff] %v296
  %329 = vst [vmem:[%s3 + $0x18] sm:$0xff] %v297
  %330 = vst [vmem:[%s3 + $0x20] sm:$0xff] %v298
  %331 = vst [vmem:[%s3 + $0x28] sm:$0xff] %v299
  %332 = vst [vmem:[%s3 + $0x30] sm:$0xff] %v300
  %333 = vst [vmem:[%s3 + $0x38] sm:$0xff] %v301
  %334 = vst [vmem:[%s3 + $0x40] sm:$0xff] %v302
  %335 = vst [vmem:[%s3 + $0x48] sm:$0xff] %v303
  %336 = vst [vmem:[%s3 + $0x50] sm:$0xff] %v304
  %337 = vst [vmem:[%s3 + $0x58] sm:$0xff] %v305
  %338 = vst [vmem:[%s3 + $0x60] sm:$0xff] %v306
  %339 = vst [vmem:[%s3 + $0x68] sm:$0xff] %v307
  %340 = vst [vmem:[%s3 + $0x70] sm:$0xff] %v308
  %341 = vst [vmem:[%s3 + $0x78] sm:$0xff] %v309
  // Predicated region
  $region14: #{discriminator_forward.8} parent=0 // pred_check
    _
  $region15: #{discriminator_forward.8} parent=0 // pred_check_branch
    %343 = sbr.rel (0) target = $region17
  $region16: #{discriminator_forward.8} parent=0 // pred_region
    _
  $region17: #{discriminator_forward.8} parent=0 // pred_fallthru
    _
  // Predicated region
  $region18: #{discriminator_forward.8} parent=0 // pred_check
    _
  $region19: #{discriminator_forward.8} parent=0 // pred_check_branch
    %345 = sbr.rel (0) target = $region21
  $region20: #{discriminator_forward.8} parent=0 // pred_region
    _
  $region21: #{discriminator_forward.8} parent=0 // pred_fallthru
    _

// kernel: discriminator_forward.7
$region0: #{discriminator_forward.7}
  #allocation0 [shape = 'u32[]', space=smem, size = 0x4, offset = 0x4, fixed_abs, tag = 'smem constant byte address 0x4 - core index']
  #allocation1 [shape = 'u32[144,128]{1,0:T(1,128)}', space=vmem, size = 0x12000, scoped, tag = 'internal scratch']
  #allocation2 [shape = 'f32[128,256]{1,0:T(8,128)}', space=vmem, size = 0x20000, scoped, tag = 'scratch operand']
  %s0 = inlined_call_operand.vmem [shape: bf16[128,2048], index: 0, kind: input, shape index: {}]
  %s1 = inlined_call_operand.vmem [shape: bf16[2048,256], index: 1, kind: input, shape index: {}]
  %s2 = inlined_call_operand.vmem [shape: f32[128,256], index: 2, kind: output, shape index: {0}]
  %s3 = inlined_call_operand.vmem [shape: f32[1,8,256], index: 3, kind: output, shape index: {1}]
  %4 = xla_tuple %s2, %s3
  %s5 = sld [smem:[#allocation0]]
  $region80: #{discriminator_forward.7} parent=0
    _
  %s7 = ssub.s32 1, %s5
  %s8 = scalar_select 0, %s7, %s5
  $region1: #{discriminator_forward.7} parent=0
    #allocation3 [shape = 'u8[262144]{0}', space=vmem, size = 0x40000, scoped, tag = 'input window, operand 0']
    loop: start=0, step=1, limit=6
    $region2: #{discriminator_forward.7} parent=1 // loop_pre_header
      _
    $region3: #{discriminator_forward.7} parent=1 // loop_header
      %s10 = sphi 0, %s14
      %p11 = scmp.ge.s32.totalorder %s10, 6
      %s17 = sphi 0, %s36
      %s18 = sphi 0, %s32
      %s19 = sphi 0, %s28
      %s20 = sphi 0, %s17
      %s21 = sphi 0, %s18
      %s22 = sphi 0, %s19
      %s23 = sphi 0, %s20
      %s24 = sphi 0, %s21
      %s25 = sphi 0, %s22
      %s41 = sphi 0, %s43
      %s44 = sphi 0, %s41
      %s45 = sphi 0, %s44
      %s61 = sphi 0, %s45
      %s69 = sphi 0, %s71
      %s72 = sphi 0, %s69
      %s73 = sphi 0, %s72
      %s89 = sphi 0, %s73
      %s97 = sphi 0, %s99
      %s100 = sphi 0, %s97
      %s101 = sphi 0, %s100
      %s117 = sphi 0, %s101
      %s125 = sphi 0, %s127
      %s128 = sphi 0, %s125
      %s129 = sphi 0, %s128
      %s145 = sphi 0, %s129
    $region4: #{discriminator_forward.7} parent=1 // loop_header_branch
      %13 = sbr.rel (%p11) target = $region8
    $region5: #{discriminator_forward.7} parent=1 // loop_body
      %s15 = ssub.s32 %s10, 1
      %s16 = ssub.s32 %s10, 2
      %s26 = sadd.s32 1, %s19
      %p27 = scmp.ge.s32.totalorder %s26, 4
      %s28 = scalar_select %p27, 0, %s26
      %s29 = sadd.s32 1, %s18
      %s30 = scalar_select %p27, %s29, %s18
      %p31 = scmp.ge.s32.totalorder %s30, 1
      %s32 = scalar_select %p31, 0, %s30
      %s33 = sadd.s32 1, %s17
      %s34 = scalar_select %p31, %s33, %s17
      %p35 = scmp.ge.s32.totalorder %s34, 1
      %s36 = scalar_select %p35, 0, %s34
      %s37 = ssub.s32 %s17, %s36
      %s38 = ssub.s32 %s19, %s28
      %s39 = sor.u32 %s37, %s38
      %p40 = scmp.eq.s32.totalorder %s39, 0
      %s42 = sadd.s32 %s41, 1
      %s43 = scalar_select %p40, %s41, %s42
      %p46 = pneg %p40
      %p47 = scmp.eq.s32.totalorder %s10, 3
      %p48 = por %p46, %p47
      %p49 = scmp.ne.s32.totalorder %s41, %s44
      %p50 = scmp.eq.s32.totalorder %s10, 0
      %p51 = por %p49, %p50
      %p52 = scmp.ne.s32.totalorder %s41, %s44
      %p53 = scmp.eq.s32.totalorder %s15, 3
      %p54 = por %p52, %p53
      %p55 = scmp.ne.s32.totalorder %s44, %s45
      %p56 = scmp.eq.s32.totalorder %s15, 0
      %p57 = por %p55, %p56
      %p58 = scmp.ne.s32.totalorder %s44, %s45
      %p59 = scmp.eq.s32.totalorder %s16, 3
      %p60 = por %p58, %p59
      %p62 = scmp.ne.s32.totalorder %s45, %s61
      %p63 = scmp.eq.s32.totalorder %s16, 0
      %p64 = por %p62, %p63
      %s65 = ssub.s32 %s19, %s28
      %s66 = ssub.s32 %s18, %s32
      %s67 = sor.u32 %s65, %s66
      %p68 = scmp.eq.s32.totalorder %s67, 0
      %s70 = sadd.s32 %s69, 1
      %s71 = scalar_select %p68, %s69, %s70
      %p74 = pneg %p68
      %p75 = scmp.eq.s32.totalorder %s10, 3
      %p76 = por %p74, %p75
      %p77 = scmp.ne.s32.totalorder %s69, %s72
      %p78 = scmp.eq.s32.totalorder %s10, 0
      %p79 = por %p77, %p78
      %p80 = scmp.ne.s32.totalorder %s69, %s72
      %p81 = scmp.eq.s32.totalorder %s15, 3
      %p82 = por %p80, %p81
      %p83 = scmp.ne.s32.totalorder %s72, %s73
      %p84 = scmp.eq.s32.totalorder %s15, 0
      %p85 = por %p83, %p84
      %p86 = scmp.ne.s32.totalorder %s72, %s73
      %p87 = scmp.eq.s32.totalorder %s16, 3
      %p88 = por %p86, %p87
      %p90 = scmp.ne.s32.totalorder %s73, %s89
      %p91 = scmp.eq.s32.totalorder %s16, 0
      %p92 = por %p90, %p91
      %s93 = ssub.s32 %s17, %s36
      %s94 = ssub.s32 %s18, %s32
      %s95 = sor.u32 %s93, %s94
      %p96 = scmp.eq.s32.totalorder %s95, 0
      %s98 = sadd.s32 %s97, 1
      %s99 = scalar_select %p96, %s97, %s98
      %p102 = pneg %p96
      %p103 = scmp.eq.s32.totalorder %s10, 3
      %p104 = por %p102, %p103
      %p105 = scmp.ne.s32.totalorder %s97, %s100
      %p106 = scmp.eq.s32.totalorder %s10, 0
      %p107 = por %p105, %p106
      %p108 = scmp.ne.s32.totalorder %s97, %s100
      %p109 = scmp.eq.s32.totalorder %s15, 3
      %p110 = por %p108, %p109
      %p111 = scmp.ne.s32.totalorder %s100, %s101
      %p112 = scmp.eq.s32.totalorder %s15, 0
      %p113 = por %p111, %p112
      %p114 = scmp.ne.s32.totalorder %s100, %s101
      %p115 = scmp.eq.s32.totalorder %s16, 3
      %p116 = por %p114, %p115
      %p118 = scmp.ne.s32.totalorder %s101, %s117
      %p119 = scmp.eq.s32.totalorder %s16, 0
      %p120 = por %p118, %p119
      %s121 = ssub.s32 %s17, %s36
      %s122 = ssub.s32 %s18, %s32
      %s123 = sor.u32 %s121, %s122
      %p124 = scmp.eq.s32.totalorder %s123, 0
      %s126 = sadd.s32 %s125, 1
      %s127 = scalar_select %p124, %s125, %s126
      %p130 = pneg %p124
      %p131 = scmp.eq.s32.totalorder %s10, 3
      %p132 = por %p130, %p131
      %p133 = scmp.ne.s32.totalorder %s125, %s128
      %p134 = scmp.eq.s32.totalorder %s10, 0
      %p135 = por %p133, %p134
      %p136 = scmp.ne.s32.totalorder %s125, %s128
      %p137 = scmp.eq.s32.totalorder %s15, 3
      %p138 = por %p136, %p137
      %p139 = scmp.ne.s32.totalorder %s128, %s129
      %p140 = scmp.eq.s32.totalorder %s15, 0
      %p141 = por %p139, %p140
      %p142 = scmp.ne.s32.totalorder %s128, %s129
      %p143 = scmp.eq.s32.totalorder %s16, 3
      %p144 = por %p142, %p143
      %p146 = scmp.ne.s32.totalorder %s129, %s145
      %p147 = scmp.eq.s32.totalorder %s16, 0
      %p148 = por %p146, %p147
      %p149 = scmp.le.s32.totalorder 1, %s10
      %p150 = scmp.lt.s32.totalorder %s10, 5
      %p151 = pnand %p149, %p150
      %p152 = pneg %p151
      // Predicated region
      $region9: #{discriminator_forward.7} parent=5 // pred_check
        _
      $region10: #{discriminator_forward.7} parent=5 // pred_check_branch
        %154 = sbr.rel (%p151) target = $region12
      $region11: #{discriminator_forward.7} parent=5 // pred_region
        %s155 = ssub.s32 %s10, 1
      $region12: #{discriminator_forward.7} parent=5 // pred_fallthru
        _
      %p156 = scmp.lt.s32.totalorder %s10, 4
      // Predicated region
      $region13: #{discriminator_forward.7} parent=5 // pred_check
        %p157 = pneg %p156
      $region14: #{discriminator_forward.7} parent=5 // pred_check_branch
        %159 = sbr.rel (%p157) target = $region16
      $region15: #{discriminator_forward.7} parent=5 // pred_region
        // Predicated region
        $region17: #{discriminator_forward.7} parent=15 // pred_check
          %p160 = pneg %p51
        $region18: #{discriminator_forward.7} parent=15 // pred_check_branch
          %162 = sbr.rel (%p160) target = $region20
        $region19: #{discriminator_forward.7} parent=15 // pred_region
          %s163 = sand.u32 %s41, 1
          %s164 = sand.u32 %s41, 1
          %s165 = smul.addr %s164, 256
          %s166 = scalar_lea.vmem [#allocation3], %s165
          %s167 = smul.u32 16, %s17
          %s168 = smul.u32 4, %s19
          %s169 = smul.addr %s167, 16
          %s170 = sadd.s32 %s168, %s169
          %s171 = smul.addr %s170, 4
          %s172 = scalar_lea.vmem %s0, %s171
          // Predicated region
          $region21: #{discriminator_forward.7} parent=19 // pred_check
            _
          $region22: #{discriminator_forward.7} parent=19 // pred_check_branch
            %174 = sbr.rel (0) target = $region24
          $region23: #{discriminator_forward.7} parent=19 // pred_region
            // Predicated region
            $region25: #{discriminator_forward.7} parent=23 // pred_check
              _
            $region26: #{discriminator_forward.7} parent=23 // pred_check_branch
              %176 = sbr.rel (0) target = $region28
            $region27: #{discriminator_forward.7} parent=23 // pred_region
              loop: start=0, step=1, limit=1
              $region29: #{discriminator_forward.7} parent=27 // loop_pre_header
                _
              $region30: #{discriminator_forward.7} parent=27 // loop_header
                %s178 = sphi 0, %s182
                %p179 = scmp.ge.s32.totalorder %s178, 1
                %s183 = sphi %s172, %s172
                %s184 = sphi %s166, %s166
              $region31: #{discriminator_forward.7} parent=27 // loop_header_branch
                %181 = sbr.rel (%p179) target = $region35
              $region32: #{discriminator_forward.7} parent=27 // loop_body
                %v185 = vld [vmem:[%s183] sm:$0xff]
                %186 = vst [vmem:[%s184] sm:$0xff] %v185
                %v187 = vld [vmem:[%s183 + $0x8] sm:$0xff]
                %188 = vst [vmem:[%s184 + $0x8] sm:$0xff] %v187
                %v189 = vld [vmem:[%s183 + $0x40] sm:$0xff]
                %190 = vst [vmem:[%s184 + $0x10] sm:$0xff] %v189
                %v191 = vld [vmem:[%s183 + $0x48] sm:$0xff]
                %192 = vst [vmem:[%s184 + $0x18] sm:$0xff] %v191
                %v193 = vld [vmem:[%s183 + $0x80] sm:$0xff]
                %194 = vst [vmem:[%s184 + $0x20] sm:$0xff] %v193
                %v195 = vld [vmem:[%s183 + $0x88] sm:$0xff]
                %196 = vst [vmem:[%s184 + $0x28] sm:$0xff] %v195
                %v197 = vld [vmem:[%s183 + $0xc0] sm:$0xff]
                %198 = vst [vmem:[%s184 + $0x30] sm:$0xff] %v197
                %v199 = vld [vmem:[%s183 + $0xc8] sm:$0xff]
                %200 = vst [vmem:[%s184 + $0x38] sm:$0xff] %v199
                %v201 = vld [vmem:[%s183 + $0x100] sm:$0xff]
                %202 = vst [vmem:[%s184 + $0x40] sm:$0xff] %v201
                %v203 = vld [vmem:[%s183 + $0x108] sm:$0xff]
                %204 = vst [vmem:[%s184 + $0x48] sm:$0xff] %v203
                %v205 = vld [vmem:[%s183 + $0x140] sm:$0xff]
                %206 = vst [vmem:[%s184 + $0x50] sm:$0xff] %v205
                %v207 = vld [vmem:[%s183 + $0x148] sm:$0xff]
                %208 = vst [vmem:[%s184 + $0x58] sm:$0xff] %v207
                %v209 = vld [vmem:[%s183 + $0x180] sm:$0xff]
                %210 = vst [vmem:[%s184 + $0x60] sm:$0xff] %v209
                %v211 = vld [vmem:[%s183 + $0x188] sm:$0xff]
                %212 = vst [vmem:[%s184 + $0x68] sm:$0xff] %v211
                %v213 = vld [vmem:[%s183 + $0x1c0] sm:$0xff]
                %214 = vst [vmem:[%s184 + $0x70] sm:$0xff] %v213
                %v215 = vld [vmem:[%s183 + $0x1c8] sm:$0xff]
                %216 = vst [vmem:[%s184 + $0x78] sm:$0xff] %v215
                %v217 = vld [vmem:[%s183 + $0x200] sm:$0xff]
                %218 = vst [vmem:[%s184 + $0x80] sm:$0xff] %v217
                %v219 = vld [vmem:[%s183 + $0x208] sm:$0xff]
                %220 = vst [vmem:[%s184 + $0x88] sm:$0xff] %v219
                %v221 = vld [vmem:[%s183 + $0x240] sm:$0xff]
                %222 = vst [vmem:[%s184 + $0x90] sm:$0xff] %v221
                %v223 = vld [vmem:[%s183 + $0x248] sm:$0xff]
                %224 = vst [vmem:[%s184 + $0x98] sm:$0xff] %v223
                %v225 = vld [vmem:[%s183 + $0x280] sm:$0xff]
                %226 = vst [vmem:[%s184 + $0xa0] sm:$0xff] %v225
                %v227 = vld [vmem:[%s183 + $0x288] sm:$0xff]
                %228 = vst [vmem:[%s184 + $0xa8] sm:$0xff] %v227
                %v229 = vld [vmem:[%s183 + $0x2c0] sm:$0xff]
                %230 = vst [vmem:[%s184 + $0xb0] sm:$0xff] %v229
                %v231 = vld [vmem:[%s183 + $0x2c8] sm:$0xff]
                %232 = vst [vmem:[%s184 + $0xb8] sm:$0xff] %v231
                %v233 = vld [vmem:[%s183 + $0x300] sm:$0xff]
                %234 = vst [vmem:[%s184 + $0xc0] sm:$0xff] %v233
                %v235 = vld [vmem:[%s183 + $0x308] sm:$0xff]
                %236 = vst [vmem:[%s184 + $0xc8] sm:$0xff] %v235
                %v237 = vld [vmem:[%s183 + $0x340] sm:$0xff]
                %238 = vst [vmem:[%s184 + $0xd0] sm:$0xff] %v237
                %v239 = vld [vmem:[%s183 + $0x348] sm:$0xff]
                %240 = vst [vmem:[%s184 + $0xd8] sm:$0xff] %v239
                %v241 = vld [vmem:[%s183 + $0x380] sm:$0xff]
                %242 = vst [vmem:[%s184 + $0xe0] sm:$0xff] %v241
                %v243 = vld [vmem:[%s183 + $0x388] sm:$0xff]
                %244 = vst [vmem:[%s184 + $0xe8] sm:$0xff] %v243
                %v245 = vld [vmem:[%s183 + $0x3c0] sm:$0xff]
                %246 = vst [vmem:[%s184 + $0xf0] sm:$0xff] %v245
                %v247 = vld [vmem:[%s183 + $0x3c8] sm:$0xff]
                %248 = vst [vmem:[%s184 + $0xf8] sm:$0xff] %v247
              $region33: #{discriminator_forward.7} parent=27 // loop_footer
                %s182 = sadd.s32 1, %s178
              $region34: #{discriminator_forward.7} parent=27 // loop_footer_branch
                %177 = sbr.rel target = $region30
              $region35: #{discriminator_forward.7} parent=27 // loop_exit
                _
            $region28: #{discriminator_forward.7} parent=23 // pred_fallthru
              _
            // Predicated region
            $region36: #{discriminator_forward.7} parent=23 // pred_check
              _
            $region37: #{discriminator_forward.7} parent=23 // pred_check_branch
              %250 = sbr.rel target = $region39
            $region38: #{discriminator_forward.7} parent=23 // pred_region
              _
            $region39: #{discriminator_forward.7} parent=23 // pred_fallthru
              _
          $region24: #{discriminator_forward.7} parent=19 // pred_fallthru
            _
          %251 = vnop
        $region20: #{discriminator_forward.7} parent=15 // pred_fallthru
          _
        // Predicated region
        $region40: #{discriminator_forward.7} parent=15 // pred_check
          %p252 = pneg %p79
        $region41: #{discriminator_forward.7} parent=15 // pred_check_branch
          %254 = sbr.rel (%p252) target = $region43
        $region42: #{discriminator_forward.7} parent=15 // pred_region
          %s255 = smul.u32 64, %s19
          %s256 = smul.u32 2, %s18
          %p257 = scmp.lt.s32.totalorder %s255, 255
          %s258 = scalar_select %p257, %s255, 255
          %p259 = scmp.lt.s32.totalorder %s256, 1
          %s260 = scalar_select %p259, %s256, 1
          %s261 = smul.addr %s258, 2
          %s262 = sadd.s32 %s260, %s261
          %s263 = smul.addr %s262, 4
          %s264 = scalar_lea.vmem %s1, %s263
          %s265 = smul.u32 64, %s19
          %s266 = smul.u32 2, %s18
        $region43: #{discriminator_forward.7} parent=15 // pred_fallthru
          _
      $region16: #{discriminator_forward.7} parent=5 // pred_fallthru
        _
      %p267 = scmp.le.s32.totalorder 1, %s10
      %p268 = scmp.lt.s32.totalorder %s10, 5
      %p269 = pnand %p267, %p268
      %p270 = pneg %p269
      // Predicated region
      $region44: #{discriminator_forward.7} parent=5 // pred_check
        _
      $region45: #{discriminator_forward.7} parent=5 // pred_check_branch
        %272 = sbr.rel (%p269) target = $region47
      $region46: #{discriminator_forward.7} parent=5 // pred_region
        %s273 = ssub.s32 %s10, 1
        %s274 = sand.u32 %s44, 1
        %s275 = sand.u32 %s44, 1
        %s276 = smul.addr %s275, 256
        %s277 = scalar_lea.vmem [#allocation3], %s276
        // Predicated region
        $region48: #{discriminator_forward.7} parent=46 // pred_check
          %p278 = pneg %p57
        $region49: #{discriminator_forward.7} parent=46 // pred_check_branch
          %280 = sbr.rel (%p278) target = $region51
        $region50: #{discriminator_forward.7} parent=46 // pred_region
          _
        $region51: #{discriminator_forward.7} parent=46 // pred_fallthru
          _
        %s281 = sand.u32 %s44, 1
        %s282 = sand.u32 %s44, 1
        %s283 = smul.addr %s282, 256
        %s284 = scalar_lea.vmem [#allocation3], %s283
        %p285 = pneg %p57
        %p286 = pneg %p54
        %s287 = smul.u32 64, %s22
        %s288 = smul.u32 2, %s21
        %p289 = scmp.lt.s32.totalorder %s287, 255
        %s290 = scalar_select %p289, %s287, 255
        %p291 = scmp.lt.s32.totalorder %s288, 1
        %s292 = scalar_select %p291, %s288, 1
        %s293 = smul.addr %s290, 2
        %s294 = sadd.s32 %s292, %s293
        %s295 = smul.addr %s294, 4
        %s296 = scalar_lea.vmem %s1, %s295
        %p297 = pneg %p85
        %p298 = pneg %p82
        %p299 = pneg %p113
        %p300 = pneg %p110
        %s301 = smul.u32 16, %s20
        %s302 = smul.u32 2, %s21
        %p303 = scmp.lt.s32.totalorder %s301, 15
        %s304 = scalar_select %p303, %s301, 15
        %p305 = scmp.lt.s32.totalorder %s302, 1
        %s306 = scalar_select %p305, %s302, 1
        %s307 = smul.addr %s304, 2
        %s308 = sadd.s32 %s306, %s307
        %s309 = smul.addr %s308, 8
        %s310 = scalar_lea.vmem %s2, %s309
        %p311 = pneg %p141
        %p312 = pneg %p138
        %s313 = smul.u32 2, %s21
        %p314 = scmp.lt.s32.totalorder %s20, 0
        %s315 = scalar_select %p314, %s20, 0
        %p316 = scmp.lt.s32.totalorder %s313, 1
        %s317 = scalar_select %p316, %s313, 1
        %s318 = smul.addr %s315, 2
        %s319 = sadd.s32 %s317, %s318
        %s320 = smul.addr %s319, 8
        %s321 = scalar_lea.vmem %s3, %s320
        %s322 = smul.u32 16, %s20
        %s323 = smul.u32 4, %s22
        %s324 = smul.u32 64, %s22
        %s325 = smul.u32 2, %s21
        %p326 = scmp.lt.s32.totalorder %s324, 255
        %s327 = scalar_select %p326, %s324, 255
        %p328 = scmp.lt.s32.totalorder %s325, 1
        %s329 = scalar_select %p328, %s325, 1
        %s330 = smul.addr %s327, 2
        %s331 = sadd.s32 %s329, %s330
        %s332 = smul.addr %s331, 4
        %s333 = scalar_lea.vmem %s1, %s332
        %s334 = smul.u32 64, %s22
        %s335 = smul.u32 2, %s21
        %s336 = smul.u32 16, %s20
        %s337 = smul.u32 2, %s21
        %p338 = scmp.lt.s32.totalorder %s336, 15
        %s339 = scalar_select %p338, %s336, 15
        %p340 = scmp.lt.s32.totalorder %s337, 1
        %s341 = scalar_select %p340, %s337, 1
        %s342 = smul.addr %s339, 2
        %s343 = sadd.s32 %s341, %s342
        %s344 = smul.addr %s343, 8
        %s345 = scalar_lea.vmem %s2, %s344
        %s346 = smul.u32 16, %s20
        %s347 = smul.u32 2, %s21
        %s348 = smul.u32 2, %s21
        %p349 = scmp.lt.s32.totalorder %s20, 0
        %s350 = scalar_select %p349, %s20, 0
        %p351 = scmp.lt.s32.totalorder %s348, 1
        %s352 = scalar_select %p351, %s348, 1
        %s353 = smul.addr %s350, 2
        %s354 = sadd.s32 %s352, %s353
        %s355 = smul.addr %s354, 8
        %s356 = scalar_lea.vmem %s3, %s355
        %s357 = smul.u32 2, %s21
        %p358 = scmp.eq.s32.totalorder %s22, 0
        // Predicated region
        $region52: #{discriminator_forward.7} parent=46 // pred_check
          %p359 = pneg %p358
        $region53: #{discriminator_forward.7} parent=46 // pred_check_branch
          %361 = sbr.rel (%p359) target = $region55
        $region54: #{discriminator_forward.7} parent=46 // pred_region
          %362 = vst [vmem:[#allocation2] sm:$0xff] 0.0
          %363 = vst [vmem:[#allocation2 + $0x8] sm:$0xff] 0.0
          %364 = vst [vmem:[#allocation2 + $0x10] sm:$0xff] 0.0
          %365 = vst [vmem:[#allocation2 + $0x18] sm:$0xff] 0.0
          %366 = vst [vmem:[#allocation2 + $0x20] sm:$0xff] 0.0
          %367 = vst [vmem:[#allocation2 + $0x28] sm:$0xff] 0.0
          %368 = vst [vmem:[#allocation2 + $0x30] sm:$0xff] 0.0
          %369 = vst [vmem:[#allocation2 + $0x38] sm:$0xff] 0.0
          %370 = vst [vmem:[#allocation2 + $0x40] sm:$0xff] 0.0
          %371 = vst [vmem:[#allocation2 + $0x48] sm:$0xff] 0.0
          %372 = vst [vmem:[#allocation2 + $0x50] sm:$0xff] 0.0
          %373 = vst [vmem:[#allocation2 + $0x58] sm:$0xff] 0.0
          %374 = vst [vmem:[#allocation2 + $0x60] sm:$0xff] 0.0
          %375 = vst [vmem:[#allocation2 + $0x68] sm:$0xff] 0.0
          %376 = vst [vmem:[#allocation2 + $0x70] sm:$0xff] 0.0
          %377 = vst [vmem:[#allocation2 + $0x78] sm:$0xff] 0.0
          %378 = vst [vmem:[#allocation2 + $0x80] sm:$0xff] 0.0
          %379 = vst [vmem:[#allocation2 + $0x88] sm:$0xff] 0.0
          %380 = vst [vmem:[#allocation2 + $0x90] sm:$0xff] 0.0
          %381 = vst [vmem:[#allocation2 + $0x98] sm:$0xff] 0.0
          %382 = vst [vmem:[#allocation2 + $0xa0] sm:$0xff] 0.0
          %383 = vst [vmem:[#allocation2 + $0xa8] sm:$0xff] 0.0
          %384 = vst [vmem:[#allocation2 + $0xb0] sm:$0xff] 0.0
          %385 = vst [vmem:[#allocation2 + $0xb8] sm:$0xff] 0.0
          %386 = vst [vmem:[#allocation2 + $0xc0] sm:$0xff] 0.0
          %387 = vst [vmem:[#allocation2 + $0xc8] sm:$0xff] 0.0
          %388 = vst [vmem:[#allocation2 + $0xd0] sm:$0xff] 0.0
          %389 = vst [vmem:[#allocation2 + $0xd8] sm:$0xff] 0.0
          %390 = vst [vmem:[#allocation2 + $0xe0] sm:$0xff] 0.0
          %391 = vst [vmem:[#allocation2 + $0xe8] sm:$0xff] 0.0
          %392 = vst [vmem:[#allocation2 + $0xf0] sm:$0xff] 0.0
          %393 = vst [vmem:[#allocation2 + $0xf8] sm:$0xff] 0.0
        $region55: #{discriminator_forward.7} parent=46 // pred_fallthru
          _
        %v394 = vld [vmem:[#allocation2] sm:$0xff]
        %v395 = vld [vmem:[#allocation2 + $0x8] sm:$0xff]
        %v396 = vld [vmem:[#allocation2 + $0x10] sm:$0xff]
        %v397 = vld [vmem:[#allocation2 + $0x18] sm:$0xff]
        %v398 = vld [vmem:[#allocation2 + $0x20] sm:$0xff]
        %v399 = vld [vmem:[#allocation2 + $0x28] sm:$0xff]
        %v400 = vld [vmem:[#allocation2 + $0x30] sm:$0xff]
        %v401 = vld [vmem:[#allocation2 + $0x38] sm:$0xff]
        %v402 = vld [vmem:[#allocation2 + $0x40] sm:$0xff]
        %v403 = vld [vmem:[#allocation2 + $0x48] sm:$0xff]
        %v404 = vld [vmem:[#allocation2 + $0x50] sm:$0xff]
        %v405 = vld [vmem:[#allocation2 + $0x58] sm:$0xff]
        %v406 = vld [vmem:[#allocation2 + $0x60] sm:$0xff]
        %v407 = vld [vmem:[#allocation2 + $0x68] sm:$0xff]
        %v408 = vld [vmem:[#allocation2 + $0x70] sm:$0xff]
        %v409 = vld [vmem:[#allocation2 + $0x78] sm:$0xff]
        %v410 = vld [vmem:[#allocation2 + $0x80] sm:$0xff]
        %v411 = vld [vmem:[#allocation2 + $0x88] sm:$0xff]
        %v412 = vld [vmem:[#allocation2 + $0x90] sm:$0xff]
        %v413 = vld [vmem:[#allocation2 + $0x98] sm:$0xff]
        %v414 = vld [vmem:[#allocation2 + $0xa0] sm:$0xff]
        %v415 = vld [vmem:[#allocation2 + $0xa8] sm:$0xff]
        %v416 = vld [vmem:[#allocation2 + $0xb0] sm:$0xff]
        %v417 = vld [vmem:[#allocation2 + $0xb8] sm:$0xff]
        %v418 = vld [vmem:[#allocation2 + $0xc0] sm:$0xff]
        %v419 = vld [vmem:[#allocation2 + $0xc8] sm:$0xff]
        %v420 = vld [vmem:[#allocation2 + $0xd0] sm:$0xff]
        %v421 = vld [vmem:[#allocation2 + $0xd8] sm:$0xff]
        %v422 = vld [vmem:[#allocation2 + $0xe0] sm:$0xff]
        %v423 = vld [vmem:[#allocation2 + $0xe8] sm:$0xff]
        %v424 = vld [vmem:[#allocation2 + $0xf0] sm:$0xff]
        %v425 = vld [vmem:[#allocation2 + $0xf8] sm:$0xff]
        %v426 = vld [vmem:[%s277] sm:$0xff]
        %v427 = vld [vmem:[%s277 + $0x8] sm:$0xff]
        %v428 = vld [vmem:[%s277 + $0x10] sm:$0xff]
        %v429 = vld [vmem:[%s277 + $0x18] sm:$0xff]
        %v430 = vld [vmem:[%s277 + $0x20] sm:$0xff]
        %v431 = vld [vmem:[%s277 + $0x28] sm:$0xff]
        %v432 = vld [vmem:[%s277 + $0x30] sm:$0xff]
        %v433 = vld [vmem:[%s277 + $0x38] sm:$0xff]
        %v434 = vld [vmem:[%s277 + $0x40] sm:$0xff]
        %v435 = vld [vmem:[%s277 + $0x48] sm:$0xff]
        %v436 = vld [vmem:[%s277 + $0x50] sm:$0xff]
        %v437 = vld [vmem:[%s277 + $0x58] sm:$0xff]
        %v438 = vld [vmem:[%s277 + $0x60] sm:$0xff]
        %v439 = vld [vmem:[%s277 + $0x68] sm:$0xff]
        %v440 = vld [vmem:[%s277 + $0x70] sm:$0xff]
        %v441 = vld [vmem:[%s277 + $0x78] sm:$0xff]
        %v442 = vld [vmem:[%s277 + $0x80] sm:$0xff]
        %v443 = vld [vmem:[%s277 + $0x88] sm:$0xff]
        %v444 = vld [vmem:[%s277 + $0x90] sm:$0xff]
        %v445 = vld [vmem:[%s277 + $0x98] sm:$0xff]
        %v446 = vld [vmem:[%s277 + $0xa0] sm:$0xff]
        %v447 = vld [vmem:[%s277 + $0xa8] sm:$0xff]
        %v448 = vld [vmem:[%s277 + $0xb0] sm:$0xff]
        %v449 = vld [vmem:[%s277 + $0xb8] sm:$0xff]
        %v450 = vld [vmem:[%s277 + $0xc0] sm:$0xff]
        %v451 = vld [vmem:[%s277 + $0xc8] sm:$0xff]
        %v452 = vld [vmem:[%s277 + $0xd0] sm:$0xff]
        %v453 = vld [vmem:[%s277 + $0xd8] sm:$0xff]
        %v454 = vld [vmem:[%s277 + $0xe0] sm:$0xff]
        %v455 = vld [vmem:[%s277 + $0xe8] sm:$0xff]
        %v456 = vld [vmem:[%s277 + $0xf0] sm:$0xff]
        %v457 = vld [vmem:[%s277 + $0xf8] sm:$0xff]
        %v458 = vld [vmem:[%s333] sm:$0xff]
        %v459 = vld [vmem:[%s333 + $0x8] sm:$0xff]
        %v460 = vld [vmem:[%s333 + $0x10] sm:$0xff]
        %v461 = vld [vmem:[%s333 + $0x18] sm:$0xff]
        %v462 = vld [vmem:[%s333 + $0x20] sm:$0xff]
        %v463 = vld [vmem:[%s333 + $0x28] sm:$0xff]
        %v464 = vld [vmem:[%s333 + $0x30] sm:$0xff]
        %v465 = vld [vmem:[%s333 + $0x38] sm:$0xff]
        %v466 = vld [vmem:[%s333 + $0x40] sm:$0xff]
        %v467 = vld [vmem:[%s333 + $0x48] sm:$0xff]
        %v468 = vld [vmem:[%s333 + $0x50] sm:$0xff]
        %v469 = vld [vmem:[%s333 + $0x58] sm:$0xff]
        %v470 = vld [vmem:[%s333 + $0x60] sm:$0xff]
        %v471 = vld [vmem:[%s333 + $0x68] sm:$0xff]
        %v472 = vld [vmem:[%s333 + $0x70] sm:$0xff]
        %v473 = vld [vmem:[%s333 + $0x78] sm:$0xff]
        %v474 = vld [vmem:[%s333 + $0x80] sm:$0xff]
        %v475 = vld [vmem:[%s333 + $0x88] sm:$0xff]
        %v476 = vld [vmem:[%s333 + $0x90] sm:$0xff]
        %v477 = vld [vmem:[%s333 + $0x98] sm:$0xff]
        %v478 = vld [vmem:[%s333 + $0xa0] sm:$0xff]
        %v479 = vld [vmem:[%s333 + $0xa8] sm:$0xff]
        %v480 = vld [vmem:[%s333 + $0xb0] sm:$0xff]
        %v481 = vld [vmem:[%s333 + $0xb8] sm:$0xff]
        %v482 = vld [vmem:[%s333 + $0xc0] sm:$0xff]
        %v483 = vld [vmem:[%s333 + $0xc8] sm:$0xff]
        %v484 = vld [vmem:[%s333 + $0xd0] sm:$0xff]
        %v485 = vld [vmem:[%s333 + $0xd8] sm:$0xff]
        %v486 = vld [vmem:[%s333 + $0xe0] sm:$0xff]
        %v487 = vld [vmem:[%s333 + $0xe8] sm:$0xff]
        %v488 = vld [vmem:[%s333 + $0xf0] sm:$0xff]
        %v489 = vld [vmem:[%s333 + $0xf8] sm:$0xff]
        %v490 = vld [vmem:[%s333 + $0x100] sm:$0xff]
        %v491 = vld [vmem:[%s333 + $0x108] sm:$0xff]
        %v492 = vld [vmem:[%s333 + $0x110] sm:$0xff]
        %v493 = vld [vmem:[%s333 + $0x118] sm:$0xff]
        %v494 = vld [vmem:[%s333 + $0x120] sm:$0xff]
        %v495 = vld [vmem:[%s333 + $0x128] sm:$0xff]
        %v496 = vld [vmem:[%s333 + $0x130] sm:$0xff]
        %v497 = vld [vmem:[%s333 + $0x138] sm:$0xff]
        %v498 = vld [vmem:[%s333 + $0x140] sm:$0xff]
        %v499 = vld [vmem:[%s333 + $0x148] sm:$0xff]
        %v500 = vld [vmem:[%s333 + $0x150] sm:$0xff]
        %v501 = vld [vmem:[%s333 + $0x158] sm:$0xff]
        %v502 = vld [vmem:[%s333 + $0x160] sm:$0xff]
        %v503 = vld [vmem:[%s333 + $0x168] sm:$0xff]
        %v504 = vld [vmem:[%s333 + $0x170] sm:$0xff]
        %v505 = vld [vmem:[%s333 + $0x178] sm:$0xff]
        %v506 = vld [vmem:[%s333 + $0x180] sm:$0xff]
        %v507 = vld [vmem:[%s333 + $0x188] sm:$0xff]
        %v508 = vld [vmem:[%s333 + $0x190] sm:$0xff]
        %v509 = vld [vmem:[%s333 + $0x198] sm:$0xff]
        %v510 = vld [vmem:[%s333 + $0x1a0] sm:$0xff]
        %v511 = vld [vmem:[%s333 + $0x1a8] sm:$0xff]
        %v512 = vld [vmem:[%s333 + $0x1b0] sm:$0xff]
        %v513 = vld [vmem:[%s333 + $0x1b8] sm:$0xff]
        %v514 = vld [vmem:[%s333 + $0x1c0] sm:$0xff]
        %v515 = vld [vmem:[%s333 + $0x1c8] sm:$0xff]
        %v516 = vld [vmem:[%s333 + $0x1d0] sm:$0xff]
        %v517 = vld [vmem:[%s333 + $0x1d8] sm:$0xff]
        %v518 = vld [vmem:[%s333 + $0x1e0] sm:$0xff]
        %v519 = vld [vmem:[%s333 + $0x1e8] sm:$0xff]
        %v520 = vld [vmem:[%s333 + $0x1f0] sm:$0xff]
        %v521 = vld [vmem:[%s333 + $0x1f8] sm:$0xff]
        %v554 = vunpack.c.l.b16 %v426
        %v555 = vunpack.c.h.b16 %v426
        %v556 = vunpack.c.l.b16 %v427
        %v557 = vunpack.c.h.b16 %v427
        %v558 = vunpack.c.l.b16 %v428
        %v559 = vunpack.c.h.b16 %v428
        %v560 = vunpack.c.l.b16 %v429
        %v561 = vunpack.c.h.b16 %v429
        %v562 = vunpack.c.l.b16 %v430
        %v563 = vunpack.c.h.b16 %v430
        %v564 = vunpack.c.l.b16 %v431
        %v565 = vunpack.c.h.b16 %v431
        %v566 = vunpack.c.l.b16 %v432
        %v567 = vunpack.c.h.b16 %v432
        %v568 = vunpack.c.l.b16 %v433
        %v569 = vunpack.c.h.b16 %v433
        %v570 = vunpack.c.l.b16 %v434
        %v571 = vunpack.c.h.b16 %v434
        %v572 = vunpack.c.l.b16 %v435
        %v573 = vunpack.c.h.b16 %v435
        %v574 = vunpack.c.l.b16 %v436
        %v575 = vunpack.c.h.b16 %v436
        %v576 = vunpack.c.l.b16 %v437
        %v577 = vunpack.c.h.b16 %v437
        %v578 = vunpack.c.l.b16 %v438
        %v579 = vunpack.c.h.b16 %v438
        %v580 = vunpack.c.l.b16 %v439
        %v581 = vunpack.c.h.b16 %v439
        %v582 = vunpack.c.l.b16 %v440
        %v583 = vunpack.c.h.b16 %v440
        %v584 = vunpack.c.l.b16 %v441
        %v585 = vunpack.c.h.b16 %v441
        %v586 = vunpack.c.l.b16 %v442
        %v587 = vunpack.c.h.b16 %v442
        %v588 = vunpack.c.l.b16 %v443
        %v589 = vunpack.c.h.b16 %v443
        %v590 = vunpack.c.l.b16 %v444
        %v591 = vunpack.c.h.b16 %v444
        %v592 = vunpack.c.l.b16 %v445
        %v593 = vunpack.c.h.b16 %v445
        %v594 = vunpack.c.l.b16 %v446
        %v595 = vunpack.c.h.b16 %v446
        %v596 = vunpack.c.l.b16 %v447
        %v597 = vunpack.c.h.b16 %v447
        %v598 = vunpack.c.l.b16 %v448
        %v599 = vunpack.c.h.b16 %v448
        %v600 = vunpack.c.l.b16 %v449
        %v601 = vunpack.c.h.b16 %v449
        %v602 = vunpack.c.l.b16 %v450
        %v603 = vunpack.c.h.b16 %v450
        %v604 = vunpack.c.l.b16 %v451
        %v605 = vunpack.c.h.b16 %v451
        %v606 = vunpack.c.l.b16 %v452
        %v607 = vunpack.c.h.b16 %v452
        %v608 = vunpack.c.l.b16 %v453
        %v609 = vunpack.c.h.b16 %v453
        %v610 = vunpack.c.l.b16 %v454
        %v611 = vunpack.c.h.b16 %v454
        %v612 = vunpack.c.l.b16 %v455
        %v613 = vunpack.c.h.b16 %v455
        %v614 = vunpack.c.l.b16 %v456
        %v615 = vunpack.c.h.b16 %v456
        %v616 = vunpack.c.l.b16 %v457
        %v617 = vunpack.c.h.b16 %v457
        %v618 = vpack.c.b16 %v558, %v554
        %v619 = vpack.c.b16 %v559, %v555
        %v620 = vpack.c.b16 %v560, %v556
        %v621 = vpack.c.b16 %v561, %v557
        %v622 = vpack.c.b16 %v566, %v562
        %v623 = vpack.c.b16 %v567, %v563
        %v624 = vpack.c.b16 %v568, %v564
        %v625 = vpack.c.b16 %v569, %v565
        %v626 = vpack.c.b16 %v574, %v570
        %v627 = vpack.c.b16 %v575, %v571
        %v628 = vpack.c.b16 %v576, %v572
        %v629 = vpack.c.b16 %v577, %v573
        %v630 = vpack.c.b16 %v582, %v578
        %v631 = vpack.c.b16 %v583, %v579
        %v632 = vpack.c.b16 %v584, %v580
        %v633 = vpack.c.b16 %v585, %v581
        %v634 = vpack.c.b16 %v590, %v586
        %v635 = vpack.c.b16 %v591, %v587
        %v636 = vpack.c.b16 %v592, %v588
        %v637 = vpack.c.b16 %v593, %v589
        %v638 = vpack.c.b16 %v598, %v594
        %v639 = vpack.c.b16 %v599, %v595
        %v640 = vpack.c.b16 %v600, %v596
        %v641 = vpack.c.b16 %v601, %v597
        %v642 = vpack.c.b16 %v606, %v602
        %v643 = vpack.c.b16 %v607, %v603
        %v644 = vpack.c.b16 %v608, %v604
        %v645 = vpack.c.b16 %v609, %v605
        %v646 = vpack.c.b16 %v614, %v610
        %v647 = vpack.c.b16 %v615, %v611
        %v648 = vpack.c.b16 %v616, %v612
        %v649 = vpack.c.b16 %v617, %v613
        %v746 = vunpack.c.l.b16 %v458
        %v747 = vunpack.c.h.b16 %v458
        %v748 = vunpack.c.l.b16 %v459
        %v749 = vunpack.c.h.b16 %v459
        %v750 = vunpack.c.l.b16 %v460
        %v751 = vunpack.c.h.b16 %v460
        %v752 = vunpack.c.l.b16 %v461
        %v753 = vunpack.c.h.b16 %v461
        %v754 = vunpack.c.l.b16 %v462
        %v755 = vunpack.c.h.b16 %v462
        %v756 = vunpack.c.l.b16 %v463
        %v757 = vunpack.c.h.b16 %v463
        %v758 = vunpack.c.l.b16 %v464
        %v759 = vunpack.c.h.b16 %v464
        %v760 = vunpack.c.l.b16 %v465
        %v761 = vunpack.c.h.b16 %v465
        %v762 = vunpack.c.l.b16 %v466
        %v763 = vunpack.c.h.b16 %v466
        %v764 = vunpack.c.l.b16 %v467
        %v765 = vunpack.c.h.b16 %v467
        %v766 = vunpack.c.l.b16 %v468
        %v767 = vunpack.c.h.b16 %v468
        %v768 = vunpack.c.l.b16 %v469
        %v769 = vunpack.c.h.b16 %v469
        %v770 = vunpack.c.l.b16 %v470
        %v771 = vunpack.c.h.b16 %v470
        %v772 = vunpack.c.l.b16 %v471
        %v773 = vunpack.c.h.b16 %v471
        %v774 = vunpack.c.l.b16 %v472
        %v775 = vunpack.c.h.b16 %v472
        %v776 = vunpack.c.l.b16 %v473
        %v777 = vunpack.c.h.b16 %v473
        %v778 = vunpack.c.l.b16 %v474
        %v779 = vunpack.c.h.b16 %v474
        %v780 = vunpack.c.l.b16 %v475
        %v781 = vunpack.c.h.b16 %v475
        %v782 = vunpack.c.l.b16 %v476
        %v783 = vunpack.c.h.b16 %v476
        %v784 = vunpack.c.l.b16 %v477
        %v785 = vunpack.c.h.b16 %v477
        %v786 = vunpack.c.l.b16 %v478
        %v787 = vunpack.c.h.b16 %v478
        %v788 = vunpack.c.l.b16 %v479
        %v789 = vunpack.c.h.b16 %v479
        %v790 = vunpack.c.l.b16 %v480
        %v791 = vunpack.c.h.b16 %v480
        %v792 = vunpack.c.l.b16 %v481
        %v793 = vunpack.c.h.b16 %v481
        %v794 = vunpack.c.l.b16 %v482
        %v795 = vunpack.c.h.b16 %v482
        %v796 = vunpack.c.l.b16 %v483
        %v797 = vunpack.c.h.b16 %v483
        %v798 = vunpack.c.l.b16 %v484
        %v799 = vunpack.c.h.b16 %v484
        %v800 = vunpack.c.l.b16 %v485
        %v801 = vunpack.c.h.b16 %v485
        %v802 = vunpack.c.l.b16 %v486
        %v803 = vunpack.c.h.b16 %v486
        %v804 = vunpack.c.l.b16 %v487
        %v805 = vunpack.c.h.b16 %v487
        %v806 = vunpack.c.l.b16 %v488
        %v807 = vunpack.c.h.b16 %v488
        %v808 = vunpack.c.l.b16 %v489
        %v809 = vunpack.c.h.b16 %v489
        %v810 = vunpack.c.l.b16 %v490
        %v811 = vunpack.c.h.b16 %v490
        %v812 = vunpack.c.l.b16 %v491
        %v813 = vunpack.c.h.b16 %v491
        %v814 = vunpack.c.l.b16 %v492
        %v815 = vunpack.c.h.b16 %v492
        %v816 = vunpack.c.l.b16 %v493
        %v817 = vunpack.c.h.b16 %v493
        %v818 = vunpack.c.l.b16 %v494
        %v819 = vunpack.c.h.b16 %v494
        %v820 = vunpack.c.l.b16 %v495
        %v821 = vunpack.c.h.b16 %v495
        %v822 = vunpack.c.l.b16 %v496
        %v823 = vunpack.c.h.b16 %v496
        %v824 = vunpack.c.l.b16 %v497
        %v825 = vunpack.c.h.b16 %v497
        %v826 = vunpack.c.l.b16 %v498
        %v827 = vunpack.c.h.b16 %v498
        %v828 = vunpack.c.l.b16 %v499
        %v829 = vunpack.c.h.b16 %v499
        %v830 = vunpack.c.l.b16 %v500
        %v831 = vunpack.c.h.b16 %v500
        %v832 = vunpack.c.l.b16 %v501
        %v833 = vunpack.c.h.b16 %v501
        %v834 = vunpack.c.l.b16 %v502
        %v835 = vunpack.c.h.b16 %v502
        %v836 = vunpack.c.l.b16 %v503
        %v837 = vunpack.c.h.b16 %v503
        %v838 = vunpack.c.l.b16 %v504
        %v839 = vunpack.c.h.b16 %v504
        %v840 = vunpack.c.l.b16 %v505
        %v841 = vunpack.c.h.b16 %v505
        %v842 = vunpack.c.l.b16 %v506
        %v843 = vunpack.c.h.b16 %v506
        %v844 = vunpack.c.l.b16 %v507
        %v845 = vunpack.c.h.b16 %v507
        %v846 = vunpack.c.l.b16 %v508
        %v847 = vunpack.c.h.b16 %v508
        %v848 = vunpack.c.l.b16 %v509
        %v849 = vunpack.c.h.b16 %v509
        %v850 = vunpack.c.l.b16 %v510
        %v851 = vunpack.c.h.b16 %v510
        %v852 = vunpack.c.l.b16 %v511
        %v853 = vunpack.c.h.b16 %v511
        %v854 = vunpack.c.l.b16 %v512
        %v855 = vunpack.c.h.b16 %v512
        %v856 = vunpack.c.l.b16 %v513
        %v857 = vunpack.c.h.b16 %v513
        %v858 = vunpack.c.l.b16 %v514
        %v859 = vunpack.c.h.b16 %v514
        %v860 = vunpack.c.l.b16 %v515
        %v861 = vunpack.c.h.b16 %v515
        %v862 = vunpack.c.l.b16 %v516
        %v863 = vunpack.c.h.b16 %v516
        %v864 = vunpack.c.l.b16 %v517
        %v865 = vunpack.c.h.b16 %v517
        %v866 = vunpack.c.l.b16 %v518
        %v867 = vunpack.c.h.b16 %v518
        %v868 = vunpack.c.l.b16 %v519
        %v869 = vunpack.c.h.b16 %v519
        %v870 = vunpack.c.l.b16 %v520
        %v871 = vunpack.c.h.b16 %v520
        %v872 = vunpack.c.l.b16 %v521
        %v873 = vunpack.c.h.b16 %v521
        %v874 = vpack.c.b16 %v748, %v746
        %v875 = vpack.c.b16 %v749, %v747
        %v876 = vpack.c.b16 %v752, %v750
        %v877 = vpack.c.b16 %v753, %v751
        %v878 = vpack.c.b16 %v756, %v754
        %v879 = vpack.c.b16 %v757, %v755
        %v880 = vpack.c.b16 %v760, %v758
        %v881 = vpack.c.b16 %v761, %v759
        %v882 = vpack.c.b16 %v764, %v762
        %v883 = vpack.c.b16 %v765, %v763
        %v884 = vpack.c.b16 %v768, %v766
        %v885 = vpack.c.b16 %v769, %v767
        %v886 = vpack.c.b16 %v772, %v770
        %v887 = vpack.c.b16 %v773, %v771
        %v888 = vpack.c.b16 %v776, %v774
        %v889 = vpack.c.b16 %v777, %v775
        %v890 = vpack.c.b16 %v780, %v778
        %v891 = vpack.c.b16 %v781, %v779
        %v892 = vpack.c.b16 %v784, %v782
        %v893 = vpack.c.b16 %v785, %v783
        %v894 = vpack.c.b16 %v788, %v786
        %v895 = vpack.c.b16 %v789, %v787
        %v896 = vpack.c.b16 %v792, %v790
        %v897 = vpack.c.b16 %v793, %v791
        %v898 = vpack.c.b16 %v796, %v794
        %v899 = vpack.c.b16 %v797, %v795
        %v900 = vpack.c.b16 %v800, %v798
        %v901 = vpack.c.b16 %v801, %v799
        %v902 = vpack.c.b16 %v804, %v802
        %v903 = vpack.c.b16 %v805, %v803
        %v904 = vpack.c.b16 %v808, %v806
        %v905 = vpack.c.b16 %v809, %v807
        %v906 = vpack.c.b16 %v812, %v810
        %v907 = vpack.c.b16 %v813, %v811
        %v908 = vpack.c.b16 %v816, %v814
        %v909 = vpack.c.b16 %v817, %v815
        %v910 = vpack.c.b16 %v820, %v818
        %v911 = vpack.c.b16 %v821, %v819
        %v912 = vpack.c.b16 %v824, %v822
        %v913 = vpack.c.b16 %v825, %v823
        %v914 = vpack.c.b16 %v828, %v826
        %v915 = vpack.c.b16 %v829, %v827
        %v916 = vpack.c.b16 %v832, %v830
        %v917 = vpack.c.b16 %v833, %v831
        %v918 = vpack.c.b16 %v836, %v834
        %v919 = vpack.c.b16 %v837, %v835
        %v920 = vpack.c.b16 %v840, %v838
        %v921 = vpack.c.b16 %v841, %v839
        %v922 = vpack.c.b16 %v844, %v842
        %v923 = vpack.c.b16 %v845, %v843
        %v924 = vpack.c.b16 %v848, %v846
        %v925 = vpack.c.b16 %v849, %v847
        %v926 = vpack.c.b16 %v852, %v850
        %v927 = vpack.c.b16 %v853, %v851
        %v928 = vpack.c.b16 %v856, %v854
        %v929 = vpack.c.b16 %v857, %v855
        %v930 = vpack.c.b16 %v860, %v858
        %v931 = vpack.c.b16 %v861, %v859
        %v932 = vpack.c.b16 %v864, %v862
        %v933 = vpack.c.b16 %v865, %v863
        %v934 = vpack.c.b16 %v868, %v866
        %v935 = vpack.c.b16 %v869, %v867
        %v936 = vpack.c.b16 %v872, %v870
        %v937 = vpack.c.b16 %v873, %v871
        %1002 = vmatprep.subr.bf16.mxu0 %v875
        %1003 = vmatpush1.bf16.msra.mxu0 %v874
        %1004 = vmatprep.subr.bf16.mxu0 %v877
        %1005 = vmatpush1.bf16.msra.mxu0 %v876
        %1006 = vmatprep.subr.bf16.mxu0 %v879
        %1007 = vmatpush1.bf16.msra.mxu0 %v878
        %1008 = vmatprep.subr.bf16.mxu0 %v881
        %1009 = vmatpush1.bf16.msra.mxu0 %v880
        %1010 = vmatprep.subr.bf16.mxu0 %v883
        %1011 = vmatpush1.bf16.msra.mxu0 %v882
        %1012 = vmatprep.subr.bf16.mxu0 %v885
        %1013 = vmatpush1.bf16.msra.mxu0 %v884
        %1014 = vmatprep.subr.bf16.mxu0 %v887
        %1015 = vmatpush1.bf16.msra.mxu0 %v886
        %1016 = vmatprep.subr.bf16.mxu0 %v889
        %1017 = vmatpush1.bf16.msra.mxu0 %v888
        %1018 = vmatprep.subr.bf16.mxu0 %v891
        %1019 = vmatpush1.bf16.msra.mxu0 %v890
        %1020 = vmatprep.subr.bf16.mxu0 %v893
        %1021 = vmatpush1.bf16.msra.mxu0 %v892
        %1022 = vmatprep.subr.bf16.mxu0 %v895
        %1023 = vmatpush1.bf16.msra.mxu0 %v894
        %1024 = vmatprep.subr.bf16.mxu0 %v897
        %1025 = vmatpush1.bf16.msra.mxu0 %v896
        %1026 = vmatprep.subr.bf16.mxu0 %v899
        %1027 = vmatpush1.bf16.msra.mxu0 %v898
        %1028 = vmatprep.subr.bf16.mxu0 %v901
        %1029 = vmatpush1.bf16.msra.mxu0 %v900
        %1030 = vmatprep.subr.bf16.mxu0 %v903
        %1031 = vmatpush1.bf16.msra.mxu0 %v902
        %1032 = vmatprep.subr.bf16.mxu0 %v905
        %1033 = vmatpush1.bf16.msra.mxu0 %v904
        %1034 = vmatprep.mubr.bf16.mxu0 %v619
        %1035 = vmatmul.mubr.bf16.gmra.mrb[0].mxu0 %v618
        %v1036 = vpop.f32.mrb[0].mxu0
        %v1037 = vadd.f32 0.0, %v1036
        %v1038 = vpop.f32.mrb[0].mxu0
        %v1039 = vadd.f32 0.0, %v1038
        %v1040 = vpop.f32.mrb[0].mxu0
        %v1041 = vadd.f32 0.0, %v1040
        %v1042 = vpop.f32.mrb[0].mxu0
        %v1043 = vadd.f32 0.0, %v1042
        %1044 = vmatprep.mubr.bf16.mxu0 %v623
        %1045 = vmatmul.mubr.bf16.gmra.mrb[0].mxu0 %v622
        %v1046 = vpop.f32.mrb[0].mxu0
        %v1047 = vadd.f32 0.0, %v1046
        %v1048 = vpop.f32.mrb[0].mxu0
        %v1049 = vadd.f32 0.0, %v1048
        %v1050 = vpop.f32.mrb[0].mxu0
        %v1051 = vadd.f32 0.0, %v1050
        %v1052 = vpop.f32.mrb[0].mxu0
        %v1053 = vadd.f32 0.0, %v1052
        %1054 = vmatprep.mubr.bf16.mxu0 %v627
        %1055 = vmatmul.mubr.bf16.gmra.mrb[0].mxu0 %v626
        %v1056 = vpop.f32.mrb[0].mxu0
        %v1057 = vadd.f32 0.0, %v1056
        %v1058 = vpop.f32.mrb[0].mxu0
        %v1059 = vadd.f32 0.0, %v1058
        %v1060 = vpop.f32.mrb[0].mxu0
        %v1061 = vadd.f32 0.0, %v1060
        %v1062 = vpop.f32.mrb[0].mxu0
        %v1063 = vadd.f32 0.0, %v1062
        %1064 = vmatprep.mubr.bf16.mxu0 %v631
        %1065 = vmatmul.mubr.bf16.gmra.mrb[0].mxu0 %v630
        %v1066 = vpop.f32.mrb[0].mxu0
        %v1067 = vadd.f32 0.0, %v1066
        %v1068 = vpop.f32.mrb[0].mxu0
        %v1069 = vadd.f32 0.0, %v1068
        %v1070 = vpop.f32.mrb[0].mxu0
        %v1071 = vadd.f32 0.0, %v1070
        %v1072 = vpop.f32.mrb[0].mxu0
        %v1073 = vadd.f32 0.0, %v1072
        %1074 = vmatprep.mubr.bf16.mxu0 %v635
        %1075 = vmatmul.mubr.bf16.gmra.mrb[0].mxu0 %v634
        %v1076 = vpop.f32.mrb[0].mxu0
        %v1077 = vadd.f32 0.0, %v1076
        %v1078 = vpop.f32.mrb[0].mxu0
        %v1079 = vadd.f32 0.0, %v1078
        %v1080 = vpop.f32.mrb[0].mxu0
        %v1081 = vadd.f32 0.0, %v1080
        %v1082 = vpop.f32.mrb[0].mxu0
        %v1083 = vadd.f32 0.0, %v1082
        %1084 = vmatprep.mubr.bf16.mxu0 %v639
        %1085 = vmatmul.mubr.bf16.gmra.mrb[0].mxu0 %v638
        %v1086 = vpop.f32.mrb[0].mxu0
        %v1087 = vadd.f32 0.0, %v1086
        %v1088 = vpop.f32.mrb[0].mxu0
        %v1089 = vadd.f32 0.0, %v1088
        %v1090 = vpop.f32.mrb[0].mxu0
        %v1091 = vadd.f32 0.0, %v1090
        %v1092 = vpop.f32.mrb[0].mxu0
        %v1093 = vadd.f32 0.0, %v1092
        %1094 = vmatprep.mubr.bf16.mxu0 %v643
        %1095 = vmatmul.mubr.bf16.gmra.mrb[0].mxu0 %v642
        %v1096 = vpop.f32.mrb[0].mxu0
        %v1097 = vadd.f32 0.0, %v1096
        %v1098 = vpop.f32.mrb[0].mxu0
        %v1099 = vadd.f32 0.0, %v1098
        %v1100 = vpop.f32.mrb[0].mxu0
        %v1101 = vadd.f32 0.0, %v1100
        %v1102 = vpop.f32.mrb[0].mxu0
        %v1103 = vadd.f32 0.0, %v1102
        %1104 = vmatprep.mubr.bf16.mxu0 %v647
        %1105 = vmatmul.mubr.bf16.gmra.mrb[0].mxu0 %v646
        %v1106 = vpop.f32.mrb[0].mxu0
        %v1107 = vadd.f32 0.0, %v1106
        %v1108 = vpop.f32.mrb[0].mxu0
        %v1109 = vadd.f32 0.0, %v1108
        %v1110 = vpop.f32.mrb[0].mxu0
        %v1111 = vadd.f32 0.0, %v1110
        %v1112 = vpop.f32.mrb[0].mxu0
        %v1113 = vadd.f32 0.0, %v1112
        %1114 = vdwg.mxu0
        %1115 = vmatprep.subr.bf16.mxu0 %v907
        %1116 = vmatpush1.bf16.msra.mxu0 %v906
        %1117 = vmatprep.subr.bf16.mxu0 %v909
        %1118 = vmatpush1.bf16.msra.mxu0 %v908
        %1119 = vmatprep.subr.bf16.mxu0 %v911
        %1120 = vmatpush1.bf16.msra.mxu0 %v910
        %1121 = vmatprep.subr.bf16.mxu0 %v913
        %1122 = vmatpush1.bf16.msra.mxu0 %v912
        %1123 = vmatprep.subr.bf16.mxu0 %v915
        %1124 = vmatpush1.bf16.msra.mxu0 %v914
        %1125 = vmatprep.subr.bf16.mxu0 %v917
        %1126 = vmatpush1.bf16.msra.mxu0 %v916
        %1127 = vmatprep.subr.bf16.mxu0 %v919
        %1128 = vmatpush1.bf16.msra.mxu0 %v918
        %1129 = vmatprep.subr.bf16.mxu0 %v921
        %1130 = vmatpush1.bf16.msra.mxu0 %v920
        %1131 = vmatprep.subr.bf16.mxu0 %v923
        %1132 = vmatpush1.bf16.msra.mxu0 %v922
        %1133 = vmatprep.subr.bf16.mxu0 %v925
        %1134 = vmatpush1.bf16.msra.mxu0 %v924
        %1135 = vmatprep.subr.bf16.mxu0 %v927
        %1136 = vmatpush1.bf16.msra.mxu0 %v926
        %1137 = vmatprep.subr.bf16.mxu0 %v929
        %1138 = vmatpush1.bf16.msra.mxu0 %v928
        %1139 = vmatprep.subr.bf16.mxu0 %v931
        %1140 = vmatpush1.bf16.msra.mxu0 %v930
        %1141 = vmatprep.subr.bf16.mxu0 %v933
        %1142 = vmatpush1.bf16.msra.mxu0 %v932
        %1143 = vmatprep.subr.bf16.mxu0 %v935
        %1144 = vmatpush1.bf16.msra.mxu0 %v934
        %1145 = vmatprep.subr.bf16.mxu0 %v937
        %1146 = vmatpush1.bf16.msra.mxu0 %v936
        %1147 = vmatprep.mubr.bf16.mxu0 %v621
        %1148 = vmatmul.mubr.bf16.gmra.mrb[0].mxu0 %v620
        %v1149 = vpop.f32.mrb[0].mxu0
        %v1150 = vadd.f32 %v1037, %v1149
        %v1151 = vpop.f32.mrb[0].mxu0
        %v1152 = vadd.f32 %v1039, %v1151
        %v1153 = vpop.f32.mrb[0].mxu0
        %v1154 = vadd.f32 %v1041, %v1153
        %v1155 = vpop.f32.mrb[0].mxu0
        %v1156 = vadd.f32 %v1043, %v1155
        %1157 = vmatprep.mubr.bf16.mxu0 %v625
        %1158 = vmatmul.mubr.bf16.gmra.mrb[0].mxu0 %v624
        %v1159 = vpop.f32.mrb[0].mxu0
        %v1160 = vadd.f32 %v1047, %v1159
        %v1161 = vpop.f32.mrb[0].mxu0
        %v1162 = vadd.f32 %v1049, %v1161
        %v1163 = vpop.f32.mrb[0].mxu0
        %v1164 = vadd.f32 %v1051, %v1163
        %v1165 = vpop.f32.mrb[0].mxu0
        %v1166 = vadd.f32 %v1053, %v1165
        %1167 = vmatprep.mubr.bf16.mxu0 %v629
        %1168 = vmatmul.mubr.bf16.gmra.mrb[0].mxu0 %v628
        %v1169 = vpop.f32.mrb[0].mxu0
        %v1170 = vadd.f32 %v1057, %v1169
        %v1171 = vpop.f32.mrb[0].mxu0
        %v1172 = vadd.f32 %v1059, %v1171
        %v1173 = vpop.f32.mrb[0].mxu0
        %v1174 = vadd.f32 %v1061, %v1173
        %v1175 = vpop.f32.mrb[0].mxu0
        %v1176 = vadd.f32 %v1063, %v1175
        %1177 = vmatprep.mubr.bf16.mxu0 %v633
        %1178 = vmatmul.mubr.bf16.gmra.mrb[0].mxu0 %v632
        %v1179 = vpop.f32.mrb[0].mxu0
        %v1180 = vadd.f32 %v1067, %v1179
        %v1181 = vpop.f32.mrb[0].mxu0
        %v1182 = vadd.f32 %v1069, %v1181
        %v1183 = vpop.f32.mrb[0].mxu0
        %v1184 = vadd.f32 %v1071, %v1183
        %v1185 = vpop.f32.mrb[0].mxu0
        %v1186 = vadd.f32 %v1073, %v1185
        %1187 = vmatprep.mubr.bf16.mxu0 %v637
        %1188 = vmatmul.mubr.bf16.gmra.mrb[0].mxu0 %v636
        %v1189 = vpop.f32.mrb[0].mxu0
        %v1190 = vadd.f32 %v1077, %v1189
        %v1191 = vpop.f32.mrb[0].mxu0
        %v1192 = vadd.f32 %v1079, %v1191
        %v1193 = vpop.f32.mrb[0].mxu0
        %v1194 = vadd.f32 %v1081, %v1193
        %v1195 = vpop.f32.mrb[0].mxu0
        %v1196 = vadd.f32 %v1083, %v1195
        %1197 = vmatprep.mubr.bf16.mxu0 %v641
        %1198 = vmatmul.mubr.bf16.gmra.mrb[0].mxu0 %v640
        %v1199 = vpop.f32.mrb[0].mxu0
        %v1200 = vadd.f32 %v1087, %v1199
        %v1201 = vpop.f32.mrb[0].mxu0
        %v1202 = vadd.f32 %v1089, %v1201
        %v1203 = vpop.f32.mrb[0].mxu0
        %v1204 = vadd.f32 %v1091, %v1203
        %v1205 = vpop.f32.mrb[0].mxu0
        %v1206 = vadd.f32 %v1093, %v1205
        %1207 = vmatprep.mubr.bf16.mxu0 %v645
        %1208 = vmatmul.mubr.bf16.gmra.mrb[0].mxu0 %v644
        %v1209 = vpop.f32.mrb[0].mxu0
        %v1210 = vadd.f32 %v1097, %v1209
        %v1211 = vpop.f32.mrb[0].mxu0
        %v1212 = vadd.f32 %v1099, %v1211
        %v1213 = vpop.f32.mrb[0].mxu0
        %v1214 = vadd.f32 %v1101, %v1213
        %v1215 = vpop.f32.mrb[0].mxu0
        %v1216 = vadd.f32 %v1103, %v1215
        %1217 = vmatprep.mubr.bf16.mxu0 %v649
        %1218 = vmatmul.mubr.bf16.gmra.mrb[0].mxu0 %v648
        %v1219 = vpop.f32.mrb[0].mxu0
        %v1220 = vadd.f32 %v1107, %v1219
        %v1221 = vpop.f32.mrb[0].mxu0
        %v1222 = vadd.f32 %v1109, %v1221
        %v1223 = vpop.f32.mrb[0].mxu0
        %v1224 = vadd.f32 %v1111, %v1223
        %v1225 = vpop.f32.mrb[0].mxu0
        %v1226 = vadd.f32 %v1113, %v1225
        %1227 = vdwg.mxu0
        %v1228 = vadd.f32 %v394, %v1150
        %v1229 = vadd.f32 %v395, %v1152
        %v1230 = vadd.f32 %v396, %v1154
        %v1231 = vadd.f32 %v397, %v1156
        %v1232 = vadd.f32 %v398, %v1160
        %v1233 = vadd.f32 %v399, %v1162
        %v1234 = vadd.f32 %v400, %v1164
        %v1235 = vadd.f32 %v401, %v1166
        %v1236 = vadd.f32 %v402, %v1170
        %v1237 = vadd.f32 %v403, %v1172
        %v1238 = vadd.f32 %v404, %v1174
        %v1239 = vadd.f32 %v405, %v1176
        %v1240 = vadd.f32 %v406, %v1180
        %v1241 = vadd.f32 %v407, %v1182
        %v1242 = vadd.f32 %v408, %v1184
        %v1243 = vadd.f32 %v409, %v1186
        %v1244 = vadd.f32 %v410, %v1190
        %v1245 = vadd.f32 %v411, %v1192
        %v1246 = vadd.f32 %v412, %v1194
        %v1247 = vadd.f32 %v413, %v1196
        %v1248 = vadd.f32 %v414, %v1200
        %v1249 = vadd.f32 %v415, %v1202
        %v1250 = vadd.f32 %v416, %v1204
        %v1251 = vadd.f32 %v417, %v1206
        %v1252 = vadd.f32 %v418, %v1210
        %v1253 = vadd.f32 %v419, %v1212
        %v1254 = vadd.f32 %v420, %v1214
        %v1255 = vadd.f32 %v421, %v1216
        %v1256 = vadd.f32 %v422, %v1220
        %v1257 = vadd.f32 %v423, %v1222
        %v1258 = vadd.f32 %v424, %v1224
        %v1259 = vadd.f32 %v425, %v1226
        %1260 = vst [vmem:[#allocation2] sm:$0xff] %v1228
        %1261 = vst [vmem:[#allocation2 + $0x8] sm:$0xff] %v1229
        %1262 = vst [vmem:[#allocation2 + $0x10] sm:$0xff] %v1230
        %1263 = vst [vmem:[#allocation2 + $0x18] sm:$0xff] %v1231
        %1264 = vst [vmem:[#allocation2 + $0x20] sm:$0xff] %v1232
        %1265 = vst [vmem:[#allocation2 + $0x28] sm:$0xff] %v1233
        %1266 = vst [vmem:[#allocation2 + $0x30] sm:$0xff] %v1234
        %1267 = vst [vmem:[#allocation2 + $0x38] sm:$0xff] %v1235
        %1268 = vst [vmem:[#allocation2 + $0x40] sm:$0xff] %v1236
        %1269 = vst [vmem:[#allocation2 + $0x48] sm:$0xff] %v1237
        %1270 = vst [vmem:[#allocation2 + $0x50] sm:$0xff] %v1238
        %1271 = vst [vmem:[#allocation2 + $0x58] sm:$0xff] %v1239
        %1272 = vst [vmem:[#allocation2 + $0x60] sm:$0xff] %v1240
        %1273 = vst [vmem:[#allocation2 + $0x68] sm:$0xff] %v1241
        %1274 = vst [vmem:[#allocation2 + $0x70] sm:$0xff] %v1242
        %1275 = vst [vmem:[#allocation2 + $0x78] sm:$0xff] %v1243
        %1276 = vst [vmem:[#allocation2 + $0x80] sm:$0xff] %v1244
        %1277 = vst [vmem:[#allocation2 + $0x88] sm:$0xff] %v1245
        %1278 = vst [vmem:[#allocation2 + $0x90] sm:$0xff] %v1246
        %1279 = vst [vmem:[#allocation2 + $0x98] sm:$0xff] %v1247
        %1280 = vst [vmem:[#allocation2 + $0xa0] sm:$0xff] %v1248
        %1281 = vst [vmem:[#allocation2 + $0xa8] sm:$0xff] %v1249
        %1282 = vst [vmem:[#allocation2 + $0xb0] sm:$0xff] %v1250
        %1283 = vst [vmem:[#allocation2 + $0xb8] sm:$0xff] %v1251
        %1284 = vst [vmem:[#allocation2 + $0xc0] sm:$0xff] %v1252
        %1285 = vst [vmem:[#allocation2 + $0xc8] sm:$0xff] %v1253
        %1286 = vst [vmem:[#allocation2 + $0xd0] sm:$0xff] %v1254
        %1287 = vst [vmem:[#allocation2 + $0xd8] sm:$0xff] %v1255
        %1288 = vst [vmem:[#allocation2 + $0xe0] sm:$0xff] %v1256
        %1289 = vst [vmem:[#allocation2 + $0xe8] sm:$0xff] %v1257
        %1290 = vst [vmem:[#allocation2 + $0xf0] sm:$0xff] %v1258
        %1291 = vst [vmem:[#allocation2 + $0xf8] sm:$0xff] %v1259
        %p1292 = scmp.eq.s32.totalorder %s22, 3
        // Predicated region
        $region56: #{discriminator_forward.7} parent=46 // pred_check
          %p1293 = pneg %p1292
        $region57: #{discriminator_forward.7} parent=46 // pred_check_branch
          %1295 = sbr.rel (%p1293) target = $region59
        $region58: #{discriminator_forward.7} parent=46 // pred_region
          %v1296 = vld [vmem:[#allocation2] sm:$0xff]
          %v1297 = vld [vmem:[#allocation2 + $0x8] sm:$0xff]
          %v1298 = vld [vmem:[#allocation2 + $0x10] sm:$0xff]
          %v1299 = vld [vmem:[#allocation2 + $0x18] sm:$0xff]
          %v1300 = vld [vmem:[#allocation2 + $0x20] sm:$0xff]
          %v1301 = vld [vmem:[#allocation2 + $0x28] sm:$0xff]
          %v1302 = vld [vmem:[#allocation2 + $0x30] sm:$0xff]
          %v1303 = vld [vmem:[#allocation2 + $0x38] sm:$0xff]
          %v1304 = vld [vmem:[#allocation2 + $0x40] sm:$0xff]
          %v1305 = vld [vmem:[#allocation2 + $0x48] sm:$0xff]
          %v1306 = vld [vmem:[#allocation2 + $0x50] sm:$0xff]
          %v1307 = vld [vmem:[#allocation2 + $0x58] sm:$0xff]
          %v1308 = vld [vmem:[#allocation2 + $0x60] sm:$0xff]
          %v1309 = vld [vmem:[#allocation2 + $0x68] sm:$0xff]
          %v1310 = vld [vmem:[#allocation2 + $0x70] sm:$0xff]
          %v1311 = vld [vmem:[#allocation2 + $0x78] sm:$0xff]
          %v1312 = vld [vmem:[#allocation2 + $0x80] sm:$0xff]
          %v1313 = vld [vmem:[#allocation2 + $0x88] sm:$0xff]
          %v1314 = vld [vmem:[#allocation2 + $0x90] sm:$0xff]
          %v1315 = vld [vmem:[#allocation2 + $0x98] sm:$0xff]
          %v1316 = vld [vmem:[#allocation2 + $0xa0] sm:$0xff]
          %v1317 = vld [vmem:[#allocation2 + $0xa8] sm:$0xff]
          %v1318 = vld [vmem:[#allocation2 + $0xb0] sm:$0xff]
          %v1319 = vld [vmem:[#allocation2 + $0xb8] sm:$0xff]
          %v1320 = vld [vmem:[#allocation2 + $0xc0] sm:$0xff]
          %v1321 = vld [vmem:[#allocation2 + $0xc8] sm:$0xff]
          %v1322 = vld [vmem:[#allocation2 + $0xd0] sm:$0xff]
          %v1323 = vld [vmem:[#allocation2 + $0xd8] sm:$0xff]
          %v1324 = vld [vmem:[#allocation2 + $0xe0] sm:$0xff]
          %v1325 = vld [vmem:[#allocation2 + $0xe8] sm:$0xff]
          %v1326 = vld [vmem:[#allocation2 + $0xf0] sm:$0xff]
          %v1327 = vld [vmem:[#allocation2 + $0xf8] sm:$0xff]
          %v1328 = vadd.f32 %v1296, %v1298
          %v1329 = vadd.f32 %v1328, %v1300
          %v1330 = vadd.f32 %v1329, %v1302
          %v1331 = vadd.f32 %v1330, %v1304
          %v1332 = vadd.f32 %v1331, %v1306
          %v1333 = vadd.f32 %v1332, %v1308
          %v1334 = vadd.f32 %v1333, %v1310
          %v1335 = vadd.f32 %v1334, %v1312
          %v1336 = vadd.f32 %v1335, %v1314
          %v1337 = vadd.f32 %v1336, %v1316
          %v1338 = vadd.f32 %v1337, %v1318
          %v1339 = vadd.f32 %v1338, %v1320
          %v1340 = vadd.f32 %v1339, %v1322
          %v1341 = vadd.f32 %v1340, %v1324
          %v1342 = vadd.f32 %v1341, %v1326
          %v1343 = vrot.slane %v1342, 4
          %v1344 = vadd.f32 %v1342, %v1343
          %v1345 = vrot.slane %v1344, 2
          %v1346 = vadd.f32 %v1344, %v1345
          %v1347 = vrot.slane %v1346, 1
          %v1348 = vadd.f32 %v1346, %v1347
          %v1349 = vadd.f32 %v1297, %v1299
          %v1350 = vadd.f32 %v1349, %v1301
          %v1351 = vadd.f32 %v1350, %v1303
          %v1352 = vadd.f32 %v1351, %v1305
          %v1353 = vadd.f32 %v1352, %v1307
          %v1354 = vadd.f32 %v1353, %v1309
          %v1355 = vadd.f32 %v1354, %v1311
          %v1356 = vadd.f32 %v1355, %v1313
          %v1357 = vadd.f32 %v1356, %v1315
          %v1358 = vadd.f32 %v1357, %v1317
          %v1359 = vadd.f32 %v1358, %v1319
          %v1360 = vadd.f32 %v1359, %v1321
          %v1361 = vadd.f32 %v1360, %v1323
          %v1362 = vadd.f32 %v1361, %v1325
          %v1363 = vadd.f32 %v1362, %v1327
          %v1364 = vrot.slane %v1363, 4
          %v1365 = vadd.f32 %v1363, %v1364
          %v1366 = vrot.slane %v1365, 2
          %v1367 = vadd.f32 %v1365, %v1366
          %v1368 = vrot.slane %v1367, 1
          %v1369 = vadd.f32 %v1367, %v1368
          %v1370 = vmul.f32 %v1296, %v1296
          %v1371 = vmul.f32 %v1297, %v1297
          %v1372 = vmul.f32 %v1298, %v1298
          %v1373 = vmul.f32 %v1299, %v1299
          %v1374 = vmul.f32 %v1300, %v1300
          %v1375 = vmul.f32 %v1301, %v1301
          %v1376 = vmul.f32 %v1302, %v1302
          %v1377 = vmul.f32 %v1303, %v1303
          %v1378 = vmul.f32 %v1304, %v1304
          %v1379 = vmul.f32 %v1305, %v1305
          %v1380 = vmul.f32 %v1306, %v1306
          %v1381 = vmul.f32 %v1307, %v1307
          %v1382 = vmul.f32 %v1308, %v1308
          %v1383 = vmul.f32 %v1309, %v1309
          %v1384 = vmul.f32 %v1310, %v1310
          %v1385 = vmul.f32 %v1311, %v1311
          %v1386 = vmul.f32 %v1312, %v1312
          %v1387 = vmul.f32 %v1313, %v1313
          %v1388 = vmul.f32 %v1314, %v1314
          %v1389 = vmul.f32 %v1315, %v1315
          %v1390 = vmul.f32 %v1316, %v1316
          %v1391 = vmul.f32 %v1317, %v1317
          %v1392 = vmul.f32 %v1318, %v1318
          %v1393 = vmul.f32 %v1319, %v1319
          %v1394 = vmul.f32 %v1320, %v1320
          %v1395 = vmul.f32 %v1321, %v1321
          %v1396 = vmul.f32 %v1322, %v1322
          %v1397 = vmul.f32 %v1323, %v1323
          %v1398 = vmul.f32 %v1324, %v1324
          %v1399 = vmul.f32 %v1325, %v1325
          %v1400 = vmul.f32 %v1326, %v1326
          %v1401 = vmul.f32 %v1327, %v1327
          %v1402 = vadd.f32 %v1370, %v1372
          %v1403 = vadd.f32 %v1402, %v1374
          %v1404 = vadd.f32 %v1403, %v1376
          %v1405 = vadd.f32 %v1404, %v1378
          %v1406 = vadd.f32 %v1405, %v1380
          %v1407 = vadd.f32 %v1406, %v1382
          %v1408 = vadd.f32 %v1407, %v1384
          %v1409 = vadd.f32 %v1408, %v1386
          %v1410 = vadd.f32 %v1409, %v1388
          %v1411 = vadd.f32 %v1410, %v1390
          %v1412 = vadd.f32 %v1411, %v1392
          %v1413 = vadd.f32 %v1412, %v1394
          %v1414 = vadd.f32 %v1413, %v1396
          %v1415 = vadd.f32 %v1414, %v1398
          %v1416 = vadd.f32 %v1415, %v1400
          %v1417 = vrot.slane %v1416, 4
          %v1418 = vadd.f32 %v1416, %v1417
          %v1419 = vrot.slane %v1418, 2
          %v1420 = vadd.f32 %v1418, %v1419
          %v1421 = vrot.slane %v1420, 1
          %v1422 = vadd.f32 %v1420, %v1421
          %v1423 = vadd.f32 %v1371, %v1373
          %v1424 = vadd.f32 %v1423, %v1375
          %v1425 = vadd.f32 %v1424, %v1377
          %v1426 = vadd.f32 %v1425, %v1379
          %v1427 = vadd.f32 %v1426, %v1381
          %v1428 = vadd.f32 %v1427, %v1383
          %v1429 = vadd.f32 %v1428, %v1385
          %v1430 = vadd.f32 %v1429, %v1387
          %v1431 = vadd.f32 %v1430, %v1389
          %v1432 = vadd.f32 %v1431, %v1391
          %v1433 = vadd.f32 %v1432, %v1393
          %v1434 = vadd.f32 %v1433, %v1395
          %v1435 = vadd.f32 %v1434, %v1397
          %v1436 = vadd.f32 %v1435, %v1399
          %v1437 = vadd.f32 %v1436, %v1401
          %v1438 = vrot.slane %v1437, 4
          %v1439 = vadd.f32 %v1437, %v1438
          %v1440 = vrot.slane %v1439, 2
          %v1441 = vadd.f32 %v1439, %v1440
          %v1442 = vrot.slane %v1441, 1
          %v1443 = vadd.f32 %v1441, %v1442
          %vm1444 = vcmask 1040384
          %v1445 = vsel %vm1444, %v1348, %v1422
          %v1446 = vsel %vm1444, %v1369, %v1443
          %vm1447 = vcmask 1041408
          %v1448 = vsel %vm1447, %v1445, 0.0
          %v1449 = vsel %vm1447, %v1446, 0.0
          %1450 = vst [vmem:[%s356] sm:$0xff] %v1448
          %1451 = vst [vmem:[%s356 + $0x8] sm:$0xff] %v1449
          %1452 = vst [vmem:[%s345] sm:$0xff] %v1296
          %1453 = vst [vmem:[%s345 + $0x8] sm:$0xff] %v1297
          %1454 = vst [vmem:[%s345 + $0x10] sm:$0xff] %v1298
          %1455 = vst [vmem:[%s345 + $0x18] sm:$0xff] %v1299
          %1456 = vst [vmem:[%s345 + $0x20] sm:$0xff] %v1300
          %1457 = vst [vmem:[%s345 + $0x28] sm:$0xff] %v1301
          %1458 = vst [vmem:[%s345 + $0x30] sm:$0xff] %v1302
          %1459 = vst [vmem:[%s345 + $0x38] sm:$0xff] %v1303
          %1460 = vst [vmem:[%s345 + $0x40] sm:$0xff] %v1304
          %1461 = vst [vmem:[%s345 + $0x48] sm:$0xff] %v1305
          %1462 = vst [vmem:[%s345 + $0x50] sm:$0xff] %v1306
          %1463 = vst [vmem:[%s345 + $0x58] sm:$0xff] %v1307
          %1464 = vst [vmem:[%s345 + $0x60] sm:$0xff] %v1308
          %1465 = vst [vmem:[%s345 + $0x68] sm:$0xff] %v1309
          %1466 = vst [vmem:[%s345 + $0x70] sm:$0xff] %v1310
          %1467 = vst [vmem:[%s345 + $0x78] sm:$0xff] %v1311
          %1468 = vst [vmem:[%s345 + $0x80] sm:$0xff] %v1312
          %1469 = vst [vmem:[%s345 + $0x88] sm:$0xff] %v1313
          %1470 = vst [vmem:[%s345 + $0x90] sm:$0xff] %v1314
          %1471 = vst [vmem:[%s345 + $0x98] sm:$0xff] %v1315
          %1472 = vst [vmem:[%s345 + $0xa0] sm:$0xff] %v1316
          %1473 = vst [vmem:[%s345 + $0xa8] sm:$0xff] %v1317
          %1474 = vst [vmem:[%s345 + $0xb0] sm:$0xff] %v1318
          %1475 = vst [vmem:[%s345 + $0xb8] sm:$0xff] %v1319
          %1476 = vst [vmem:[%s345 + $0xc0] sm:$0xff] %v1320
          %1477 = vst [vmem:[%s345 + $0xc8] sm:$0xff] %v1321
          %1478 = vst [vmem:[%s345 + $0xd0] sm:$0xff] %v1322
          %1479 = vst [vmem:[%s345 + $0xd8] sm:$0xff] %v1323
          %1480 = vst [vmem:[%s345 + $0xe0] sm:$0xff] %v1324
          %1481 = vst [vmem:[%s345 + $0xe8] sm:$0xff] %v1325
          %1482 = vst [vmem:[%s345 + $0xf0] sm:$0xff] %v1326
          %1483 = vst [vmem:[%s345 + $0xf8] sm:$0xff] %v1327
        $region59: #{discriminator_forward.7} parent=46 // pred_fallthru
          _
        %s1484 = smul.u32 16, %s20
        %s1485 = smul.u32 2, %s21
        %p1486 = scmp.lt.s32.totalorder %s1484, 15
        %s1487 = scalar_select %p1486, %s1484, 15
        %p1488 = scmp.lt.s32.totalorder %s1485, 1
        %s1489 = scalar_select %p1488, %s1485, 1
        %s1490 = smul.addr %s1487, 2
        %s1491 = sadd.s32 %s1489, %s1490
        %s1492 = smul.addr %s1491, 8
        %s1493 = scalar_lea.vmem %s2, %s1492
        %s1494 = smul.u32 2, %s21
        %p1495 = scmp.lt.s32.totalorder %s20, 0
        %s1496 = scalar_select %p1495, %s20, 0
        %p1497 = scmp.lt.s32.totalorder %s1494, 1
        %s1498 = scalar_select %p1497, %s1494, 1
        %s1499 = smul.addr %s1496, 2
        %s1500 = sadd.s32 %s1498, %s1499
        %s1501 = smul.addr %s1500, 8
        %s1502 = scalar_lea.vmem %s3, %s1501
        // Predicated region
        $region60: #{discriminator_forward.7} parent=46 // pred_check
          %p1503 = pneg %p110
        $region61: #{discriminator_forward.7} parent=46 // pred_check_branch
          %1505 = sbr.rel (%p1503) target = $region63
        $region62: #{discriminator_forward.7} parent=46 // pred_region
          %s1506 = smul.u32 16, %s20
          %s1507 = smul.u32 2, %s21
        $region63: #{discriminator_forward.7} parent=46 // pred_fallthru
          _
        // Predicated region
        $region64: #{discriminator_forward.7} parent=46 // pred_check
          %p1508 = pneg %p138
        $region65: #{discriminator_forward.7} parent=46 // pred_check_branch
          %1510 = sbr.rel (%p1508) target = $region67
        $region66: #{discriminator_forward.7} parent=46 // pred_region
          %s1511 = smul.u32 2, %s21
        $region67: #{discriminator_forward.7} parent=46 // pred_fallthru
          _
        // Predicated region
        $region68: #{discriminator_forward.7} parent=46 // pred_check
          %p1512 = pneg %p110
        $region69: #{discriminator_forward.7} parent=46 // pred_check_branch
          %1514 = sbr.rel (%p1512) target = $region71
        $region70: #{discriminator_forward.7} parent=46 // pred_region
          %s1515 = smul.u32 16, %s20
          %s1516 = smul.u32 2, %s21
          %p1517 = scmp.lt.s32.totalorder %s1515, 15
          %s1518 = scalar_select %p1517, %s1515, 15
          %p1519 = scmp.lt.s32.totalorder %s1516, 1
          %s1520 = scalar_select %p1519, %s1516, 1
          %s1521 = smul.addr %s1518, 2
          %s1522 = sadd.s32 %s1520, %s1521
          %s1523 = smul.addr %s1522, 8
          %s1524 = scalar_lea.vmem %s2, %s1523
        $region71: #{discriminator_forward.7} parent=46 // pred_fallthru
          _
        // Predicated region
        $region72: #{discriminator_forward.7} parent=46 // pred_check
          %p1525 = pneg %p138
        $region73: #{discriminator_forward.7} parent=46 // pred_check_branch
          %1527 = sbr.rel (%p1525) target = $region75
        $region74: #{discriminator_forward.7} parent=46 // pred_region
          %s1528 = smul.u32 2, %s21
          %p1529 = scmp.lt.s32.totalorder %s20, 0
          %s1530 = scalar_select %p1529, %s20, 0
          %p1531 = scmp.lt.s32.totalorder %s1528, 1
          %s1532 = scalar_select %p1531, %s1528, 1
          %s1533 = smul.addr %s1530, 2
          %s1534 = sadd.s32 %s1532, %s1533
          %s1535 = smul.addr %s1534, 8
          %s1536 = scalar_lea.vmem %s3, %s1535
        $region75: #{discriminator_forward.7} parent=46 // pred_fallthru
          _
      $region47: #{discriminator_forward.7} parent=5 // pred_fallthru
        _
      %p1537 = scmp.le.s32.totalorder 2, %s10
      // Predicated region
      $region76: #{discriminator_forward.7} parent=5 // pred_check
        %p1538 = pneg %p1537
      $region77: #{discriminator_forward.7} parent=5 // pred_check_branch
        %1540 = sbr.rel (%p1538) target = $region79
      $region78: #{discriminator_forward.7} parent=5 // pred_region
        %s1541 = ssub.s32 %s10, 2
      $region79: #{discriminator_forward.7} parent=5 // pred_fallthru
        _
    $region6: #{discriminator_forward.7} parent=1 // loop_footer
      %s14 = sadd.s32 1, %s10
    $region7: #{discriminator_forward.7} parent=1 // loop_footer_branch
      %9 = sbr.rel target = $region3
    $region8: #{discriminator_forward.7} parent=1 // loop_exit
      _

// kernel: discriminator_forward.9
$region0: #{discriminator_forward.9}
  #allocation0 [shape = 'u32[]', space=smem, size = 0x4, offset = 0x4, fixed_abs, tag = 'smem constant byte address 0x4 - core index']
  #allocation1 [shape = 'u32[144,128]{1,0:T(1,128)}', space=vmem, size = 0x12000, scoped, tag = 'internal scratch']
  #allocation2 [shape = 'f32[32,256]{1,0:T(8,128)}', space=vmem, size = 0x8000, scoped, tag = 'scratch operand']
  %s0 = inlined_call_operand.vmem [shape: bf16[32,4096], index: 0, kind: input, shape index: {}]
  %s1 = inlined_call_operand.vmem [shape: bf16[4096,512], index: 1, kind: input, shape index: {}]
  %s2 = inlined_call_operand.vmem [shape: f32[32,512], index: 2, kind: output, shape index: {0}]
  %s3 = inlined_call_operand.vmem [shape: f32[1,8,512], index: 3, kind: output, shape index: {1}]
  %4 = xla_tuple %s2, %s3
  %s5 = sld [smem:[#allocation0]]
  $region137: #{discriminator_forward.9} parent=0
    _
  %s7 = ssub.s32 1, %s5
  %s8 = scalar_select 0, %s7, %s5
  $region1: #{discriminator_forward.9} parent=0
    #allocation3 [shape = 'u8[65536]{0}', space=vmem, size = 0x10000, scoped, tag = 'input window, operand 0']
    #allocation4 [shape = 'u8[524288]{0}', space=vmem, size = 0x80000, scoped, tag = 'input window, operand 1']
    #allocation5 [shape = 'u8[65536]{0}', space=vmem, size = 0x10000, scoped, tag = 'output window, operand 0']
    loop: start=0, step=1, limit=18
    $region2: #{discriminator_forward.9} parent=1 // loop_pre_header
      _
    $region3: #{discriminator_forward.9} parent=1 // loop_header
      %s10 = sphi 0, %s14
      %p11 = scmp.ge.s32.totalorder %s10, 18
      %s17 = sphi 0, %s36
      %s18 = sphi 0, %s32
      %s19 = sphi 0, %s28
      %s20 = sphi 0, %s17
      %s21 = sphi 0, %s18
      %s22 = sphi 0, %s19
      %s23 = sphi 0, %s20
      %s24 = sphi 0, %s21
      %s25 = sphi 0, %s22
      %s41 = sphi 0, %s43
      %s44 = sphi 0, %s41
      %s45 = sphi 0, %s44
      %s61 = sphi 0, %s45
      %s69 = sphi 0, %s71
      %s72 = sphi 0, %s69
      %s73 = sphi 0, %s72
      %s89 = sphi 0, %s73
      %s97 = sphi 0, %s99
      %s100 = sphi 0, %s97
      %s101 = sphi 0, %s100
      %s117 = sphi 0, %s101
      %s125 = sphi 0, %s127
      %s128 = sphi 0, %s125
      %s129 = sphi 0, %s128
      %s145 = sphi 0, %s129
    $region4: #{discriminator_forward.9} parent=1 // loop_header_branch
      %13 = sbr.rel (%p11) target = $region8
    $region5: #{discriminator_forward.9} parent=1 // loop_body
      %s15 = ssub.s32 %s10, 1
      %s16 = ssub.s32 %s10, 2
      %s26 = sadd.s32 1, %s19
      %p27 = scmp.ge.s32.totalorder %s26, 8
      %s28 = scalar_select %p27, 0, %s26
      %s29 = sadd.s32 1, %s18
      %s30 = scalar_select %p27, %s29, %s18
      %p31 = scmp.ge.s32.totalorder %s30, 2
      %s32 = scalar_select %p31, 0, %s30
      %s33 = sadd.s32 1, %s17
      %s34 = scalar_select %p31, %s33, %s17
      %p35 = scmp.ge.s32.totalorder %s34, 1
      %s36 = scalar_select %p35, 0, %s34
      %s37 = ssub.s32 %s17, %s36
      %s38 = ssub.s32 %s19, %s28
      %s39 = sor.u32 %s37, %s38
      %p40 = scmp.eq.s32.totalorder %s39, 0
      %s42 = sadd.s32 %s41, 1
      %s43 = scalar_select %p40, %s41, %s42
      %p46 = pneg %p40
      %p47 = scmp.eq.s32.totalorder %s10, 15
      %p48 = por %p46, %p47
      %p49 = scmp.ne.s32.totalorder %s41, %s44
      %p50 = scmp.eq.s32.totalorder %s10, 0
      %p51 = por %p49, %p50
      %p52 = scmp.ne.s32.totalorder %s41, %s44
      %p53 = scmp.eq.s32.totalorder %s15, 15
      %p54 = por %p52, %p53
      %p55 = scmp.ne.s32.totalorder %s44, %s45
      %p56 = scmp.eq.s32.totalorder %s15, 0
      %p57 = por %p55, %p56
      %p58 = scmp.ne.s32.totalorder %s44, %s45
      %p59 = scmp.eq.s32.totalorder %s16, 15
      %p60 = por %p58, %p59
      %p62 = scmp.ne.s32.totalorder %s45, %s61
      %p63 = scmp.eq.s32.totalorder %s16, 0
      %p64 = por %p62, %p63
      %s65 = ssub.s32 %s19, %s28
      %s66 = ssub.s32 %s18, %s32
      %s67 = sor.u32 %s65, %s66
      %p68 = scmp.eq.s32.totalorder %s67, 0
      %s70 = sadd.s32 %s69, 1
      %s71 = scalar_select %p68, %s69, %s70
      %p74 = pneg %p68
      %p75 = scmp.eq.s32.totalorder %s10, 15
      %p76 = por %p74, %p75
      %p77 = scmp.ne.s32.totalorder %s69, %s72
      %p78 = scmp.eq.s32.totalorder %s10, 0
      %p79 = por %p77, %p78
      %p80 = scmp.ne.s32.totalorder %s69, %s72
      %p81 = scmp.eq.s32.totalorder %s15, 15
      %p82 = por %p80, %p81
      %p83 = scmp.ne.s32.totalorder %s72, %s73
      %p84 = scmp.eq.s32.totalorder %s15, 0
      %p85 = por %p83, %p84
      %p86 = scmp.ne.s32.totalorder %s72, %s73
      %p87 = scmp.eq.s32.totalorder %s16, 15
      %p88 = por %p86, %p87
      %p90 = scmp.ne.s32.totalorder %s73, %s89
      %p91 = scmp.eq.s32.totalorder %s16, 0
      %p92 = por %p90, %p91
      %s93 = ssub.s32 %s17, %s36
      %s94 = ssub.s32 %s18, %s32
      %s95 = sor.u32 %s93, %s94
      %p96 = scmp.eq.s32.totalorder %s95, 0
      %s98 = sadd.s32 %s97, 1
      %s99 = scalar_select %p96, %s97, %s98
      %p102 = pneg %p96
      %p103 = scmp.eq.s32.totalorder %s10, 15
      %p104 = por %p102, %p103
      %p105 = scmp.ne.s32.totalorder %s97, %s100
      %p106 = scmp.eq.s32.totalorder %s10, 0
      %p107 = por %p105, %p106
      %p108 = scmp.ne.s32.totalorder %s97, %s100
      %p109 = scmp.eq.s32.totalorder %s15, 15
      %p110 = por %p108, %p109
      %p111 = scmp.ne.s32.totalorder %s100, %s101
      %p112 = scmp.eq.s32.totalorder %s15, 0
      %p113 = por %p111, %p112
      %p114 = scmp.ne.s32.totalorder %s100, %s101
      %p115 = scmp.eq.s32.totalorder %s16, 15
      %p116 = por %p114, %p115
      %p118 = scmp.ne.s32.totalorder %s101, %s117
      %p119 = scmp.eq.s32.totalorder %s16, 0
      %p120 = por %p118, %p119
      %s121 = ssub.s32 %s17, %s36
      %s122 = ssub.s32 %s18, %s32
      %s123 = sor.u32 %s121, %s122
      %p124 = scmp.eq.s32.totalorder %s123, 0
      %s126 = sadd.s32 %s125, 1
      %s127 = scalar_select %p124, %s125, %s126
      %p130 = pneg %p124
      %p131 = scmp.eq.s32.totalorder %s10, 15
      %p132 = por %p130, %p131
      %p133 = scmp.ne.s32.totalorder %s125, %s128
      %p134 = scmp.eq.s32.totalorder %s10, 0
      %p135 = por %p133, %p134
      %p136 = scmp.ne.s32.totalorder %s125, %s128
      %p137 = scmp.eq.s32.totalorder %s15, 15
      %p138 = por %p136, %p137
      %p139 = scmp.ne.s32.totalorder %s128, %s129
      %p140 = scmp.eq.s32.totalorder %s15, 0
      %p141 = por %p139, %p140
      %p142 = scmp.ne.s32.totalorder %s128, %s129
      %p143 = scmp.eq.s32.totalorder %s16, 15
      %p144 = por %p142, %p143
      %p146 = scmp.ne.s32.totalorder %s129, %s145
      %p147 = scmp.eq.s32.totalorder %s16, 0
      %p148 = por %p146, %p147
      %p149 = scmp.le.s32.totalorder 1, %s10
      %p150 = scmp.lt.s32.totalorder %s10, 17
      %p151 = pnand %p149, %p150
      %p152 = pneg %p151
      // Predicated region
      $region9: #{discriminator_forward.9} parent=5 // pred_check
        _
      $region10: #{discriminator_forward.9} parent=5 // pred_check_branch
        %154 = sbr.rel (%p151) target = $region12
      $region11: #{discriminator_forward.9} parent=5 // pred_region
        %s155 = ssub.s32 %s10, 1
      $region12: #{discriminator_forward.9} parent=5 // pred_fallthru
        _
      %p156 = scmp.lt.s32.totalorder %s10, 16
      // Predicated region
      $region13: #{discriminator_forward.9} parent=5 // pred_check
        %p157 = pneg %p156
      $region14: #{discriminator_forward.9} parent=5 // pred_check_branch
        %159 = sbr.rel (%p157) target = $region16
      $region15: #{discriminator_forward.9} parent=5 // pred_region
        // Predicated region
        $region17: #{discriminator_forward.9} parent=15 // pred_check
          %p160 = pneg %p51
        $region18: #{discriminator_forward.9} parent=15 // pred_check_branch
          %162 = sbr.rel (%p160) target = $region20
        $region19: #{discriminator_forward.9} parent=15 // pred_region
          %s163 = sand.u32 %s41, 1
          %s164 = sand.u32 %s41, 1
          %s165 = smul.addr %s164, 64
          %s166 = scalar_lea.vmem [#allocation3], %s165
          %s167 = smul.u32 4, %s17
          %s168 = smul.u32 4, %s19
          %s169 = smul.addr %s167, 32
          %s170 = sadd.s32 %s168, %s169
          %s171 = smul.addr %s170, 4
          %s172 = scalar_lea.vmem %s0, %s171
          // Predicated region
          $region21: #{discriminator_forward.9} parent=19 // pred_check
            _
          $region22: #{discriminator_forward.9} parent=19 // pred_check_branch
            %174 = sbr.rel (0) target = $region24
          $region23: #{discriminator_forward.9} parent=19 // pred_region
            // Predicated region
            $region25: #{discriminator_forward.9} parent=23 // pred_check
              _
            $region26: #{discriminator_forward.9} parent=23 // pred_check_branch
              %176 = sbr.rel (0) target = $region28
            $region27: #{discriminator_forward.9} parent=23 // pred_region
              loop: start=0, step=1, limit=1
              $region29: #{discriminator_forward.9} parent=27 // loop_pre_header
                _
              $region30: #{discriminator_forward.9} parent=27 // loop_header
                %s178 = sphi 0, %s182
                %p179 = scmp.ge.s32.totalorder %s178, 1
                %s183 = sphi %s172, %s172
                %s184 = sphi %s166, %s166
              $region31: #{discriminator_forward.9} parent=27 // loop_header_branch
                %181 = sbr.rel (%p179) target = $region35
              $region32: #{discriminator_forward.9} parent=27 // loop_body
                %v185 = vld [vmem:[%s183] sm:$0xff]
                %186 = vst [vmem:[%s184] sm:$0xff] %v185
                %v187 = vld [vmem:[%s183 + $0x8] sm:$0xff]
                %188 = vst [vmem:[%s184 + $0x8] sm:$0xff] %v187
                %v189 = vld [vmem:[%s183 + $0x80] sm:$0xff]
                %190 = vst [vmem:[%s184 + $0x10] sm:$0xff] %v189
                %v191 = vld [vmem:[%s183 + $0x88] sm:$0xff]
                %192 = vst [vmem:[%s184 + $0x18] sm:$0xff] %v191
                %v193 = vld [vmem:[%s183 + $0x100] sm:$0xff]
                %194 = vst [vmem:[%s184 + $0x20] sm:$0xff] %v193
                %v195 = vld [vmem:[%s183 + $0x108] sm:$0xff]
                %196 = vst [vmem:[%s184 + $0x28] sm:$0xff] %v195
                %v197 = vld [vmem:[%s183 + $0x180] sm:$0xff]
                %198 = vst [vmem:[%s184 + $0x30] sm:$0xff] %v197
                %v199 = vld [vmem:[%s183 + $0x188] sm:$0xff]
                %200 = vst [vmem:[%s184 + $0x38] sm:$0xff] %v199
              $region33: #{discriminator_forward.9} parent=27 // loop_footer
                %s182 = sadd.s32 1, %s178
              $region34: #{discriminator_forward.9} parent=27 // loop_footer_branch
                %177 = sbr.rel target = $region30
              $region35: #{discriminator_forward.9} parent=27 // loop_exit
                _
            $region28: #{discriminator_forward.9} parent=23 // pred_fallthru
              _
            // Predicated region
            $region36: #{discriminator_forward.9} parent=23 // pred_check
              _
            $region37: #{discriminator_forward.9} parent=23 // pred_check_branch
              %202 = sbr.rel target = $region39
            $region38: #{discriminator_forward.9} parent=23 // pred_region
              _
            $region39: #{discriminator_forward.9} parent=23 // pred_fallthru
              _
          $region24: #{discriminator_forward.9} parent=19 // pred_fallthru
            _
          %203 = vnop
        $region20: #{discriminator_forward.9} parent=15 // pred_fallthru
          _
        // Predicated region
        $region40: #{discriminator_forward.9} parent=15 // pred_check
          %p204 = pneg %p79
        $region41: #{discriminator_forward.9} parent=15 // pred_check_branch
          %206 = sbr.rel (%p204) target = $region43
        $region42: #{discriminator_forward.9} parent=15 // pred_region
          %s207 = sand.u32 %s69, 1
          %s208 = sand.u32 %s69, 1
          %s209 = smul.addr %s208, 512
          %s210 = scalar_lea.vmem [#allocation4], %s209
          %s211 = smul.u32 64, %s19
          %s212 = smul.u32 2, %s18
          %s213 = smul.addr %s211, 4
          %s214 = sadd.s32 %s212, %s213
          %s215 = smul.addr %s214, 4
          %s216 = scalar_lea.vmem %s1, %s215
          // Predicated region
          $region44: #{discriminator_forward.9} parent=42 // pred_check
            _
          $region45: #{discriminator_forward.9} parent=42 // pred_check_branch
            %218 = sbr.rel (0) target = $region47
          $region46: #{discriminator_forward.9} parent=42 // pred_region
            // Predicated region
            $region48: #{discriminator_forward.9} parent=46 // pred_check
              _
            $region49: #{discriminator_forward.9} parent=46 // pred_check_branch
              %220 = sbr.rel (0) target = $region51
            $region50: #{discriminator_forward.9} parent=46 // pred_region
              // Predicated region
              $region63: #{discriminator_forward.9} parent=50 // pred_check
                _
              $region64: #{discriminator_forward.9} parent=50 // pred_check_branch
                %361 = sbr.rel (0) target = $region66
              $region65: #{discriminator_forward.9} parent=50 // pred_region
                loop: start=0, step=1, limit=1
                $region67: #{discriminator_forward.9} parent=65 // loop_pre_header
                  _
                $region68: #{discriminator_forward.9} parent=65 // loop_header
                  %s363 = sphi 0, %s367
                  %p364 = scmp.ge.s32.totalorder %s363, 1
                  %s368 = sphi %s216, %s216
                  %s369 = sphi %s210, %s210
                $region69: #{discriminator_forward.9} parent=65 // loop_header_branch
                  %366 = sbr.rel (%p364) target = $region73
                $region70: #{discriminator_forward.9} parent=65 // loop_body
                  %v370 = vld [vmem:[%s368] sm:$0xff]
                  %371 = vst [vmem:[%s369] sm:$0xff] %v370
                  %v372 = vld [vmem:[%s368 + $0x10] sm:$0xff]
                  %373 = vst [vmem:[%s369 + $0x8] sm:$0xff] %v372
                  %v374 = vld [vmem:[%s368 + $0x20] sm:$0xff]
                  %375 = vst [vmem:[%s369 + $0x10] sm:$0xff] %v374
                  %v376 = vld [vmem:[%s368 + $0x30] sm:$0xff]
                  %377 = vst [vmem:[%s369 + $0x18] sm:$0xff] %v376
                  %v378 = vld [vmem:[%s368 + $0x40] sm:$0xff]
                  %379 = vst [vmem:[%s369 + $0x20] sm:$0xff] %v378
                  %v380 = vld [vmem:[%s368 + $0x50] sm:$0xff]
                  %381 = vst [vmem:[%s369 + $0x28] sm:$0xff] %v380
                  %v382 = vld [vmem:[%s368 + $0x60] sm:$0xff]
                  %383 = vst [vmem:[%s369 + $0x30] sm:$0xff] %v382
                  %v384 = vld [vmem:[%s368 + $0x70] sm:$0xff]
                  %385 = vst [vmem:[%s369 + $0x38] sm:$0xff] %v384
                  %v386 = vld [vmem:[%s368 + $0x80] sm:$0xff]
                  %387 = vst [vmem:[%s369 + $0x40] sm:$0xff] %v386
                  %v388 = vld [vmem:[%s368 + $0x90] sm:$0xff]
                  %389 = vst [vmem:[%s369 + $0x48] sm:$0xff] %v388
                  %v390 = vld [vmem:[%s368 + $0xa0] sm:$0xff]
                  %391 = vst [vmem:[%s369 + $0x50] sm:$0xff] %v390
                  %v392 = vld [vmem:[%s368 + $0xb0] sm:$0xff]
                  %393 = vst [vmem:[%s369 + $0x58] sm:$0xff] %v392
                  %v394 = vld [vmem:[%s368 + $0xc0] sm:$0xff]
                  %395 = vst [vmem:[%s369 + $0x60] sm:$0xff] %v394
                  %v396 = vld [vmem:[%s368 + $0xd0] sm:$0xff]
                  %397 = vst [vmem:[%s369 + $0x68] sm:$0xff] %v396
                  %v398 = vld [vmem:[%s368 + $0xe0] sm:$0xff]
                  %399 = vst [vmem:[%s369 + $0x70] sm:$0xff] %v398
                  %v400 = vld [vmem:[%s368 + $0xf0] sm:$0xff]
                  %401 = vst [vmem:[%s369 + $0x78] sm:$0xff] %v400
                  %v402 = vld [vmem:[%s368 + $0x100] sm:$0xff]
                  %403 = vst [vmem:[%s369 + $0x80] sm:$0xff] %v402
                  %v404 = vld [vmem:[%s368 + $0x110] sm:$0xff]
                  %405 = vst [vmem:[%s369 + $0x88] sm:$0xff] %v404
                  %v406 = vld [vmem:[%s368 + $0x120] sm:$0xff]
                  %407 = vst [vmem:[%s369 + $0x90] sm:$0xff] %v406
                  %v408 = vld [vmem:[%s368 + $0x130] sm:$0xff]
                  %409 = vst [vmem:[%s369 + $0x98] sm:$0xff] %v408
                  %v410 = vld [vmem:[%s368 + $0x140] sm:$0xff]
                  %411 = vst [vmem:[%s369 + $0xa0] sm:$0xff] %v410
                  %v412 = vld [vmem:[%s368 + $0x150] sm:$0xff]
                  %413 = vst [vmem:[%s369 + $0xa8] sm:$0xff] %v412
                  %v414 = vld [vmem:[%s368 + $0x160] sm:$0xff]
                  %415 = vst [vmem:[%s369 + $0xb0] sm:$0xff] %v414
                  %v416 = vld [vmem:[%s368 + $0x170] sm:$0xff]
                  %417 = vst [vmem:[%s369 + $0xb8] sm:$0xff] %v416
                  %v418 = vld [vmem:[%s368 + $0x180] sm:$0xff]
                  %419 = vst [vmem:[%s369 + $0xc0] sm:$0xff] %v418
                  %v420 = vld [vmem:[%s368 + $0x190] sm:$0xff]
                  %421 = vst [vmem:[%s369 + $0xc8] sm:$0xff] %v420
                  %v422 = vld [vmem:[%s368 + $0x1a0] sm:$0xff]
                  %423 = vst [vmem:[%s369 + $0xd0] sm:$0xff] %v422
                  %v424 = vld [vmem:[%s368 + $0x1b0] sm:$0xff]
                  %425 = vst [vmem:[%s369 + $0xd8] sm:$0xff] %v424
                  %v426 = vld [vmem:[%s368 + $0x1c0] sm:$0xff]
                  %427 = vst [vmem:[%s369 + $0xe0] sm:$0xff] %v426
                  %v428 = vld [vmem:[%s368 + $0x1d0] sm:$0xff]
                  %429 = vst [vmem:[%s369 + $0xe8] sm:$0xff] %v428
                  %v430 = vld [vmem:[%s368 + $0x1e0] sm:$0xff]
                  %431 = vst [vmem:[%s369 + $0xf0] sm:$0xff] %v430
                  %v432 = vld [vmem:[%s368 + $0x1f0] sm:$0xff]
                  %433 = vst [vmem:[%s369 + $0xf8] sm:$0xff] %v432
                  %v434 = vld [vmem:[%s368 + $0x200] sm:$0xff]
                  %435 = vst [vmem:[%s369 + $0x100] sm:$0xff] %v434
                  %v436 = vld [vmem:[%s368 + $0x210] sm:$0xff]
                  %437 = vst [vmem:[%s369 + $0x108] sm:$0xff] %v436
                  %v438 = vld [vmem:[%s368 + $0x220] sm:$0xff]
                  %439 = vst [vmem:[%s369 + $0x110] sm:$0xff] %v438
                  %v440 = vld [vmem:[%s368 + $0x230] sm:$0xff]
                  %441 = vst [vmem:[%s369 + $0x118] sm:$0xff] %v440
                  %v442 = vld [vmem:[%s368 + $0x240] sm:$0xff]
                  %443 = vst [vmem:[%s369 + $0x120] sm:$0xff] %v442
                  %v444 = vld [vmem:[%s368 + $0x250] sm:$0xff]
                  %445 = vst [vmem:[%s369 + $0x128] sm:$0xff] %v444
                  %v446 = vld [vmem:[%s368 + $0x260] sm:$0xff]
                  %447 = vst [vmem:[%s369 + $0x130] sm:$0xff] %v446
                  %v448 = vld [vmem:[%s368 + $0x270] sm:$0xff]
                  %449 = vst [vmem:[%s369 + $0x138] sm:$0xff] %v448
                  %v450 = vld [vmem:[%s368 + $0x280] sm:$0xff]
                  %451 = vst [vmem:[%s369 + $0x140] sm:$0xff] %v450
                  %v452 = vld [vmem:[%s368 + $0x290] sm:$0xff]
                  %453 = vst [vmem:[%s369 + $0x148] sm:$0xff] %v452
                  %v454 = vld [vmem:[%s368 + $0x2a0] sm:$0xff]
                  %455 = vst [vmem:[%s369 + $0x150] sm:$0xff] %v454
                  %v456 = vld [vmem:[%s368 + $0x2b0] sm:$0xff]
                  %457 = vst [vmem:[%s369 + $0x158] sm:$0xff] %v456
                  %v458 = vld [vmem:[%s368 + $0x2c0] sm:$0xff]
                  %459 = vst [vmem:[%s369 + $0x160] sm:$0xff] %v458
                  %v460 = vld [vmem:[%s368 + $0x2d0] sm:$0xff]
                  %461 = vst [vmem:[%s369 + $0x168] sm:$0xff] %v460
                  %v462 = vld [vmem:[%s368 + $0x2e0] sm:$0xff]
                  %463 = vst [vmem:[%s369 + $0x170] sm:$0xff] %v462
                  %v464 = vld [vmem:[%s368 + $0x2f0] sm:$0xff]
                  %465 = vst [vmem:[%s369 + $0x178] sm:$0xff] %v464
                  %v466 = vld [vmem:[%s368 + $0x300] sm:$0xff]
                  %467 = vst [vmem:[%s369 + $0x180] sm:$0xff] %v466
                  %v468 = vld [vmem:[%s368 + $0x310] sm:$0xff]
                  %469 = vst [vmem:[%s369 + $0x188] sm:$0xff] %v468
                  %v470 = vld [vmem:[%s368 + $0x320] sm:$0xff]
                  %471 = vst [vmem:[%s369 + $0x190] sm:$0xff] %v470
                  %v472 = vld [vmem:[%s368 + $0x330] sm:$0xff]
                  %473 = vst [vmem:[%s369 + $0x198] sm:$0xff] %v472
                  %v474 = vld [vmem:[%s368 + $0x340] sm:$0xff]
                  %475 = vst [vmem:[%s369 + $0x1a0] sm:$0xff] %v474
                  %v476 = vld [vmem:[%s368 + $0x350] sm:$0xff]
                  %477 = vst [vmem:[%s369 + $0x1a8] sm:$0xff] %v476
                  %v478 = vld [vmem:[%s368 + $0x360] sm:$0xff]
                  %479 = vst [vmem:[%s369 + $0x1b0] sm:$0xff] %v478
                  %v480 = vld [vmem:[%s368 + $0x370] sm:$0xff]
                  %481 = vst [vmem:[%s369 + $0x1b8] sm:$0xff] %v480
                  %v482 = vld [vmem:[%s368 + $0x380] sm:$0xff]
                  %483 = vst [vmem:[%s369 + $0x1c0] sm:$0xff] %v482
                  %v484 = vld [vmem:[%s368 + $0x390] sm:$0xff]
                  %485 = vst [vmem:[%s369 + $0x1c8] sm:$0xff] %v484
                  %v486 = vld [vmem:[%s368 + $0x3a0] sm:$0xff]
                  %487 = vst [vmem:[%s369 + $0x1d0] sm:$0xff] %v486
                  %v488 = vld [vmem:[%s368 + $0x3b0] sm:$0xff]
                  %489 = vst [vmem:[%s369 + $0x1d8] sm:$0xff] %v488
                  %v490 = vld [vmem:[%s368 + $0x3c0] sm:$0xff]
                  %491 = vst [vmem:[%s369 + $0x1e0] sm:$0xff] %v490
                  %v492 = vld [vmem:[%s368 + $0x3d0] sm:$0xff]
                  %493 = vst [vmem:[%s369 + $0x1e8] sm:$0xff] %v492
                  %v494 = vld [vmem:[%s368 + $0x3e0] sm:$0xff]
                  %495 = vst [vmem:[%s369 + $0x1f0] sm:$0xff] %v494
                  %v496 = vld [vmem:[%s368 + $0x3f0] sm:$0xff]
                  %497 = vst [vmem:[%s369 + $0x1f8] sm:$0xff] %v496
                $region71: #{discriminator_forward.9} parent=65 // loop_footer
                  %s367 = sadd.s32 1, %s363
                $region72: #{discriminator_forward.9} parent=65 // loop_footer_branch
                  %362 = sbr.rel target = $region68
                $region73: #{discriminator_forward.9} parent=65 // loop_exit
                  _
              $region66: #{discriminator_forward.9} parent=50 // pred_fallthru
                _
              // Predicated region
              $region74: #{discriminator_forward.9} parent=50 // pred_check
                _
              $region75: #{discriminator_forward.9} parent=50 // pred_check_branch
                %499 = sbr.rel target = $region77
              $region76: #{discriminator_forward.9} parent=50 // pred_region
                _
              $region77: #{discriminator_forward.9} parent=50 // pred_fallthru
                _
            $region51: #{discriminator_forward.9} parent=46 // pred_fallthru
              _
            // Predicated region
            $region52: #{discriminator_forward.9} parent=46 // pred_check
              _
            $region53: #{discriminator_forward.9} parent=46 // pred_check_branch
              %222 = sbr.rel target = $region55
            $region54: #{discriminator_forward.9} parent=46 // pred_region
              loop: start=0, step=1, limit=1
              $region56: #{discriminator_forward.9} parent=54 // loop_pre_header
                _
              $region57: #{discriminator_forward.9} parent=54 // loop_header
                %s225 = sphi 0, %s229
                %p226 = scmp.ge.s32.totalorder %s225, 1
                %s230 = sphi %s216, %s216
                %s231 = sphi %s210, %s210
              $region58: #{discriminator_forward.9} parent=54 // loop_header_branch
                %228 = sbr.rel (%p226) target = $region62
              $region59: #{discriminator_forward.9} parent=54 // loop_body
                %v232 = vld [vmem:[%s230] sm:$0xff]
                %233 = vst [vmem:[%s231] sm:$0xff] %v232
                %v234 = vld [vmem:[%s230 + $0x10] sm:$0xff]
                %235 = vst [vmem:[%s231 + $0x8] sm:$0xff] %v234
                %v236 = vld [vmem:[%s230 + $0x20] sm:$0xff]
                %237 = vst [vmem:[%s231 + $0x10] sm:$0xff] %v236
                %v238 = vld [vmem:[%s230 + $0x30] sm:$0xff]
                %239 = vst [vmem:[%s231 + $0x18] sm:$0xff] %v238
                %v240 = vld [vmem:[%s230 + $0x40] sm:$0xff]
                %241 = vst [vmem:[%s231 + $0x20] sm:$0xff] %v240
                %v242 = vld [vmem:[%s230 + $0x50] sm:$0xff]
                %243 = vst [vmem:[%s231 + $0x28] sm:$0xff] %v242
                %v244 = vld [vmem:[%s230 + $0x60] sm:$0xff]
                %245 = vst [vmem:[%s231 + $0x30] sm:$0xff] %v244
                %v246 = vld [vmem:[%s230 + $0x70] sm:$0xff]
                %247 = vst [vmem:[%s231 + $0x38] sm:$0xff] %v246
                %v248 = vld [vmem:[%s230 + $0x80] sm:$0xff]
                %249 = vst [vmem:[%s231 + $0x40] sm:$0xff] %v248
                %v250 = vld [vmem:[%s230 + $0x90] sm:$0xff]
                %251 = vst [vmem:[%s231 + $0x48] sm:$0xff] %v250
                %v252 = vld [vmem:[%s230 + $0xa0] sm:$0xff]
                %253 = vst [vmem:[%s231 + $0x50] sm:$0xff] %v252
                %v254 = vld [vmem:[%s230 + $0xb0] sm:$0xff]
                %255 = vst [vmem:[%s231 + $0x58] sm:$0xff] %v254
                %v256 = vld [vmem:[%s230 + $0xc0] sm:$0xff]
                %257 = vst [vmem:[%s231 + $0x60] sm:$0xff] %v256
                %v258 = vld [vmem:[%s230 + $0xd0] sm:$0xff]
                %259 = vst [vmem:[%s231 + $0x68] sm:$0xff] %v258
                %v260 = vld [vmem:[%s230 + $0xe0] sm:$0xff]
                %261 = vst [vmem:[%s231 + $0x70] sm:$0xff] %v260
                %v262 = vld [vmem:[%s230 + $0xf0] sm:$0xff]
                %263 = vst [vmem:[%s231 + $0x78] sm:$0xff] %v262
                %v264 = vld [vmem:[%s230 + $0x100] sm:$0xff]
                %265 = vst [vmem:[%s231 + $0x80] sm:$0xff] %v264
                %v266 = vld [vmem:[%s230 + $0x110] sm:$0xff]
                %267 = vst [vmem:[%s231 + $0x88] sm:$0xff] %v266
                %v268 = vld [vmem:[%s230 + $0x120] sm:$0xff]
                %269 = vst [vmem:[%s231 + $0x90] sm:$0xff] %v268
                %v270 = vld [vmem:[%s230 + $0x130] sm:$0xff]
                %271 = vst [vmem:[%s231 + $0x98] sm:$0xff] %v270
                %v272 = vld [vmem:[%s230 + $0x140] sm:$0xff]
                %273 = vst [vmem:[%s231 + $0xa0] sm:$0xff] %v272
                %v274 = vld [vmem:[%s230 + $0x150] sm:$0xff]
                %275 = vst [vmem:[%s231 + $0xa8] sm:$0xff] %v274
                %v276 = vld [vmem:[%s230 + $0x160] sm:$0xff]
                %277 = vst [vmem:[%s231 + $0xb0] sm:$0xff] %v276
                %v278 = vld [vmem:[%s230 + $0x170] sm:$0xff]
                %279 = vst [vmem:[%s231 + $0xb8] sm:$0xff] %v278
                %v280 = vld [vmem:[%s230 + $0x180] sm:$0xff]
                %281 = vst [vmem:[%s231 + $0xc0] sm:$0xff] %v280
                %v282 = vld [vmem:[%s230 + $0x190] sm:$0xff]
                %283 = vst [vmem:[%s231 + $0xc8] sm:$0xff] %v282
                %v284 = vld [vmem:[%s230 + $0x1a0] sm:$0xff]
                %285 = vst [vmem:[%s231 + $0xd0] sm:$0xff] %v284
                %v286 = vld [vmem:[%s230 + $0x1b0] sm:$0xff]
                %287 = vst [vmem:[%s231 + $0xd8] sm:$0xff] %v286
                %v288 = vld [vmem:[%s230 + $0x1c0] sm:$0xff]
                %289 = vst [vmem:[%s231 + $0xe0] sm:$0xff] %v288
                %v290 = vld [vmem:[%s230 + $0x1d0] sm:$0xff]
                %291 = vst [vmem:[%s231 + $0xe8] sm:$0xff] %v290
                %v292 = vld [vmem:[%s230 + $0x1e0] sm:$0xff]
                %293 = vst [vmem:[%s231 + $0xf0] sm:$0xff] %v292
                %v294 = vld [vmem:[%s230 + $0x1f0] sm:$0xff]
                %295 = vst [vmem:[%s231 + $0xf8] sm:$0xff] %v294
                %v296 = vld [vmem:[%s230 + $0x200] sm:$0xff]
                %297 = vst [vmem:[%s231 + $0x100] sm:$0xff] %v296
                %v298 = vld [vmem:[%s230 + $0x210] sm:$0xff]
                %299 = vst [vmem:[%s231 + $0x108] sm:$0xff] %v298
                %v300 = vld [vmem:[%s230 + $0x220] sm:$0xff]
                %301 = vst [vmem:[%s231 + $0x110] sm:$0xff] %v300
                %v302 = vld [vmem:[%s230 + $0x230] sm:$0xff]
                %303 = vst [vmem:[%s231 + $0x118] sm:$0xff] %v302
                %v304 = vld [vmem:[%s230 + $0x240] sm:$0xff]
                %305 = vst [vmem:[%s231 + $0x120] sm:$0xff] %v304
                %v306 = vld [vmem:[%s230 + $0x250] sm:$0xff]
                %307 = vst [vmem:[%s231 + $0x128] sm:$0xff] %v306
                %v308 = vld [vmem:[%s230 + $0x260] sm:$0xff]
                %309 = vst [vmem:[%s231 + $0x130] sm:$0xff] %v308
                %v310 = vld [vmem:[%s230 + $0x270] sm:$0xff]
                %311 = vst [vmem:[%s231 + $0x138] sm:$0xff] %v310
                %v312 = vld [vmem:[%s230 + $0x280] sm:$0xff]
                %313 = vst [vmem:[%s231 + $0x140] sm:$0xff] %v312
                %v314 = vld [vmem:[%s230 + $0x290] sm:$0xff]
                %315 = vst [vmem:[%s231 + $0x148] sm:$0xff] %v314
                %v316 = vld [vmem:[%s230 + $0x2a0] sm:$0xff]
                %317 = vst [vmem:[%s231 + $0x150] sm:$0xff] %v316
                %v318 = vld [vmem:[%s230 + $0x2b0] sm:$0xff]
                %319 = vst [vmem:[%s231 + $0x158] sm:$0xff] %v318
                %v320 = vld [vmem:[%s230 + $0x2c0] sm:$0xff]
                %321 = vst [vmem:[%s231 + $0x160] sm:$0xff] %v320
                %v322 = vld [vmem:[%s230 + $0x2d0] sm:$0xff]
                %323 = vst [vmem:[%s231 + $0x168] sm:$0xff] %v322
                %v324 = vld [vmem:[%s230 + $0x2e0] sm:$0xff]
                %325 = vst [vmem:[%s231 + $0x170] sm:$0xff] %v324
                %v326 = vld [vmem:[%s230 + $0x2f0] sm:$0xff]
                %327 = vst [vmem:[%s231 + $0x178] sm:$0xff] %v326
                %v328 = vld [vmem:[%s230 + $0x300] sm:$0xff]
                %329 = vst [vmem:[%s231 + $0x180] sm:$0xff] %v328
                %v330 = vld [vmem:[%s230 + $0x310] sm:$0xff]
                %331 = vst [vmem:[%s231 + $0x188] sm:$0xff] %v330
                %v332 = vld [vmem:[%s230 + $0x320] sm:$0xff]
                %333 = vst [vmem:[%s231 + $0x190] sm:$0xff] %v332
                %v334 = vld [vmem:[%s230 + $0x330] sm:$0xff]
                %335 = vst [vmem:[%s231 + $0x198] sm:$0xff] %v334
                %v336 = vld [vmem:[%s230 + $0x340] sm:$0xff]
                %337 = vst [vmem:[%s231 + $0x1a0] sm:$0xff] %v336
                %v338 = vld [vmem:[%s230 + $0x350] sm:$0xff]
                %339 = vst [vmem:[%s231 + $0x1a8] sm:$0xff] %v338
                %v340 = vld [vmem:[%s230 + $0x360] sm:$0xff]
                %341 = vst [vmem:[%s231 + $0x1b0] sm:$0xff] %v340
                %v342 = vld [vmem:[%s230 + $0x370] sm:$0xff]
                %343 = vst [vmem:[%s231 + $0x1b8] sm:$0xff] %v342
                %v344 = vld [vmem:[%s230 + $0x380] sm:$0xff]
                %345 = vst [vmem:[%s231 + $0x1c0] sm:$0xff] %v344
                %v346 = vld [vmem:[%s230 + $0x390] sm:$0xff]
                %347 = vst [vmem:[%s231 + $0x1c8] sm:$0xff] %v346
                %v348 = vld [vmem:[%s230 + $0x3a0] sm:$0xff]
                %349 = vst [vmem:[%s231 + $0x1d0] sm:$0xff] %v348
                %v350 = vld [vmem:[%s230 + $0x3b0] sm:$0xff]
                %351 = vst [vmem:[%s231 + $0x1d8] sm:$0xff] %v350
                %v352 = vld [vmem:[%s230 + $0x3c0] sm:$0xff]
                %353 = vst [vmem:[%s231 + $0x1e0] sm:$0xff] %v352
                %v354 = vld [vmem:[%s230 + $0x3d0] sm:$0xff]
                %355 = vst [vmem:[%s231 + $0x1e8] sm:$0xff] %v354
                %v356 = vld [vmem:[%s230 + $0x3e0] sm:$0xff]
                %357 = vst [vmem:[%s231 + $0x1f0] sm:$0xff] %v356
                %v358 = vld [vmem:[%s230 + $0x3f0] sm:$0xff]
                %359 = vst [vmem:[%s231 + $0x1f8] sm:$0xff] %v358
              $region60: #{discriminator_forward.9} parent=54 // loop_footer
                %s229 = sadd.s32 1, %s225
              $region61: #{discriminator_forward.9} parent=54 // loop_footer_branch
                %224 = sbr.rel target = $region57
              $region62: #{discriminator_forward.9} parent=54 // loop_exit
                _
            $region55: #{discriminator_forward.9} parent=46 // pred_fallthru
              _
          $region47: #{discriminator_forward.9} parent=42 // pred_fallthru
            _
          %500 = vnop
        $region43: #{discriminator_forward.9} parent=15 // pred_fallthru
          _
      $region16: #{discriminator_forward.9} parent=5 // pred_fallthru
        _
      %p501 = scmp.le.s32.totalorder 1, %s10
      %p502 = scmp.lt.s32.totalorder %s10, 17
      %p503 = pnand %p501, %p502
      %p504 = pneg %p503
      // Predicated region
      $region78: #{discriminator_forward.9} parent=5 // pred_check
        _
      $region79: #{discriminator_forward.9} parent=5 // pred_check_branch
        %506 = sbr.rel (%p503) target = $region81
      $region80: #{discriminator_forward.9} parent=5 // pred_region
        %s507 = ssub.s32 %s10, 1
        %s508 = sand.u32 %s44, 1
        %s509 = sand.u32 %s44, 1
        %s510 = smul.addr %s509, 64
        %s511 = scalar_lea.vmem [#allocation3], %s510
        // Predicated region
        $region82: #{discriminator_forward.9} parent=80 // pred_check
          %p512 = pneg %p57
        $region83: #{discriminator_forward.9} parent=80 // pred_check_branch
          %514 = sbr.rel (%p512) target = $region85
        $region84: #{discriminator_forward.9} parent=80 // pred_region
          _
        $region85: #{discriminator_forward.9} parent=80 // pred_fallthru
          _
        %s515 = sand.u32 %s72, 1
        %s516 = sand.u32 %s72, 1
        %s517 = smul.addr %s516, 512
        %s518 = scalar_lea.vmem [#allocation4], %s517
        // Predicated region
        $region86: #{discriminator_forward.9} parent=80 // pred_check
          %p519 = pneg %p85
        $region87: #{discriminator_forward.9} parent=80 // pred_check_branch
          %521 = sbr.rel (%p519) target = $region89
        $region88: #{discriminator_forward.9} parent=80 // pred_region
          _
        $region89: #{discriminator_forward.9} parent=80 // pred_fallthru
          _
        %s522 = sand.u32 %s44, 1
        %s523 = sand.u32 %s44, 1
        %s524 = smul.addr %s523, 64
        %s525 = scalar_lea.vmem [#allocation3], %s524
        %p526 = pneg %p57
        %p527 = pneg %p54
        %s528 = sand.u32 %s72, 1
        %s529 = sand.u32 %s72, 1
        %s530 = smul.addr %s529, 512
        %s531 = scalar_lea.vmem [#allocation4], %s530
        %p532 = pneg %p85
        %p533 = pneg %p82
        %p534 = pneg %p113
        %p535 = pneg %p110
        %s536 = sand.u32 %s100, 1
        %s537 = sand.u32 %s100, 1
        %s538 = smul.addr %s537, 64
        %s539 = scalar_lea.vmem [#allocation5], %s538
        %p540 = pneg %p141
        %p541 = pneg %p138
        %s542 = smul.u32 2, %s21
        %p543 = scmp.lt.s32.totalorder %s20, 0
        %s544 = scalar_select %p543, %s20, 0
        %p545 = scmp.lt.s32.totalorder %s542, 3
        %s546 = scalar_select %p545, %s542, 3
        %s547 = smul.addr %s544, 4
        %s548 = sadd.s32 %s546, %s547
        %s549 = smul.addr %s548, 8
        %s550 = scalar_lea.vmem %s3, %s549
        %s551 = smul.u32 4, %s20
        %s552 = smul.u32 4, %s22
        %s553 = smul.u32 64, %s22
        %s554 = smul.u32 2, %s21
        %s555 = smul.u32 4, %s20
        %s556 = smul.u32 2, %s21
        %s557 = smul.u32 2, %s21
        %p558 = scmp.lt.s32.totalorder %s20, 0
        %s559 = scalar_select %p558, %s20, 0
        %p560 = scmp.lt.s32.totalorder %s557, 3
        %s561 = scalar_select %p560, %s557, 3
        %s562 = smul.addr %s559, 4
        %s563 = sadd.s32 %s561, %s562
        %s564 = smul.addr %s563, 8
        %s565 = scalar_lea.vmem %s3, %s564
        %s566 = smul.u32 2, %s21
        %p567 = scmp.eq.s32.totalorder %s22, 0
        // Predicated region
        $region90: #{discriminator_forward.9} parent=80 // pred_check
          %p568 = pneg %p567
        $region91: #{discriminator_forward.9} parent=80 // pred_check_branch
          %570 = sbr.rel (%p568) target = $region93
        $region92: #{discriminator_forward.9} parent=80 // pred_region
          %571 = vst [vmem:[#allocation2] sm:$0xff] 0.0
          %572 = vst [vmem:[#allocation2 + $0x8] sm:$0xff] 0.0
          %573 = vst [vmem:[#allocation2 + $0x10] sm:$0xff] 0.0
          %574 = vst [vmem:[#allocation2 + $0x18] sm:$0xff] 0.0
          %575 = vst [vmem:[#allocation2 + $0x20] sm:$0xff] 0.0
          %576 = vst [vmem:[#allocation2 + $0x28] sm:$0xff] 0.0
          %577 = vst [vmem:[#allocation2 + $0x30] sm:$0xff] 0.0
          %578 = vst [vmem:[#allocation2 + $0x38] sm:$0xff] 0.0
        $region93: #{discriminator_forward.9} parent=80 // pred_fallthru
          _
        %v579 = vld [vmem:[#allocation2] sm:$0xff]
        %v580 = vld [vmem:[#allocation2 + $0x8] sm:$0xff]
        %v581 = vld [vmem:[#allocation2 + $0x10] sm:$0xff]
        %v582 = vld [vmem:[#allocation2 + $0x18] sm:$0xff]
        %v583 = vld [vmem:[#allocation2 + $0x20] sm:$0xff]
        %v584 = vld [vmem:[#allocation2 + $0x28] sm:$0xff]
        %v585 = vld [vmem:[#allocation2 + $0x30] sm:$0xff]
        %v586 = vld [vmem:[#allocation2 + $0x38] sm:$0xff]
        %v587 = vld [vmem:[%s511] sm:$0xff]
        %v588 = vld [vmem:[%s511 + $0x8] sm:$0xff]
        %v589 = vld [vmem:[%s511 + $0x10] sm:$0xff]
        %v590 = vld [vmem:[%s511 + $0x18] sm:$0xff]
        %v591 = vld [vmem:[%s511 + $0x20] sm:$0xff]
        %v592 = vld [vmem:[%s511 + $0x28] sm:$0xff]
        %v593 = vld [vmem:[%s511 + $0x30] sm:$0xff]
        %v594 = vld [vmem:[%s511 + $0x38] sm:$0xff]
        %v595 = vld [vmem:[%s518] sm:$0xff]
        %v596 = vld [vmem:[%s518 + $0x8] sm:$0xff]
        %v597 = vld [vmem:[%s518 + $0x10] sm:$0xff]
        %v598 = vld [vmem:[%s518 + $0x18] sm:$0xff]
        %v599 = vld [vmem:[%s518 + $0x20] sm:$0xff]
        %v600 = vld [vmem:[%s518 + $0x28] sm:$0xff]
        %v601 = vld [vmem:[%s518 + $0x30] sm:$0xff]
        %v602 = vld [vmem:[%s518 + $0x38] sm:$0xff]
        %v603 = vld [vmem:[%s518 + $0x40] sm:$0xff]
        %v604 = vld [vmem:[%s518 + $0x48] sm:$0xff]
        %v605 = vld [vmem:[%s518 + $0x50] sm:$0xff]
        %v606 = vld [vmem:[%s518 + $0x58] sm:$0xff]
        %v607 = vld [vmem:[%s518 + $0x60] sm:$0xff]
        %v608 = vld [vmem:[%s518 + $0x68] sm:$0xff]
        %v609 = vld [vmem:[%s518 + $0x70] sm:$0xff]
        %v610 = vld [vmem:[%s518 + $0x78] sm:$0xff]
        %v611 = vld [vmem:[%s518 + $0x80] sm:$0xff]
        %v612 = vld [vmem:[%s518 + $0x88] sm:$0xff]
        %v613 = vld [vmem:[%s518 + $0x90] sm:$0xff]
        %v614 = vld [vmem:[%s518 + $0x98] sm:$0xff]
        %v615 = vld [vmem:[%s518 + $0xa0] sm:$0xff]
        %v616 = vld [vmem:[%s518 + $0xa8] sm:$0xff]
        %v617 = vld [vmem:[%s518 + $0xb0] sm:$0xff]
        %v618 = vld [vmem:[%s518 + $0xb8] sm:$0xff]
        %v619 = vld [vmem:[%s518 + $0xc0] sm:$0xff]
        %v620 = vld [vmem:[%s518 + $0xc8] sm:$0xff]
        %v621 = vld [vmem:[%s518 + $0xd0] sm:$0xff]
        %v622 = vld [vmem:[%s518 + $0xd8] sm:$0xff]
        %v623 = vld [vmem:[%s518 + $0xe0] sm:$0xff]
        %v624 = vld [vmem:[%s518 + $0xe8] sm:$0xff]
        %v625 = vld [vmem:[%s518 + $0xf0] sm:$0xff]
        %v626 = vld [vmem:[%s518 + $0xf8] sm:$0xff]
        %v627 = vld [vmem:[%s518 + $0x100] sm:$0xff]
        %v628 = vld [vmem:[%s518 + $0x108] sm:$0xff]
        %v629 = vld [vmem:[%s518 + $0x110] sm:$0xff]
        %v630 = vld [vmem:[%s518 + $0x118] sm:$0xff]
        %v631 = vld [vmem:[%s518 + $0x120] sm:$0xff]
        %v632 = vld [vmem:[%s518 + $0x128] sm:$0xff]
        %v633 = vld [vmem:[%s518 + $0x130] sm:$0xff]
        %v634 = vld [vmem:[%s518 + $0x138] sm:$0xff]
        %v635 = vld [vmem:[%s518 + $0x140] sm:$0xff]
        %v636 = vld [vmem:[%s518 + $0x148] sm:$0xff]
        %v637 = vld [vmem:[%s518 + $0x150] sm:$0xff]
        %v638 = vld [vmem:[%s518 + $0x158] sm:$0xff]
        %v639 = vld [vmem:[%s518 + $0x160] sm:$0xff]
        %v640 = vld [vmem:[%s518 + $0x168] sm:$0xff]
        %v641 = vld [vmem:[%s518 + $0x170] sm:$0xff]
        %v642 = vld [vmem:[%s518 + $0x178] sm:$0xff]
        %v643 = vld [vmem:[%s518 + $0x180] sm:$0xff]
        %v644 = vld [vmem:[%s518 + $0x188] sm:$0xff]
        %v645 = vld [vmem:[%s518 + $0x190] sm:$0xff]
        %v646 = vld [vmem:[%s518 + $0x198] sm:$0xff]
        %v647 = vld [vmem:[%s518 + $0x1a0] sm:$0xff]
        %v648 = vld [vmem:[%s518 + $0x1a8] sm:$0xff]
        %v649 = vld [vmem:[%s518 + $0x1b0] sm:$0xff]
        %v650 = vld [vmem:[%s518 + $0x1b8] sm:$0xff]
        %v651 = vld [vmem:[%s518 + $0x1c0] sm:$0xff]
        %v652 = vld [vmem:[%s518 + $0x1c8] sm:$0xff]
        %v653 = vld [vmem:[%s518 + $0x1d0] sm:$0xff]
        %v654 = vld [vmem:[%s518 + $0x1d8] sm:$0xff]
        %v655 = vld [vmem:[%s518 + $0x1e0] sm:$0xff]
        %v656 = vld [vmem:[%s518 + $0x1e8] sm:$0xff]
        %v657 = vld [vmem:[%s518 + $0x1f0] sm:$0xff]
        %v658 = vld [vmem:[%s518 + $0x1f8] sm:$0xff]
        %v667 = vunpack.c.l.b16 %v587
        %v668 = vunpack.c.h.b16 %v587
        %v669 = vunpack.c.l.b16 %v588
        %v670 = vunpack.c.h.b16 %v588
        %v671 = vunpack.c.l.b16 %v589
        %v672 = vunpack.c.h.b16 %v589
        %v673 = vunpack.c.l.b16 %v590
        %v674 = vunpack.c.h.b16 %v590
        %v675 = vunpack.c.l.b16 %v591
        %v676 = vunpack.c.h.b16 %v591
        %v677 = vunpack.c.l.b16 %v592
        %v678 = vunpack.c.h.b16 %v592
        %v679 = vunpack.c.l.b16 %v593
        %v680 = vunpack.c.h.b16 %v593
        %v681 = vunpack.c.l.b16 %v594
        %v682 = vunpack.c.h.b16 %v594
        %v683 = vpack.c.b16 %v671, %v667
        %v684 = vpack.c.b16 %v672, %v668
        %v685 = vpack.c.b16 %v673, %v669
        %v686 = vpack.c.b16 %v674, %v670
        %v687 = vpack.c.b16 %v679, %v675
        %v688 = vpack.c.b16 %v680, %v676
        %v689 = vpack.c.b16 %v681, %v677
        %v690 = vpack.c.b16 %v682, %v678
        %v763 = vunpack.c.l.b16 %v595
        %v764 = vunpack.c.h.b16 %v595
        %v765 = vunpack.c.l.b16 %v596
        %v766 = vunpack.c.h.b16 %v596
        %v767 = vunpack.c.l.b16 %v597
        %v768 = vunpack.c.h.b16 %v597
        %v769 = vunpack.c.l.b16 %v598
        %v770 = vunpack.c.h.b16 %v598
        %v771 = vunpack.c.l.b16 %v599
        %v772 = vunpack.c.h.b16 %v599
        %v773 = vunpack.c.l.b16 %v600
        %v774 = vunpack.c.h.b16 %v600
        %v775 = vunpack.c.l.b16 %v601
        %v776 = vunpack.c.h.b16 %v601
        %v777 = vunpack.c.l.b16 %v602
        %v778 = vunpack.c.h.b16 %v602
        %v779 = vunpack.c.l.b16 %v603
        %v780 = vunpack.c.h.b16 %v603
        %v781 = vunpack.c.l.b16 %v604
        %v782 = vunpack.c.h.b16 %v604
        %v783 = vunpack.c.l.b16 %v605
        %v784 = vunpack.c.h.b16 %v605
        %v785 = vunpack.c.l.b16 %v606
        %v786 = vunpack.c.h.b16 %v606
        %v787 = vunpack.c.l.b16 %v607
        %v788 = vunpack.c.h.b16 %v607
        %v789 = vunpack.c.l.b16 %v608
        %v790 = vunpack.c.h.b16 %v608
        %v791 = vunpack.c.l.b16 %v609
        %v792 = vunpack.c.h.b16 %v609
        %v793 = vunpack.c.l.b16 %v610
        %v794 = vunpack.c.h.b16 %v610
        %v795 = vunpack.c.l.b16 %v611
        %v796 = vunpack.c.h.b16 %v611
        %v797 = vunpack.c.l.b16 %v612
        %v798 = vunpack.c.h.b16 %v612
        %v799 = vunpack.c.l.b16 %v613
        %v800 = vunpack.c.h.b16 %v613
        %v801 = vunpack.c.l.b16 %v614
        %v802 = vunpack.c.h.b16 %v614
        %v803 = vunpack.c.l.b16 %v615
        %v804 = vunpack.c.h.b16 %v615
        %v805 = vunpack.c.l.b16 %v616
        %v806 = vunpack.c.h.b16 %v616
        %v807 = vunpack.c.l.b16 %v617
        %v808 = vunpack.c.h.b16 %v617
        %v809 = vunpack.c.l.b16 %v618
        %v810 = vunpack.c.h.b16 %v618
        %v811 = vunpack.c.l.b16 %v619
        %v812 = vunpack.c.h.b16 %v619
        %v813 = vunpack.c.l.b16 %v620
        %v814 = vunpack.c.h.b16 %v620
        %v815 = vunpack.c.l.b16 %v621
        %v816 = vunpack.c.h.b16 %v621
        %v817 = vunpack.c.l.b16 %v622
        %v818 = vunpack.c.h.b16 %v622
        %v819 = vunpack.c.l.b16 %v623
        %v820 = vunpack.c.h.b16 %v623
        %v821 = vunpack.c.l.b16 %v624
        %v822 = vunpack.c.h.b16 %v624
        %v823 = vunpack.c.l.b16 %v625
        %v824 = vunpack.c.h.b16 %v625
        %v825 = vunpack.c.l.b16 %v626
        %v826 = vunpack.c.h.b16 %v626
        %v827 = vunpack.c.l.b16 %v627
        %v828 = vunpack.c.h.b16 %v627
        %v829 = vunpack.c.l.b16 %v628
        %v830 = vunpack.c.h.b16 %v628
        %v831 = vunpack.c.l.b16 %v629
        %v832 = vunpack.c.h.b16 %v629
        %v833 = vunpack.c.l.b16 %v630
        %v834 = vunpack.c.h.b16 %v630
        %v835 = vunpack.c.l.b16 %v631
        %v836 = vunpack.c.h.b16 %v631
        %v837 = vunpack.c.l.b16 %v632
        %v838 = vunpack.c.h.b16 %v632
        %v839 = vunpack.c.l.b16 %v633
        %v840 = vunpack.c.h.b16 %v633
        %v841 = vunpack.c.l.b16 %v634
        %v842 = vunpack.c.h.b16 %v634
        %v843 = vunpack.c.l.b16 %v635
        %v844 = vunpack.c.h.b16 %v635
        %v845 = vunpack.c.l.b16 %v636
        %v846 = vunpack.c.h.b16 %v636
        %v847 = vunpack.c.l.b16 %v637
        %v848 = vunpack.c.h.b16 %v637
        %v849 = vunpack.c.l.b16 %v638
        %v850 = vunpack.c.h.b16 %v638
        %v851 = vunpack.c.l.b16 %v639
        %v852 = vunpack.c.h.b16 %v639
        %v853 = vunpack.c.l.b16 %v640
        %v854 = vunpack.c.h.b16 %v640
        %v855 = vunpack.c.l.b16 %v641
        %v856 = vunpack.c.h.b16 %v641
        %v857 = vunpack.c.l.b16 %v642
        %v858 = vunpack.c.h.b16 %v642
        %v859 = vunpack.c.l.b16 %v643
        %v860 = vunpack.c.h.b16 %v643
        %v861 = vunpack.c.l.b16 %v644
        %v862 = vunpack.c.h.b16 %v644
        %v863 = vunpack.c.l.b16 %v645
        %v864 = vunpack.c.h.b16 %v645
        %v865 = vunpack.c.l.b16 %v646
        %v866 = vunpack.c.h.b16 %v646
        %v867 = vunpack.c.l.b16 %v647
        %v868 = vunpack.c.h.b16 %v647
        %v869 = vunpack.c.l.b16 %v648
        %v870 = vunpack.c.h.b16 %v648
        %v871 = vunpack.c.l.b16 %v649
        %v872 = vunpack.c.h.b16 %v649
        %v873 = vunpack.c.l.b16 %v650
        %v874 = vunpack.c.h.b16 %v650
        %v875 = vunpack.c.l.b16 %v651
        %v876 = vunpack.c.h.b16 %v651
        %v877 = vunpack.c.l.b16 %v652
        %v878 = vunpack.c.h.b16 %v652
        %v879 = vunpack.c.l.b16 %v653
        %v880 = vunpack.c.h.b16 %v653
        %v881 = vunpack.c.l.b16 %v654
        %v882 = vunpack.c.h.b16 %v654
        %v883 = vunpack.c.l.b16 %v655
        %v884 = vunpack.c.h.b16 %v655
        %v885 = vunpack.c.l.b16 %v656
        %v886 = vunpack.c.h.b16 %v656
        %v887 = vunpack.c.l.b16 %v657
        %v888 = vunpack.c.h.b16 %v657
        %v889 = vunpack.c.l.b16 %v658
        %v890 = vunpack.c.h.b16 %v658
        %v891 = vpack.c.b16 %v765, %v763
        %v892 = vpack.c.b16 %v766, %v764
        %v893 = vpack.c.b16 %v769, %v767
        %v894 = vpack.c.b16 %v770, %v768
        %v895 = vpack.c.b16 %v773, %v771
        %v896 = vpack.c.b16 %v774, %v772
        %v897 = vpack.c.b16 %v777, %v775
        %v898 = vpack.c.b16 %v778, %v776
        %v899 = vpack.c.b16 %v781, %v779
        %v900 = vpack.c.b16 %v782, %v780
        %v901 = vpack.c.b16 %v785, %v783
        %v902 = vpack.c.b16 %v786, %v784
        %v903 = vpack.c.b16 %v789, %v787
        %v904 = vpack.c.b16 %v790, %v788
        %v905 = vpack.c.b16 %v793, %v791
        %v906 = vpack.c.b16 %v794, %v792
        %v907 = vpack.c.b16 %v797, %v795
        %v908 = vpack.c.b16 %v798, %v796
        %v909 = vpack.c.b16 %v801, %v799
        %v910 = vpack.c.b16 %v802, %v800
        %v911 = vpack.c.b16 %v805, %v803
        %v912 = vpack.c.b16 %v806, %v804
        %v913 = vpack.c.b16 %v809, %v807
        %v914 = vpack.c.b16 %v810, %v808
        %v915 = vpack.c.b16 %v813, %v811
        %v916 = vpack.c.b16 %v814, %v812
        %v917 = vpack.c.b16 %v817, %v815
        %v918 = vpack.c.b16 %v818, %v816
        %v919 = vpack.c.b16 %v821, %v819
        %v920 = vpack.c.b16 %v822, %v820
        %v921 = vpack.c.b16 %v825, %v823
        %v922 = vpack.c.b16 %v826, %v824
        %v923 = vpack.c.b16 %v829, %v827
        %v924 = vpack.c.b16 %v830, %v828
        %v925 = vpack.c.b16 %v833, %v831
        %v926 = vpack.c.b16 %v834, %v832
        %v927 = vpack.c.b16 %v837, %v835
        %v928 = vpack.c.b16 %v838, %v836
        %v929 = vpack.c.b16 %v841, %v839
        %v930 = vpack.c.b16 %v842, %v840
        %v931 = vpack.c.b16 %v845, %v843
        %v932 = vpack.c.b16 %v846, %v844
        %v933 = vpack.c.b16 %v849, %v847
        %v934 = vpack.c.b16 %v850, %v848
        %v935 = vpack.c.b16 %v853, %v851
        %v936 = vpack.c.b16 %v854, %v852
        %v937 = vpack.c.b16 %v857, %v855
        %v938 = vpack.c.b16 %v858, %v856
        %v939 = vpack.c.b16 %v861, %v859
        %v940 = vpack.c.b16 %v862, %v860
        %v941 = vpack.c.b16 %v865, %v863
        %v942 = vpack.c.b16 %v866, %v864
        %v943 = vpack.c.b16 %v869, %v867
        %v944 = vpack.c.b16 %v870, %v868
        %v945 = vpack.c.b16 %v873, %v871
        %v946 = vpack.c.b16 %v874, %v872
        %v947 = vpack.c.b16 %v877, %v875
        %v948 = vpack.c.b16 %v878, %v876
        %v949 = vpack.c.b16 %v881, %v879
        %v950 = vpack.c.b16 %v882, %v880
        %v951 = vpack.c.b16 %v885, %v883
        %v952 = vpack.c.b16 %v886, %v884
        %v953 = vpack.c.b16 %v889, %v887
        %v954 = vpack.c.b16 %v890, %v888
        %1019 = vmatprep.subr.bf16.mxu0 %v892
        %1020 = vmatpush1.bf16.msra.mxu0 %v891
        %1021 = vmatprep.subr.bf16.mxu0 %v894
        %1022 = vmatpush1.bf16.msra.mxu0 %v893
        %1023 = vmatprep.subr.bf16.mxu0 %v896
        %1024 = vmatpush1.bf16.msra.mxu0 %v895
        %1025 = vmatprep.subr.bf16.mxu0 %v898
        %1026 = vmatpush1.bf16.msra.mxu0 %v897
        %1027 = vmatprep.subr.bf16.mxu0 %v900
        %1028 = vmatpush1.bf16.msra.mxu0 %v899
        %1029 = vmatprep.subr.bf16.mxu0 %v902
        %1030 = vmatpush1.bf16.msra.mxu0 %v901
        %1031 = vmatprep.subr.bf16.mxu0 %v904
        %1032 = vmatpush1.bf16.msra.mxu0 %v903
        %1033 = vmatprep.subr.bf16.mxu0 %v906
        %1034 = vmatpush1.bf16.msra.mxu0 %v905
        %1035 = vmatprep.subr.bf16.mxu0 %v908
        %1036 = vmatpush1.bf16.msra.mxu0 %v907
        %1037 = vmatprep.subr.bf16.mxu0 %v910
        %1038 = vmatpush1.bf16.msra.mxu0 %v909
        %1039 = vmatprep.subr.bf16.mxu0 %v912
        %1040 = vmatpush1.bf16.msra.mxu0 %v911
        %1041 = vmatprep.subr.bf16.mxu0 %v914
        %1042 = vmatpush1.bf16.msra.mxu0 %v913
        %1043 = vmatprep.subr.bf16.mxu0 %v916
        %1044 = vmatpush1.bf16.msra.mxu0 %v915
        %1045 = vmatprep.subr.bf16.mxu0 %v918
        %1046 = vmatpush1.bf16.msra.mxu0 %v917
        %1047 = vmatprep.subr.bf16.mxu0 %v920
        %1048 = vmatpush1.bf16.msra.mxu0 %v919
        %1049 = vmatprep.subr.bf16.mxu0 %v922
        %1050 = vmatpush1.bf16.msra.mxu0 %v921
        %1051 = vmatprep.mubr.bf16.mxu0 %v684
        %1052 = vmatmul.mubr.bf16.gmra.mrb[0].mxu0 %v683
        %v1053 = vpop.f32.mrb[0].mxu0
        %v1054 = vadd.f32 0.0, %v1053
        %v1055 = vpop.f32.mrb[0].mxu0
        %v1056 = vadd.f32 0.0, %v1055
        %v1057 = vpop.f32.mrb[0].mxu0
        %v1058 = vadd.f32 0.0, %v1057
        %v1059 = vpop.f32.mrb[0].mxu0
        %v1060 = vadd.f32 0.0, %v1059
        %1061 = vmatprep.mubr.bf16.mxu0 %v688
        %1062 = vmatmul.mubr.bf16.gmra.mrb[0].mxu0 %v687
        %v1063 = vpop.f32.mrb[0].mxu0
        %v1064 = vadd.f32 0.0, %v1063
        %v1065 = vpop.f32.mrb[0].mxu0
        %v1066 = vadd.f32 0.0, %v1065
        %v1067 = vpop.f32.mrb[0].mxu0
        %v1068 = vadd.f32 0.0, %v1067
        %v1069 = vpop.f32.mrb[0].mxu0
        %v1070 = vadd.f32 0.0, %v1069
        %1071 = vdwg.mxu0
        %1072 = vmatprep.subr.bf16.mxu0 %v924
        %1073 = vmatpush1.bf16.msra.mxu0 %v923
        %1074 = vmatprep.subr.bf16.mxu0 %v926
        %1075 = vmatpush1.bf16.msra.mxu0 %v925
        %1076 = vmatprep.subr.bf16.mxu0 %v928
        %1077 = vmatpush1.bf16.msra.mxu0 %v927
        %1078 = vmatprep.subr.bf16.mxu0 %v930
        %1079 = vmatpush1.bf16.msra.mxu0 %v929
        %1080 = vmatprep.subr.bf16.mxu0 %v932
        %1081 = vmatpush1.bf16.msra.mxu0 %v931
        %1082 = vmatprep.subr.bf16.mxu0 %v934
        %1083 = vmatpush1.bf16.msra.mxu0 %v933
        %1084 = vmatprep.subr.bf16.mxu0 %v936
        %1085 = vmatpush1.bf16.msra.mxu0 %v935
        %1086 = vmatprep.subr.bf16.mxu0 %v938
        %1087 = vmatpush1.bf16.msra.mxu0 %v937
        %1088 = vmatprep.subr.bf16.mxu0 %v940
        %1089 = vmatpush1.bf16.msra.mxu0 %v939
        %1090 = vmatprep.subr.bf16.mxu0 %v942
        %1091 = vmatpush1.bf16.msra.mxu0 %v941
        %1092 = vmatprep.subr.bf16.mxu0 %v944
        %1093 = vmatpush1.bf16.msra.mxu0 %v943
        %1094 = vmatprep.subr.bf16.mxu0 %v946
        %1095 = vmatpush1.bf16.msra.mxu0 %v945
        %1096 = vmatprep.subr.bf16.mxu0 %v948
        %1097 = vmatpush1.bf16.msra.mxu0 %v947
        %1098 = vmatprep.subr.bf16.mxu0 %v950
        %1099 = vmatpush1.bf16.msra.mxu0 %v949
        %1100 = vmatprep.subr.bf16.mxu0 %v952
        %1101 = vmatpush1.bf16.msra.mxu0 %v951
        %1102 = vmatprep.subr.bf16.mxu0 %v954
        %1103 = vmatpush1.bf16.msra.mxu0 %v953
        %1104 = vmatprep.mubr.bf16.mxu0 %v686
        %1105 = vmatmul.mubr.bf16.gmra.mrb[0].mxu0 %v685
        %v1106 = vpop.f32.mrb[0].mxu0
        %v1107 = vadd.f32 %v1054, %v1106
        %v1108 = vpop.f32.mrb[0].mxu0
        %v1109 = vadd.f32 %v1056, %v1108
        %v1110 = vpop.f32.mrb[0].mxu0
        %v1111 = vadd.f32 %v1058, %v1110
        %v1112 = vpop.f32.mrb[0].mxu0
        %v1113 = vadd.f32 %v1060, %v1112
        %1114 = vmatprep.mubr.bf16.mxu0 %v690
        %1115 = vmatmul.mubr.bf16.gmra.mrb[0].mxu0 %v689
        %v1116 = vpop.f32.mrb[0].mxu0
        %v1117 = vadd.f32 %v1064, %v1116
        %v1118 = vpop.f32.mrb[0].mxu0
        %v1119 = vadd.f32 %v1066, %v1118
        %v1120 = vpop.f32.mrb[0].mxu0
        %v1121 = vadd.f32 %v1068, %v1120
        %v1122 = vpop.f32.mrb[0].mxu0
        %v1123 = vadd.f32 %v1070, %v1122
        %1124 = vdwg.mxu0
        %v1125 = vadd.f32 %v579, %v1107
        %v1126 = vadd.f32 %v580, %v1109
        %v1127 = vadd.f32 %v581, %v1111
        %v1128 = vadd.f32 %v582, %v1113
        %v1129 = vadd.f32 %v583, %v1117
        %v1130 = vadd.f32 %v584, %v1119
        %v1131 = vadd.f32 %v585, %v1121
        %v1132 = vadd.f32 %v586, %v1123
        %1133 = vst [vmem:[#allocation2] sm:$0xff] %v1125
        %1134 = vst [vmem:[#allocation2 + $0x8] sm:$0xff] %v1126
        %1135 = vst [vmem:[#allocation2 + $0x10] sm:$0xff] %v1127
        %1136 = vst [vmem:[#allocation2 + $0x18] sm:$0xff] %v1128
        %1137 = vst [vmem:[#allocation2 + $0x20] sm:$0xff] %v1129
        %1138 = vst [vmem:[#allocation2 + $0x28] sm:$0xff] %v1130
        %1139 = vst [vmem:[#allocation2 + $0x30] sm:$0xff] %v1131
        %1140 = vst [vmem:[#allocation2 + $0x38] sm:$0xff] %v1132
        %p1141 = scmp.eq.s32.totalorder %s22, 7
        // Predicated region
        $region94: #{discriminator_forward.9} parent=80 // pred_check
          %p1142 = pneg %p1141
        $region95: #{discriminator_forward.9} parent=80 // pred_check_branch
          %1144 = sbr.rel (%p1142) target = $region97
        $region96: #{discriminator_forward.9} parent=80 // pred_region
          %v1145 = vld [vmem:[#allocation2] sm:$0xff]
          %v1146 = vld [vmem:[#allocation2 + $0x8] sm:$0xff]
          %v1147 = vld [vmem:[#allocation2 + $0x10] sm:$0xff]
          %v1148 = vld [vmem:[#allocation2 + $0x18] sm:$0xff]
          %v1149 = vld [vmem:[#allocation2 + $0x20] sm:$0xff]
          %v1150 = vld [vmem:[#allocation2 + $0x28] sm:$0xff]
          %v1151 = vld [vmem:[#allocation2 + $0x30] sm:$0xff]
          %v1152 = vld [vmem:[#allocation2 + $0x38] sm:$0xff]
          %v1153 = vadd.f32 %v1145, %v1147
          %v1154 = vadd.f32 %v1153, %v1149
          %v1155 = vadd.f32 %v1154, %v1151
          %v1156 = vrot.slane %v1155, 4
          %v1157 = vadd.f32 %v1155, %v1156
          %v1158 = vrot.slane %v1157, 2
          %v1159 = vadd.f32 %v1157, %v1158
          %v1160 = vrot.slane %v1159, 1
          %v1161 = vadd.f32 %v1159, %v1160
          %v1162 = vadd.f32 %v1146, %v1148
          %v1163 = vadd.f32 %v1162, %v1150
          %v1164 = vadd.f32 %v1163, %v1152
          %v1165 = vrot.slane %v1164, 4
          %v1166 = vadd.f32 %v1164, %v1165
          %v1167 = vrot.slane %v1166, 2
          %v1168 = vadd.f32 %v1166, %v1167
          %v1169 = vrot.slane %v1168, 1
          %v1170 = vadd.f32 %v1168, %v1169
          %v1171 = vmul.f32 %v1145, %v1145
          %v1172 = vmul.f32 %v1146, %v1146
          %v1173 = vmul.f32 %v1147, %v1147
          %v1174 = vmul.f32 %v1148, %v1148
          %v1175 = vmul.f32 %v1149, %v1149
          %v1176 = vmul.f32 %v1150, %v1150
          %v1177 = vmul.f32 %v1151, %v1151
          %v1178 = vmul.f32 %v1152, %v1152
          %v1179 = vadd.f32 %v1171, %v1173
          %v1180 = vadd.f32 %v1179, %v1175
          %v1181 = vadd.f32 %v1180, %v1177
          %v1182 = vrot.slane %v1181, 4
          %v1183 = vadd.f32 %v1181, %v1182
          %v1184 = vrot.slane %v1183, 2
          %v1185 = vadd.f32 %v1183, %v1184
          %v1186 = vrot.slane %v1185, 1
          %v1187 = vadd.f32 %v1185, %v1186
          %v1188 = vadd.f32 %v1172, %v1174
          %v1189 = vadd.f32 %v1188, %v1176
          %v1190 = vadd.f32 %v1189, %v1178
          %v1191 = vrot.slane %v1190, 4
          %v1192 = vadd.f32 %v1190, %v1191
          %v1193 = vrot.slane %v1192, 2
          %v1194 = vadd.f32 %v1192, %v1193
          %v1195 = vrot.slane %v1194, 1
          %v1196 = vadd.f32 %v1194, %v1195
          %vm1197 = vcmask 1040384
          %v1198 = vsel %vm1197, %v1161, %v1187
          %v1199 = vsel %vm1197, %v1170, %v1196
          %vm1200 = vcmask 1041408
          %v1201 = vsel %vm1200, %v1198, 0.0
          %v1202 = vsel %vm1200, %v1199, 0.0
          %1203 = vst [vmem:[%s565] sm:$0xff] %v1201
          %1204 = vst [vmem:[%s565 + $0x8] sm:$0xff] %v1202
          %1205 = vst [vmem:[%s539] sm:$0xff] %v1145
          %1206 = vst [vmem:[%s539 + $0x8] sm:$0xff] %v1146
          %1207 = vst [vmem:[%s539 + $0x10] sm:$0xff] %v1147
          %1208 = vst [vmem:[%s539 + $0x18] sm:$0xff] %v1148
          %1209 = vst [vmem:[%s539 + $0x20] sm:$0xff] %v1149
          %1210 = vst [vmem:[%s539 + $0x28] sm:$0xff] %v1150
          %1211 = vst [vmem:[%s539 + $0x30] sm:$0xff] %v1151
          %1212 = vst [vmem:[%s539 + $0x38] sm:$0xff] %v1152
        $region97: #{discriminator_forward.9} parent=80 // pred_fallthru
          _
        %s1213 = sand.u32 %s100, 1
        %s1214 = sand.u32 %s100, 1
        %s1215 = smul.addr %s1214, 64
        %s1216 = scalar_lea.vmem [#allocation5], %s1215
        %s1217 = smul.u32 2, %s21
        %p1218 = scmp.lt.s32.totalorder %s20, 0
        %s1219 = scalar_select %p1218, %s20, 0
        %p1220 = scmp.lt.s32.totalorder %s1217, 3
        %s1221 = scalar_select %p1220, %s1217, 3
        %s1222 = smul.addr %s1219, 4
        %s1223 = sadd.s32 %s1221, %s1222
        %s1224 = smul.addr %s1223, 8
        %s1225 = scalar_lea.vmem %s3, %s1224
        // Predicated region
        $region98: #{discriminator_forward.9} parent=80 // pred_check
          %p1226 = pneg %p110
        $region99: #{discriminator_forward.9} parent=80 // pred_check_branch
          %1228 = sbr.rel (%p1226) target = $region101
        $region100: #{discriminator_forward.9} parent=80 // pred_region
          %s1229 = smul.u32 4, %s20
          %s1230 = smul.u32 2, %s21
          %s1231 = smul.addr %s1229, 4
          %s1232 = sadd.s32 %s1230, %s1231
          %s1233 = smul.addr %s1232, 8
          %s1234 = scalar_lea.vmem %s2, %s1233
          // Predicated region
          $region102: #{discriminator_forward.9} parent=100 // pred_check
            _
          $region103: #{discriminator_forward.9} parent=100 // pred_check_branch
            %1236 = sbr.rel (0) target = $region105
          $region104: #{discriminator_forward.9} parent=100 // pred_region
            // Predicated region
            $region106: #{discriminator_forward.9} parent=104 // pred_check
              _
            $region107: #{discriminator_forward.9} parent=104 // pred_check_branch
              %1238 = sbr.rel (0) target = $region109
            $region108: #{discriminator_forward.9} parent=104 // pred_region
              loop: start=0, step=1, limit=1
              $region110: #{discriminator_forward.9} parent=108 // loop_pre_header
                _
              $region111: #{discriminator_forward.9} parent=108 // loop_header
                %s1240 = sphi 0, %s1244
                %p1241 = scmp.ge.s32.totalorder %s1240, 1
                %s1245 = sphi %s1216, %s1216
                %s1246 = sphi %s1234, %s1234
              $region112: #{discriminator_forward.9} parent=108 // loop_header_branch
                %1243 = sbr.rel (%p1241) target = $region116
              $region113: #{discriminator_forward.9} parent=108 // loop_body
                %v1247 = vld [vmem:[%s1245] sm:$0xff]
                %1248 = vst [vmem:[%s1246] sm:$0xff] %v1247
                %v1249 = vld [vmem:[%s1245 + $0x8] sm:$0xff]
                %1250 = vst [vmem:[%s1246 + $0x8] sm:$0xff] %v1249
                %v1251 = vld [vmem:[%s1245 + $0x10] sm:$0xff]
                %1252 = vst [vmem:[%s1246 + $0x20] sm:$0xff] %v1251
                %v1253 = vld [vmem:[%s1245 + $0x18] sm:$0xff]
                %1254 = vst [vmem:[%s1246 + $0x28] sm:$0xff] %v1253
                %v1255 = vld [vmem:[%s1245 + $0x20] sm:$0xff]
                %1256 = vst [vmem:[%s1246 + $0x40] sm:$0xff] %v1255
                %v1257 = vld [vmem:[%s1245 + $0x28] sm:$0xff]
                %1258 = vst [vmem:[%s1246 + $0x48] sm:$0xff] %v1257
                %v1259 = vld [vmem:[%s1245 + $0x30] sm:$0xff]
                %1260 = vst [vmem:[%s1246 + $0x60] sm:$0xff] %v1259
                %v1261 = vld [vmem:[%s1245 + $0x38] sm:$0xff]
                %1262 = vst [vmem:[%s1246 + $0x68] sm:$0xff] %v1261
              $region114: #{discriminator_forward.9} parent=108 // loop_footer
                %s1244 = sadd.s32 1, %s1240
              $region115: #{discriminator_forward.9} parent=108 // loop_footer_branch
                %1239 = sbr.rel target = $region111
              $region116: #{discriminator_forward.9} parent=108 // loop_exit
                _
            $region109: #{discriminator_forward.9} parent=104 // pred_fallthru
              _
            // Predicated region
            $region117: #{discriminator_forward.9} parent=104 // pred_check
              _
            $region118: #{discriminator_forward.9} parent=104 // pred_check_branch
              %1264 = sbr.rel target = $region120
            $region119: #{discriminator_forward.9} parent=104 // pred_region
              _
            $region120: #{discriminator_forward.9} parent=104 // pred_fallthru
              _
          $region105: #{discriminator_forward.9} parent=100 // pred_fallthru
            _
          %1265 = vnop
        $region101: #{discriminator_forward.9} parent=80 // pred_fallthru
          _
        // Predicated region
        $region121: #{discriminator_forward.9} parent=80 // pred_check
          %p1266 = pneg %p138
        $region122: #{discriminator_forward.9} parent=80 // pred_check_branch
          %1268 = sbr.rel (%p1266) target = $region124
        $region123: #{discriminator_forward.9} parent=80 // pred_region
          %s1269 = smul.u32 2, %s21
        $region124: #{discriminator_forward.9} parent=80 // pred_fallthru
          _
      $region81: #{discriminator_forward.9} parent=5 // pred_fallthru
        _
      %p1270 = scmp.le.s32.totalorder 2, %s10
      // Predicated region
      $region125: #{discriminator_forward.9} parent=5 // pred_check
        %p1271 = pneg %p1270
      $region126: #{discriminator_forward.9} parent=5 // pred_check_branch
        %1273 = sbr.rel (%p1271) target = $region128
      $region127: #{discriminator_forward.9} parent=5 // pred_region
        %s1274 = ssub.s32 %s10, 2
        // Predicated region
        $region129: #{discriminator_forward.9} parent=127 // pred_check
          %p1275 = pneg %p116
        $region130: #{discriminator_forward.9} parent=127 // pred_check_branch
          %1277 = sbr.rel (%p1275) target = $region132
        $region131: #{discriminator_forward.9} parent=127 // pred_region
          %s1278 = sand.u32 %s101, 1
          %s1279 = sand.u32 %s101, 1
          %s1280 = smul.addr %s1279, 64
          %s1281 = scalar_lea.vmem [#allocation5], %s1280
        $region132: #{discriminator_forward.9} parent=127 // pred_fallthru
          _
        // Predicated region
        $region133: #{discriminator_forward.9} parent=127 // pred_check
          %p1282 = pneg %p144
        $region134: #{discriminator_forward.9} parent=127 // pred_check_branch
          %1284 = sbr.rel (%p1282) target = $region136
        $region135: #{discriminator_forward.9} parent=127 // pred_region
          %s1285 = smul.u32 2, %s24
          %p1286 = scmp.lt.s32.totalorder %s23, 0
          %s1287 = scalar_select %p1286, %s23, 0
          %p1288 = scmp.lt.s32.totalorder %s1285, 3
          %s1289 = scalar_select %p1288, %s1285, 3
          %s1290 = smul.addr %s1287, 4
          %s1291 = sadd.s32 %s1289, %s1290
          %s1292 = smul.addr %s1291, 8
          %s1293 = scalar_lea.vmem %s3, %s1292
        $region136: #{discriminator_forward.9} parent=127 // pred_fallthru
          _
      $region128: #{discriminator_forward.9} parent=5 // pred_fallthru
        _
    $region6: #{discriminator_forward.9} parent=1 // loop_footer
      %s14 = sadd.s32 1, %s10
    $region7: #{discriminator_forward.9} parent=1 // loop_footer_branch
      %9 = sbr.rel target = $region3
    $region8: #{discriminator_forward.9} parent=1 // loop_exit
      _

// kernel: discriminator_forward.10
$region0: #{discriminator_forward.10}
  #allocation0 [shape = 'u32[]', space=smem, size = 0x4, offset = 0x4, fixed_abs, tag = 'smem constant byte address 0x4 - core index']
  #allocation1 [shape = 'u32[144,128]{1,0:T(1,128)}', space=vmem, size = 0x12000, scoped, tag = 'internal scratch']
  %s0 = inlined_call_operand.vmem [shape: f32[32,512], index: 0, kind: input, shape index: {}]
  %s1 = inlined_call_operand.vmem [shape: f32[1,512], index: 1, kind: input, shape index: {}]
  %s2 = inlined_call_operand.vmem [shape: f32[1,512], index: 2, kind: input, shape index: {}]
  %s3 = inlined_call_operand.vmem [shape: bf16[32,512], index: 3, kind: output, shape index: {}]
  %s4 = sld [smem:[#allocation0]]
  $region22: #{discriminator_forward.10} parent=0
    _
  %s6 = ssub.s32 1, %s4
  %s7 = scalar_select 0, %s6, %s4
  // Predicated region
  $region2: #{discriminator_forward.10} parent=0 // pred_check
    _
  $region3: #{discriminator_forward.10} parent=0 // pred_check_branch
    %9 = sbr.rel (0) target = $region5
  $region4: #{discriminator_forward.10} parent=0 // pred_region
    _
  $region5: #{discriminator_forward.10} parent=0 // pred_fallthru
    _
  // Predicated region
  $region6: #{discriminator_forward.10} parent=0 // pred_check
    _
  $region7: #{discriminator_forward.10} parent=0 // pred_check_branch
    %11 = sbr.rel (0) target = $region9
  $region8: #{discriminator_forward.10} parent=0 // pred_region
    _
  $region9: #{discriminator_forward.10} parent=0 // pred_fallthru
    _
  // Predicated region
  $region10: #{discriminator_forward.10} parent=0 // pred_check
    _
  $region11: #{discriminator_forward.10} parent=0 // pred_check_branch
    %13 = sbr.rel (0) target = $region13
  $region12: #{discriminator_forward.10} parent=0 // pred_region
    _
  $region13: #{discriminator_forward.10} parent=0 // pred_fallthru
    _
  %v14 = vld [vmem:[%s0] sm:$0xff]
  %v15 = vld [vmem:[%s0 + $0x8] sm:$0xff]
  %v16 = vld [vmem:[%s0 + $0x10] sm:$0xff]
  %v17 = vld [vmem:[%s0 + $0x18] sm:$0xff]
  %v18 = vld [vmem:[%s0 + $0x20] sm:$0xff]
  %v19 = vld [vmem:[%s0 + $0x28] sm:$0xff]
  %v20 = vld [vmem:[%s0 + $0x30] sm:$0xff]
  %v21 = vld [vmem:[%s0 + $0x38] sm:$0xff]
  %v22 = vld [vmem:[%s0 + $0x40] sm:$0xff]
  %v23 = vld [vmem:[%s0 + $0x48] sm:$0xff]
  %v24 = vld [vmem:[%s0 + $0x50] sm:$0xff]
  %v25 = vld [vmem:[%s0 + $0x58] sm:$0xff]
  %v26 = vld [vmem:[%s0 + $0x60] sm:$0xff]
  %v27 = vld [vmem:[%s0 + $0x68] sm:$0xff]
  %v28 = vld [vmem:[%s0 + $0x70] sm:$0xff]
  %v29 = vld [vmem:[%s0 + $0x78] sm:$0xff]
  %v30 = vld [vmem:[%s1] sm:$0xf]
  %v32 = vlaneseq
  %v33 = vshrl.u32 %v32, 7
  %v34 = vsub.s32 0, %v33
  %v35 = vrot.slane %v30, %v34
  %v36 = vlaneseq
  %v37 = vshrl.u32 %v36, 7
  %v38 = vsub.s32 1, %v37
  %v39 = vrot.slane %v30, %v38
  %v40 = vlaneseq
  %v41 = vshrl.u32 %v40, 7
  %v42 = vsub.s32 2, %v41
  %v43 = vrot.slane %v30, %v42
  %v44 = vlaneseq
  %v45 = vshrl.u32 %v44, 7
  %v46 = vsub.s32 3, %v45
  %v47 = vrot.slane %v30, %v46
  %v52 = vmul.f32 %v14, %v35
  %v53 = vmul.f32 %v15, %v39
  %v54 = vmul.f32 %v16, %v43
  %v55 = vmul.f32 %v17, %v47
  %v56 = vmul.f32 %v18, %v35
  %v57 = vmul.f32 %v19, %v39
  %v58 = vmul.f32 %v20, %v43
  %v59 = vmul.f32 %v21, %v47
  %v60 = vmul.f32 %v22, %v35
  %v61 = vmul.f32 %v23, %v39
  %v62 = vmul.f32 %v24, %v43
  %v63 = vmul.f32 %v25, %v47
  %v64 = vmul.f32 %v26, %v35
  %v65 = vmul.f32 %v27, %v39
  %v66 = vmul.f32 %v28, %v43
  %v67 = vmul.f32 %v29, %v47
  %v68 = vld [vmem:[%s2] sm:$0xf]
  %v70 = vlaneseq
  %v71 = vshrl.u32 %v70, 7
  %v72 = vsub.s32 0, %v71
  %v73 = vrot.slane %v68, %v72
  %v74 = vlaneseq
  %v75 = vshrl.u32 %v74, 7
  %v76 = vsub.s32 1, %v75
  %v77 = vrot.slane %v68, %v76
  %v78 = vlaneseq
  %v79 = vshrl.u32 %v78, 7
  %v80 = vsub.s32 2, %v79
  %v81 = vrot.slane %v68, %v80
  %v82 = vlaneseq
  %v83 = vshrl.u32 %v82, 7
  %v84 = vsub.s32 3, %v83
  %v85 = vrot.slane %v68, %v84
  %v90 = vadd.f32 %v52, %v73
  %v91 = vadd.f32 %v53, %v77
  %v92 = vadd.f32 %v54, %v81
  %v93 = vadd.f32 %v55, %v85
  %v94 = vadd.f32 %v56, %v73
  %v95 = vadd.f32 %v57, %v77
  %v96 = vadd.f32 %v58, %v81
  %v97 = vadd.f32 %v59, %v85
  %v98 = vadd.f32 %v60, %v73
  %v99 = vadd.f32 %v61, %v77
  %v100 = vadd.f32 %v62, %v81
  %v101 = vadd.f32 %v63, %v85
  %v102 = vadd.f32 %v64, %v73
  %v103 = vadd.f32 %v65, %v77
  %v104 = vadd.f32 %v66, %v81
  %v105 = vadd.f32 %v67, %v85
  %vm106 = vcmp.ge.f32.partialorder %v90, 0.0
  %vm107 = vcmp.ge.f32.partialorder %v91, 0.0
  %vm108 = vcmp.ge.f32.partialorder %v92, 0.0
  %vm109 = vcmp.ge.f32.partialorder %v93, 0.0
  %vm110 = vcmp.ge.f32.partialorder %v94, 0.0
  %vm111 = vcmp.ge.f32.partialorder %v95, 0.0
  %vm112 = vcmp.ge.f32.partialorder %v96, 0.0
  %vm113 = vcmp.ge.f32.partialorder %v97, 0.0
  %vm114 = vcmp.ge.f32.partialorder %v98, 0.0
  %vm115 = vcmp.ge.f32.partialorder %v99, 0.0
  %vm116 = vcmp.ge.f32.partialorder %v100, 0.0
  %vm117 = vcmp.ge.f32.partialorder %v101, 0.0
  %vm118 = vcmp.ge.f32.partialorder %v102, 0.0
  %vm119 = vcmp.ge.f32.partialorder %v103, 0.0
  %vm120 = vcmp.ge.f32.partialorder %v104, 0.0
  %vm121 = vcmp.ge.f32.partialorder %v105, 0.0
  %v122 = vmul.f32 %v90, 0.2
  %v123 = vmul.f32 %v91, 0.2
  %v124 = vmul.f32 %v92, 0.2
  %v125 = vmul.f32 %v93, 0.2
  %v126 = vmul.f32 %v94, 0.2
  %v127 = vmul.f32 %v95, 0.2
  %v128 = vmul.f32 %v96, 0.2
  %v129 = vmul.f32 %v97, 0.2
  %v130 = vmul.f32 %v98, 0.2
  %v131 = vmul.f32 %v99, 0.2
  %v132 = vmul.f32 %v100, 0.2
  %v133 = vmul.f32 %v101, 0.2
  %v134 = vmul.f32 %v102, 0.2
  %v135 = vmul.f32 %v103, 0.2
  %v136 = vmul.f32 %v104, 0.2
  %v137 = vmul.f32 %v105, 0.2
  %v138 = vsel %vm106, %v90, %v122
  %v139 = vsel %vm107, %v91, %v123
  %v140 = vsel %vm108, %v92, %v124
  %v141 = vsel %vm109, %v93, %v125
  %v142 = vsel %vm110, %v94, %v126
  %v143 = vsel %vm111, %v95, %v127
  %v144 = vsel %vm112, %v96, %v128
  %v145 = vsel %vm113, %v97, %v129
  %v146 = vsel %vm114, %v98, %v130
  %v147 = vsel %vm115, %v99, %v131
  %v148 = vsel %vm116, %v100, %v132
  %v149 = vsel %vm117, %v101, %v133
  %v150 = vsel %vm118, %v102, %v134
  %v151 = vsel %vm119, %v103, %v135
  %v152 = vsel %vm120, %v104, %v136
  %v153 = vsel %vm121, %v105, %v137
  %v154 = vpack.c.bf16 %v142, %v138
  %v155 = vpack.c.bf16 %v143, %v139
  %v156 = vpack.c.bf16 %v144, %v140
  %v157 = vpack.c.bf16 %v145, %v141
  %v158 = vpack.c.bf16 %v150, %v146
  %v159 = vpack.c.bf16 %v151, %v147
  %v160 = vpack.c.bf16 %v152, %v148
  %v161 = vpack.c.bf16 %v153, %v149
  %v170 = vunpack.c.l.b16 %v154
  %v171 = vunpack.c.l.b16 %v155
  %v172 = vunpack.c.l.b16 %v156
  %v173 = vunpack.c.l.b16 %v157
  %v174 = vunpack.c.h.b16 %v154
  %v175 = vunpack.c.h.b16 %v155
  %v176 = vunpack.c.h.b16 %v156
  %v177 = vunpack.c.h.b16 %v157
  %v178 = vunpack.c.l.b16 %v158
  %v179 = vunpack.c.l.b16 %v159
  %v180 = vunpack.c.l.b16 %v160
  %v181 = vunpack.c.l.b16 %v161
  %v182 = vunpack.c.h.b16 %v158
  %v183 = vunpack.c.h.b16 %v159
  %v184 = vunpack.c.h.b16 %v160
  %v185 = vunpack.c.h.b16 %v161
  %v186 = vpack.c.b16 %v171, %v170
  %v187 = vpack.c.b16 %v173, %v172
  %v188 = vpack.c.b16 %v175, %v174
  %v189 = vpack.c.b16 %v177, %v176
  %v190 = vpack.c.b16 %v179, %v178
  %v191 = vpack.c.b16 %v181, %v180
  %v192 = vpack.c.b16 %v183, %v182
  %v193 = vpack.c.b16 %v185, %v184
  %202 = vst [vmem:[%s3] sm:$0xff] %v186
  %203 = vst [vmem:[%s3 + $0x8] sm:$0xff] %v187
  %204 = vst [vmem:[%s3 + $0x10] sm:$0xff] %v188
  %205 = vst [vmem:[%s3 + $0x18] sm:$0xff] %v189
  %206 = vst [vmem:[%s3 + $0x20] sm:$0xff] %v190
  %207 = vst [vmem:[%s3 + $0x28] sm:$0xff] %v191
  %208 = vst [vmem:[%s3 + $0x30] sm:$0xff] %v192
  %209 = vst [vmem:[%s3 + $0x38] sm:$0xff] %v193
  // Predicated region
  $region14: #{discriminator_forward.10} parent=0 // pred_check
    _
  $region15: #{discriminator_forward.10} parent=0 // pred_check_branch
    %211 = sbr.rel (0) target = $region17
  $region16: #{discriminator_forward.10} parent=0 // pred_region
    _
  $region17: #{discriminator_forward.10} parent=0 // pred_fallthru
    _
  // Predicated region
  $region18: #{discriminator_forward.10} parent=0 // pred_check
    _
  $region19: #{discriminator_forward.10} parent=0 // pred_check_branch
    %213 = sbr.rel (0) target = $region21
  $region20: #{discriminator_forward.10} parent=0 // pred_region
    _
  $region21: #{discriminator_forward.10} parent=0 // pred_fallthru
    _

// kernel: discriminator_forward.11
$region0: #{discriminator_forward.11}
  #allocation0 [shape = 'u32[]', space=smem, size = 0x4, offset = 0x4, fixed_abs, tag = 'smem constant byte address 0x4 - core index']
  #allocation1 [shape = 'u32[144,128]{1,0:T(1,128)}', space=vmem, size = 0x12000, scoped, tag = 'internal scratch']
  #allocation2 [shape = 'f32[8,128]{1,0:T(8,128)}', space=vmem, size = 0x1000, scoped, tag = 'scratch operand']
  %s0 = inlined_call_operand.vmem [shape: bf16[8,8192], index: 0, kind: input, shape index: {}]
  %s1 = inlined_call_operand.vmem [shape: bf16[8192,128], index: 1, kind: input, shape index: {}]
  %s2 = inlined_call_operand.vmem [shape: f32[8,128], index: 2, kind: output, shape index: {}]
  %s3 = sld [smem:[#allocation0]]
  $region49: #{discriminator_forward.11} parent=0
    _
  %s5 = ssub.s32 1, %s3
  %s6 = scalar_select 0, %s5, %s3
  loop: start=0, step=1, limit=18
  $region2: #{discriminator_forward.11} parent=0 // loop_pre_header
    _
  $region3: #{discriminator_forward.11} parent=0 // loop_header
    %s8 = sphi 0, %s12
    %p9 = scmp.ge.s32.totalorder %s8, 18
    %s15 = sphi 0, %s34
    %s16 = sphi 0, %s30
    %s17 = sphi 0, %s26
    %s18 = sphi 0, %s15
    %s19 = sphi 0, %s16
    %s20 = sphi 0, %s17
    %s21 = sphi 0, %s18
    %s22 = sphi 0, %s19
    %s23 = sphi 0, %s20
    %s39 = sphi 0, %s41
    %s42 = sphi 0, %s39
    %s43 = sphi 0, %s42
    %s59 = sphi 0, %s43
    %s67 = sphi 0, %s69
    %s70 = sphi 0, %s67
    %s71 = sphi 0, %s70
    %s87 = sphi 0, %s71
    %s95 = sphi 0, %s97
    %s98 = sphi 0, %s95
    %s99 = sphi 0, %s98
    %s115 = sphi 0, %s99
  $region4: #{discriminator_forward.11} parent=0 // loop_header_branch
    %11 = sbr.rel (%p9) target = $region8
  $region5: #{discriminator_forward.11} parent=0 // loop_body
    %s13 = ssub.s32 %s8, 1
    %s14 = ssub.s32 %s8, 2
    %s24 = sadd.s32 1, %s17
    %p25 = scmp.ge.s32.totalorder %s24, 16
    %s26 = scalar_select %p25, 0, %s24
    %s27 = sadd.s32 1, %s16
    %s28 = scalar_select %p25, %s27, %s16
    %p29 = scmp.ge.s32.totalorder %s28, 1
    %s30 = scalar_select %p29, 0, %s28
    %s31 = sadd.s32 1, %s15
    %s32 = scalar_select %p29, %s31, %s15
    %p33 = scmp.ge.s32.totalorder %s32, 1
    %s34 = scalar_select %p33, 0, %s32
    %s35 = ssub.s32 %s15, %s34
    %s36 = ssub.s32 %s17, %s26
    %s37 = sor.u32 %s35, %s36
    %p38 = scmp.eq.s32.totalorder %s37, 0
    %s40 = sadd.s32 %s39, 1
    %s41 = scalar_select %p38, %s39, %s40
    %p44 = pneg %p38
    %p45 = scmp.eq.s32.totalorder %s8, 15
    %p46 = por %p44, %p45
    %p47 = scmp.ne.s32.totalorder %s39, %s42
    %p48 = scmp.eq.s32.totalorder %s8, 0
    %p49 = por %p47, %p48
    %p50 = scmp.ne.s32.totalorder %s39, %s42
    %p51 = scmp.eq.s32.totalorder %s13, 15
    %p52 = por %p50, %p51
    %p53 = scmp.ne.s32.totalorder %s42, %s43
    %p54 = scmp.eq.s32.totalorder %s13, 0
    %p55 = por %p53, %p54
    %p56 = scmp.ne.s32.totalorder %s42, %s43
    %p57 = scmp.eq.s32.totalorder %s14, 15
    %p58 = por %p56, %p57
    %p60 = scmp.ne.s32.totalorder %s43, %s59
    %p61 = scmp.eq.s32.totalorder %s14, 0
    %p62 = por %p60, %p61
    %s63 = ssub.s32 %s17, %s26
    %s64 = ssub.s32 %s16, %s30
    %s65 = sor.u32 %s63, %s64
    %p66 = scmp.eq.s32.totalorder %s65, 0
    %s68 = sadd.s32 %s67, 1
    %s69 = scalar_select %p66, %s67, %s68
    %p72 = pneg %p66
    %p73 = scmp.eq.s32.totalorder %s8, 15
    %p74 = por %p72, %p73
    %p75 = scmp.ne.s32.totalorder %s67, %s70
    %p76 = scmp.eq.s32.totalorder %s8, 0
    %p77 = por %p75, %p76
    %p78 = scmp.ne.s32.totalorder %s67, %s70
    %p79 = scmp.eq.s32.totalorder %s13, 15
    %p80 = por %p78, %p79
    %p81 = scmp.ne.s32.totalorder %s70, %s71
    %p82 = scmp.eq.s32.totalorder %s13, 0
    %p83 = por %p81, %p82
    %p84 = scmp.ne.s32.totalorder %s70, %s71
    %p85 = scmp.eq.s32.totalorder %s14, 15
    %p86 = por %p84, %p85
    %p88 = scmp.ne.s32.totalorder %s71, %s87
    %p89 = scmp.eq.s32.totalorder %s14, 0
    %p90 = por %p88, %p89
    %s91 = ssub.s32 %s15, %s34
    %s92 = ssub.s32 %s16, %s30
    %s93 = sor.u32 %s91, %s92
    %p94 = scmp.eq.s32.totalorder %s93, 0
    %s96 = sadd.s32 %s95, 1
    %s97 = scalar_select %p94, %s95, %s96
    %p100 = pneg %p94
    %p101 = scmp.eq.s32.totalorder %s8, 15
    %p102 = por %p100, %p101
    %p103 = scmp.ne.s32.totalorder %s95, %s98
    %p104 = scmp.eq.s32.totalorder %s8, 0
    %p105 = por %p103, %p104
    %p106 = scmp.ne.s32.totalorder %s95, %s98
    %p107 = scmp.eq.s32.totalorder %s13, 15
    %p108 = por %p106, %p107
    %p109 = scmp.ne.s32.totalorder %s98, %s99
    %p110 = scmp.eq.s32.totalorder %s13, 0
    %p111 = por %p109, %p110
    %p112 = scmp.ne.s32.totalorder %s98, %s99
    %p113 = scmp.eq.s32.totalorder %s14, 15
    %p114 = por %p112, %p113
    %p116 = scmp.ne.s32.totalorder %s99, %s115
    %p117 = scmp.eq.s32.totalorder %s14, 0
    %p118 = por %p116, %p117
    %p119 = scmp.le.s32.totalorder 1, %s8
    %p120 = scmp.lt.s32.totalorder %s8, 17
    %p121 = pnand %p119, %p120
    %p122 = pneg %p121
    // Predicated region
    $region9: #{discriminator_forward.11} parent=5 // pred_check
      _
    $region10: #{discriminator_forward.11} parent=5 // pred_check_branch
      %124 = sbr.rel (%p121) target = $region12
    $region11: #{discriminator_forward.11} parent=5 // pred_region
      %s125 = ssub.s32 %s8, 1
    $region12: #{discriminator_forward.11} parent=5 // pred_fallthru
      _
    %p126 = scmp.lt.s32.totalorder %s8, 16
    // Predicated region
    $region13: #{discriminator_forward.11} parent=5 // pred_check
      %p127 = pneg %p126
    $region14: #{discriminator_forward.11} parent=5 // pred_check_branch
      %129 = sbr.rel (%p127) target = $region16
    $region15: #{discriminator_forward.11} parent=5 // pred_region
      // Predicated region
      $region17: #{discriminator_forward.11} parent=15 // pred_check
        %p130 = pneg %p49
      $region18: #{discriminator_forward.11} parent=15 // pred_check_branch
        %132 = sbr.rel (%p130) target = $region20
      $region19: #{discriminator_forward.11} parent=15 // pred_region
        %s133 = smul.u32 4, %s17
        %p134 = scmp.lt.s32.totalorder %s15, 0
        %s135 = scalar_select %p134, %s15, 0
        %p136 = scmp.lt.s32.totalorder %s133, 63
        %s137 = scalar_select %p136, %s133, 63
        %s138 = smul.addr %s135, 64
        %s139 = sadd.s32 %s137, %s138
        %s140 = smul.addr %s139, 4
        %s141 = scalar_lea.vmem %s0, %s140
        %s142 = smul.u32 4, %s17
      $region20: #{discriminator_forward.11} parent=15 // pred_fallthru
        _
      // Predicated region
      $region21: #{discriminator_forward.11} parent=15 // pred_check
        %p143 = pneg %p77
      $region22: #{discriminator_forward.11} parent=15 // pred_check_branch
        %145 = sbr.rel (%p143) target = $region24
      $region23: #{discriminator_forward.11} parent=15 // pred_region
        %s146 = smul.u32 64, %s17
        %p147 = scmp.lt.s32.totalorder %s146, 1023
        %s148 = scalar_select %p147, %s146, 1023
        %p149 = scmp.lt.s32.totalorder %s16, 0
        %s150 = scalar_select %p149, %s16, 0
        %s151 = sadd.s32 %s150, %s148
        %s152 = smul.addr %s151, 4
        %s153 = scalar_lea.vmem %s1, %s152
        %s154 = smul.u32 64, %s17
      $region24: #{discriminator_forward.11} parent=15 // pred_fallthru
        _
    $region16: #{discriminator_forward.11} parent=5 // pred_fallthru
      _
    %p155 = scmp.le.s32.totalorder 1, %s8
    %p156 = scmp.lt.s32.totalorder %s8, 17
    %p157 = pnand %p155, %p156
    %p158 = pneg %p157
    // Predicated region
    $region25: #{discriminator_forward.11} parent=5 // pred_check
      _
    $region26: #{discriminator_forward.11} parent=5 // pred_check_branch
      %160 = sbr.rel (%p157) target = $region28
    $region27: #{discriminator_forward.11} parent=5 // pred_region
      %s161 = ssub.s32 %s8, 1
      %s162 = smul.u32 4, %s20
      %p163 = scmp.lt.s32.totalorder %s18, 0
      %s164 = scalar_select %p163, %s18, 0
      %p165 = scmp.lt.s32.totalorder %s162, 63
      %s166 = scalar_select %p165, %s162, 63
      %s167 = smul.addr %s164, 64
      %s168 = sadd.s32 %s166, %s167
      %s169 = smul.addr %s168, 4
      %s170 = scalar_lea.vmem %s0, %s169
      %p171 = pneg %p55
      %p172 = pneg %p52
      %s173 = smul.u32 64, %s20
      %p174 = scmp.lt.s32.totalorder %s173, 1023
      %s175 = scalar_select %p174, %s173, 1023
      %p176 = scmp.lt.s32.totalorder %s19, 0
      %s177 = scalar_select %p176, %s19, 0
      %s178 = sadd.s32 %s177, %s175
      %s179 = smul.addr %s178, 4
      %s180 = scalar_lea.vmem %s1, %s179
      %p181 = pneg %p83
      %p182 = pneg %p80
      %p183 = pneg %p111
      %p184 = pneg %p108
      %p185 = scmp.lt.s32.totalorder %s18, 0
      %s186 = scalar_select %p185, %s18, 0
      %p187 = scmp.lt.s32.totalorder %s19, 0
      %s188 = scalar_select %p187, %s19, 0
      %s189 = sadd.s32 %s188, %s186
      %s190 = smul.addr %s189, 8
      %s191 = scalar_lea.vmem %s2, %s190
      %s192 = smul.u32 4, %s20
      %p193 = scmp.lt.s32.totalorder %s18, 0
      %s194 = scalar_select %p193, %s18, 0
      %p195 = scmp.lt.s32.totalorder %s192, 63
      %s196 = scalar_select %p195, %s192, 63
      %s197 = smul.addr %s194, 64
      %s198 = sadd.s32 %s196, %s197
      %s199 = smul.addr %s198, 4
      %s200 = scalar_lea.vmem %s0, %s199
      %s201 = smul.u32 4, %s20
      %s202 = smul.u32 64, %s20
      %p203 = scmp.lt.s32.totalorder %s202, 1023
      %s204 = scalar_select %p203, %s202, 1023
      %p205 = scmp.lt.s32.totalorder %s19, 0
      %s206 = scalar_select %p205, %s19, 0
      %s207 = sadd.s32 %s206, %s204
      %s208 = smul.addr %s207, 4
      %s209 = scalar_lea.vmem %s1, %s208
      %s210 = smul.u32 64, %s20
      %p211 = scmp.lt.s32.totalorder %s18, 0
      %s212 = scalar_select %p211, %s18, 0
      %p213 = scmp.lt.s32.totalorder %s19, 0
      %s214 = scalar_select %p213, %s19, 0
      %s215 = sadd.s32 %s214, %s212
      %s216 = smul.addr %s215, 8
      %s217 = scalar_lea.vmem %s2, %s216
      %p219 = scmp.eq.s32.totalorder %s20, 0
      // Predicated region
      $region29: #{discriminator_forward.11} parent=27 // pred_check
        %p220 = pneg %p219
      $region30: #{discriminator_forward.11} parent=27 // pred_check_branch
        %222 = sbr.rel (%p220) target = $region32
      $region31: #{discriminator_forward.11} parent=27 // pred_region
        %223 = vst [vmem:[#allocation2] sm:$0xff] 0.0
      $region32: #{discriminator_forward.11} parent=27 // pred_fallthru
        _
      %v224 = vld [vmem:[#allocation2] sm:$0xff]
      %v225 = vld [vmem:[%s200] sm:$0xff]
      %v226 = vld [vmem:[%s200 + $0x8] sm:$0xff]
      %v227 = vld [vmem:[%s209] sm:$0xf]
      %v228 = vld [vmem:[%s209 + $0x4] sm:$0xf]
      %v229 = vld [vmem:[%s209 + $0x8] sm:$0xf]
      %v230 = vld [vmem:[%s209 + $0xc] sm:$0xf]
      %v231 = vld [vmem:[%s209 + $0x10] sm:$0xf]
      %v232 = vld [vmem:[%s209 + $0x14] sm:$0xf]
      %v233 = vld [vmem:[%s209 + $0x18] sm:$0xf]
      %v234 = vld [vmem:[%s209 + $0x1c] sm:$0xf]
      %v235 = vld [vmem:[%s209 + $0x20] sm:$0xf]
      %v236 = vld [vmem:[%s209 + $0x24] sm:$0xf]
      %v237 = vld [vmem:[%s209 + $0x28] sm:$0xf]
      %v238 = vld [vmem:[%s209 + $0x2c] sm:$0xf]
      %v239 = vld [vmem:[%s209 + $0x30] sm:$0xf]
      %v240 = vld [vmem:[%s209 + $0x34] sm:$0xf]
      %v241 = vld [vmem:[%s209 + $0x38] sm:$0xf]
      %v242 = vld [vmem:[%s209 + $0x3c] sm:$0xf]
      %v243 = vld [vmem:[%s209 + $0x40] sm:$0xf]
      %v244 = vld [vmem:[%s209 + $0x44] sm:$0xf]
      %v245 = vld [vmem:[%s209 + $0x48] sm:$0xf]
      %v246 = vld [vmem:[%s209 + $0x4c] sm:$0xf]
      %v247 = vld [vmem:[%s209 + $0x50] sm:$0xf]
      %v248 = vld [vmem:[%s209 + $0x54] sm:$0xf]
      %v249 = vld [vmem:[%s209 + $0x58] sm:$0xf]
      %v250 = vld [vmem:[%s209 + $0x5c] sm:$0xf]
      %v251 = vld [vmem:[%s209 + $0x60] sm:$0xf]
      %v252 = vld [vmem:[%s209 + $0x64] sm:$0xf]
      %v253 = vld [vmem:[%s209 + $0x68] sm:$0xf]
      %v254 = vld [vmem:[%s209 + $0x6c] sm:$0xf]
      %v255 = vld [vmem:[%s209 + $0x70] sm:$0xf]
      %v256 = vld [vmem:[%s209 + $0x74] sm:$0xf]
      %v257 = vld [vmem:[%s209 + $0x78] sm:$0xf]
      %v258 = vld [vmem:[%s209 + $0x7c] sm:$0xf]
      %v259 = vld [vmem:[%s209 + $0x80] sm:$0xf]
      %v260 = vld [vmem:[%s209 + $0x84] sm:$0xf]
      %v261 = vld [vmem:[%s209 + $0x88] sm:$0xf]
      %v262 = vld [vmem:[%s209 + $0x8c] sm:$0xf]
      %v263 = vld [vmem:[%s209 + $0x90] sm:$0xf]
      %v264 = vld [vmem:[%s209 + $0x94] sm:$0xf]
      %v265 = vld [vmem:[%s209 + $0x98] sm:$0xf]
      %v266 = vld [vmem:[%s209 + $0x9c] sm:$0xf]
      %v267 = vld [vmem:[%s209 + $0xa0] sm:$0xf]
      %v268 = vld [vmem:[%s209 + $0xa4] sm:$0xf]
      %v269 = vld [vmem:[%s209 + $0xa8] sm:$0xf]
      %v270 = vld [vmem:[%s209 + $0xac] sm:$0xf]
      %v271 = vld [vmem:[%s209 + $0xb0] sm:$0xf]
      %v272 = vld [vmem:[%s209 + $0xb4] sm:$0xf]
      %v273 = vld [vmem:[%s209 + $0xb8] sm:$0xf]
      %v274 = vld [vmem:[%s209 + $0xbc] sm:$0xf]
      %v275 = vld [vmem:[%s209 + $0xc0] sm:$0xf]
      %v276 = vld [vmem:[%s209 + $0xc4] sm:$0xf]
      %v277 = vld [vmem:[%s209 + $0xc8] sm:$0xf]
      %v278 = vld [vmem:[%s209 + $0xcc] sm:$0xf]
      %v279 = vld [vmem:[%s209 + $0xd0] sm:$0xf]
      %v280 = vld [vmem:[%s209 + $0xd4] sm:$0xf]
      %v281 = vld [vmem:[%s209 + $0xd8] sm:$0xf]
      %v282 = vld [vmem:[%s209 + $0xdc] sm:$0xf]
      %v283 = vld [vmem:[%s209 + $0xe0] sm:$0xf]
      %v284 = vld [vmem:[%s209 + $0xe4] sm:$0xf]
      %v285 = vld [vmem:[%s209 + $0xe8] sm:$0xf]
      %v286 = vld [vmem:[%s209 + $0xec] sm:$0xf]
      %v287 = vld [vmem:[%s209 + $0xf0] sm:$0xf]
      %v288 = vld [vmem:[%s209 + $0xf4] sm:$0xf]
      %v289 = vld [vmem:[%s209 + $0xf8] sm:$0xf]
      %v290 = vld [vmem:[%s209 + $0xfc] sm:$0xf]
      %v293 = vunpack.c.l.b16 %v225
      %v294 = vunpack.c.h.b16 %v225
      %v295 = vunpack.c.l.b16 %v226
      %v296 = vunpack.c.h.b16 %v226
      %v297 = vpack.c.b16 %v293, %v293
      %v298 = vpack.c.b16 %v294, %v294
      %v299 = vpack.c.b16 %v295, %v295
      %v300 = vpack.c.b16 %v296, %v296
      %v369 = vunpack.c.l.b16 %v227
      %v370 = vunpack.c.l.b16 %v228
      %v371 = vunpack.c.l.b16 %v229
      %v372 = vunpack.c.l.b16 %v230
      %v373 = vunpack.c.l.b16 %v231
      %v374 = vunpack.c.l.b16 %v232
      %v375 = vunpack.c.l.b16 %v233
      %v376 = vunpack.c.l.b16 %v234
      %v377 = vunpack.c.l.b16 %v235
      %v378 = vunpack.c.l.b16 %v236
      %v379 = vunpack.c.l.b16 %v237
      %v380 = vunpack.c.l.b16 %v238
      %v381 = vunpack.c.l.b16 %v239
      %v382 = vunpack.c.l.b16 %v240
      %v383 = vunpack.c.l.b16 %v241
      %v384 = vunpack.c.l.b16 %v242
      %v385 = vunpack.c.l.b16 %v243
      %v386 = vunpack.c.l.b16 %v244
      %v387 = vunpack.c.l.b16 %v245
      %v388 = vunpack.c.l.b16 %v246
      %v389 = vunpack.c.l.b16 %v247
      %v390 = vunpack.c.l.b16 %v248
      %v391 = vunpack.c.l.b16 %v249
      %v392 = vunpack.c.l.b16 %v250
      %v393 = vunpack.c.l.b16 %v251
      %v394 = vunpack.c.l.b16 %v252
      %v395 = vunpack.c.l.b16 %v253
      %v396 = vunpack.c.l.b16 %v254
      %v397 = vunpack.c.l.b16 %v255
      %v398 = vunpack.c.l.b16 %v256
      %v399 = vunpack.c.l.b16 %v257
      %v400 = vunpack.c.l.b16 %v258
      %v401 = vunpack.c.l.b16 %v259
      %v402 = vunpack.c.l.b16 %v260
      %v403 = vunpack.c.l.b16 %v261
      %v404 = vunpack.c.l.b16 %v262
      %v405 = vunpack.c.l.b16 %v263
      %v406 = vunpack.c.l.b16 %v264
      %v407 = vunpack.c.l.b16 %v265
      %v408 = vunpack.c.l.b16 %v266
      %v409 = vunpack.c.l.b16 %v267
      %v410 = vunpack.c.l.b16 %v268
      %v411 = vunpack.c.l.b16 %v269
      %v412 = vunpack.c.l.b16 %v270
      %v413 = vunpack.c.l.b16 %v271
      %v414 = vunpack.c.l.b16 %v272
      %v415 = vunpack.c.l.b16 %v273
      %v416 = vunpack.c.l.b16 %v274
      %v417 = vunpack.c.l.b16 %v275
      %v418 = vunpack.c.l.b16 %v276
      %v419 = vunpack.c.l.b16 %v277
      %v420 = vunpack.c.l.b16 %v278
      %v421 = vunpack.c.l.b16 %v279
      %v422 = vunpack.c.l.b16 %v280
      %v423 = vunpack.c.l.b16 %v281
      %v424 = vunpack.c.l.b16 %v282
      %v425 = vunpack.c.l.b16 %v283
      %v426 = vunpack.c.l.b16 %v284
      %v427 = vunpack.c.l.b16 %v285
      %v428 = vunpack.c.l.b16 %v286
      %v429 = vunpack.c.l.b16 %v287
      %v430 = vunpack.c.l.b16 %v288
      %v431 = vunpack.c.l.b16 %v289
      %v432 = vunpack.c.l.b16 %v290
      %v433 = vpack.c.b16 %v370, %v369
      %v434 = vpack.c.b16 %v372, %v371
      %v435 = vpack.c.b16 %v374, %v373
      %v436 = vpack.c.b16 %v376, %v375
      %v437 = vpack.c.b16 %v378, %v377
      %v438 = vpack.c.b16 %v380, %v379
      %v439 = vpack.c.b16 %v382, %v381
      %v440 = vpack.c.b16 %v384, %v383
      %v441 = vpack.c.b16 %v386, %v385
      %v442 = vpack.c.b16 %v388, %v387
      %v443 = vpack.c.b16 %v390, %v389
      %v444 = vpack.c.b16 %v392, %v391
      %v445 = vpack.c.b16 %v394, %v393
      %v446 = vpack.c.b16 %v396, %v395
      %v447 = vpack.c.b16 %v398, %v397
      %v448 = vpack.c.b16 %v400, %v399
      %v449 = vpack.c.b16 %v402, %v401
      %v450 = vpack.c.b16 %v404, %v403
      %v451 = vpack.c.b16 %v406, %v405
      %v452 = vpack.c.b16 %v408, %v407
      %v453 = vpack.c.b16 %v410, %v409
      %v454 = vpack.c.b16 %v412, %v411
      %v455 = vpack.c.b16 %v414, %v413
      %v456 = vpack.c.b16 %v416, %v415
      %v457 = vpack.c.b16 %v418, %v417
      %v458 = vpack.c.b16 %v420, %v419
      %v459 = vpack.c.b16 %v422, %v421
      %v460 = vpack.c.b16 %v424, %v423
      %v461 = vpack.c.b16 %v426, %v425
      %v462 = vpack.c.b16 %v428, %v427
      %v463 = vpack.c.b16 %v430, %v429
      %v464 = vpack.c.b16 %v432, %v431
      %497 = vmatprep.subr.bf16.mxu0 0
      %498 = vmatpush1.bf16.msra.mxu0 %v433
      %499 = vmatprep.subr.bf16.mxu0 0
      %500 = vmatpush1.bf16.msra.mxu0 %v434
      %501 = vmatprep.subr.bf16.mxu0 0
      %502 = vmatpush1.bf16.msra.mxu0 %v435
      %503 = vmatprep.subr.bf16.mxu0 0
      %504 = vmatpush1.bf16.msra.mxu0 %v436
      %505 = vmatprep.subr.bf16.mxu0 0
      %506 = vmatpush1.bf16.msra.mxu0 %v437
      %507 = vmatprep.subr.bf16.mxu0 0
      %508 = vmatpush1.bf16.msra.mxu0 %v438
      %509 = vmatprep.subr.bf16.mxu0 0
      %510 = vmatpush1.bf16.msra.mxu0 %v439
      %511 = vmatprep.subr.bf16.mxu0 0
      %512 = vmatpush1.bf16.msra.mxu0 %v440
      %513 = vmatprep.subr.bf16.mxu0 0
      %514 = vmatpush1.bf16.msra.mxu0 %v441
      %515 = vmatprep.subr.bf16.mxu0 0
      %516 = vmatpush1.bf16.msra.mxu0 %v442
      %517 = vmatprep.subr.bf16.mxu0 0
      %518 = vmatpush1.bf16.msra.mxu0 %v443
      %519 = vmatprep.subr.bf16.mxu0 0
      %520 = vmatpush1.bf16.msra.mxu0 %v444
      %521 = vmatprep.subr.bf16.mxu0 0
      %522 = vmatpush1.bf16.msra.mxu0 %v445
      %523 = vmatprep.subr.bf16.mxu0 0
      %524 = vmatpush1.bf16.msra.mxu0 %v446
      %525 = vmatprep.subr.bf16.mxu0 0
      %526 = vmatpush1.bf16.msra.mxu0 %v447
      %527 = vmatprep.subr.bf16.mxu0 0
      %528 = vmatpush1.bf16.msra.mxu0 %v448
      %529 = vmatprep.mubr.bf16.mxu0 %v298
      %530 = vmatmul.mubr.bf16.gmra.mrb[0].mxu0 %v297
      %v531 = vpop.f32.mrb[0].mxu0
      %v532 = vadd.f32 0.0, %v531
      %v533 = vpop.f32.mrb[0].mxu0
      %v534 = vpop.f32.mrb[0].mxu0
      %v535 = vpop.f32.mrb[0].mxu0
      %536 = vdwg.mxu0
      %537 = vmatprep.subr.bf16.mxu0 0
      %538 = vmatpush1.bf16.msra.mxu0 %v449
      %539 = vmatprep.subr.bf16.mxu0 0
      %540 = vmatpush1.bf16.msra.mxu0 %v450
      %541 = vmatprep.subr.bf16.mxu0 0
      %542 = vmatpush1.bf16.msra.mxu0 %v451
      %543 = vmatprep.subr.bf16.mxu0 0
      %544 = vmatpush1.bf16.msra.mxu0 %v452
      %545 = vmatprep.subr.bf16.mxu0 0
      %546 = vmatpush1.bf16.msra.mxu0 %v453
      %547 = vmatprep.subr.bf16.mxu0 0
      %548 = vmatpush1.bf16.msra.mxu0 %v454
      %549 = vmatprep.subr.bf16.mxu0 0
      %550 = vmatpush1.bf16.msra.mxu0 %v455
      %551 = vmatprep.subr.bf16.mxu0 0
      %552 = vmatpush1.bf16.msra.mxu0 %v456
      %553 = vmatprep.subr.bf16.mxu0 0
      %554 = vmatpush1.bf16.msra.mxu0 %v457
      %555 = vmatprep.subr.bf16.mxu0 0
      %556 = vmatpush1.bf16.msra.mxu0 %v458
      %557 = vmatprep.subr.bf16.mxu0 0
      %558 = vmatpush1.bf16.msra.mxu0 %v459
      %559 = vmatprep.subr.bf16.mxu0 0
      %560 = vmatpush1.bf16.msra.mxu0 %v460
      %561 = vmatprep.subr.bf16.mxu0 0
      %562 = vmatpush1.bf16.msra.mxu0 %v461
      %563 = vmatprep.subr.bf16.mxu0 0
      %564 = vmatpush1.bf16.msra.mxu0 %v462
      %565 = vmatprep.subr.bf16.mxu0 0
      %566 = vmatpush1.bf16.msra.mxu0 %v463
      %567 = vmatprep.subr.bf16.mxu0 0
      %568 = vmatpush1.bf16.msra.mxu0 %v464
      %569 = vmatprep.mubr.bf16.mxu0 %v300
      %570 = vmatmul.mubr.bf16.gmra.mrb[0].mxu0 %v299
      %v571 = vpop.f32.mrb[0].mxu0
      %v572 = vadd.f32 %v532, %v571
      %v573 = vpop.f32.mrb[0].mxu0
      %v574 = vpop.f32.mrb[0].mxu0
      %v575 = vpop.f32.mrb[0].mxu0
      %576 = vdwg.mxu0
      %v577 = vadd.f32 %v224, %v572
      %578 = vst [vmem:[#allocation2] sm:$0xff] %v577
      %p579 = scmp.eq.s32.totalorder %s20, 15
      // Predicated region
      $region33: #{discriminator_forward.11} parent=27 // pred_check
        %p580 = pneg %p579
      $region34: #{discriminator_forward.11} parent=27 // pred_check_branch
        %582 = sbr.rel (%p580) target = $region36
      $region35: #{discriminator_forward.11} parent=27 // pred_region
        %v583 = vld [vmem:[#allocation2] sm:$0xff]
        %v584 = vsub.f32 0.0, %v583
        %v585 = vmul.f32 %v584, 1.442695
        %v586 = vpow.pop %v585
        %v587 = vadd.f32 %v586, 1.0
        %v588 = vrcp.pop %v587
        %589 = vst [vmem:[%s217] sm:$0xff] %v588
      $region36: #{discriminator_forward.11} parent=27 // pred_fallthru
        _
      %p590 = scmp.lt.s32.totalorder %s18, 0
      %s591 = scalar_select %p590, %s18, 0
      %p592 = scmp.lt.s32.totalorder %s19, 0
      %s593 = scalar_select %p592, %s19, 0
      %s594 = sadd.s32 %s593, %s591
      %s595 = smul.addr %s594, 8
      %s596 = scalar_lea.vmem %s2, %s595
      // Predicated region
      $region37: #{discriminator_forward.11} parent=27 // pred_check
        %p597 = pneg %p108
      $region38: #{discriminator_forward.11} parent=27 // pred_check_branch
        %599 = sbr.rel (%p597) target = $region40
      $region39: #{discriminator_forward.11} parent=27 // pred_region
        _
      $region40: #{discriminator_forward.11} parent=27 // pred_fallthru
        _
      // Predicated region
      $region41: #{discriminator_forward.11} parent=27 // pred_check
        %p600 = pneg %p108
      $region42: #{discriminator_forward.11} parent=27 // pred_check_branch
        %602 = sbr.rel (%p600) target = $region44
      $region43: #{discriminator_forward.11} parent=27 // pred_region
        %p603 = scmp.lt.s32.totalorder %s18, 0
        %s604 = scalar_select %p603, %s18, 0
        %p605 = scmp.lt.s32.totalorder %s19, 0
        %s606 = scalar_select %p605, %s19, 0
        %s607 = sadd.s32 %s606, %s604
        %s608 = smul.addr %s607, 8
        %s609 = scalar_lea.vmem %s2, %s608
      $region44: #{discriminator_forward.11} parent=27 // pred_fallthru
        _
    $region28: #{discriminator_forward.11} parent=5 // pred_fallthru
      _
    %p610 = scmp.le.s32.totalorder 2, %s8
    // Predicated region
    $region45: #{discriminator_forward.11} parent=5 // pred_check
      %p611 = pneg %p610
    $region46: #{discriminator_forward.11} parent=5 // pred_check_branch
      %613 = sbr.rel (%p611) target = $region48
    $region47: #{discriminator_forward.11} parent=5 // pred_region
      %s614 = ssub.s32 %s8, 2
    $region48: #{discriminator_forward.11} parent=5 // pred_fallthru
      _
  $region6: #{discriminator_forward.11} parent=0 // loop_footer
    %s12 = sadd.s32 1, %s8
  $region7: #{discriminator_forward.11} parent=0 // loop_footer_branch
    %7 = sbr.rel target = $region3
  $region8: #{discriminator_forward.11} parent=0 // loop_exit
    _

</llo_original>
